<compile_context>
chip_gen: v5e
topology: v5e:2x2
jax: 0.10.0
libtpu: 0.0.40
codegen_flags: <defaults>
</compile_context>

<pallas_src>
import functools
import numpy as np

import jax
import jax.numpy as jnp
from jax.experimental import pallas as pl
from jax.experimental.pallas import tpu as pltpu


# ----------------------------------------------------------------------------
# Small helpers
# ----------------------------------------------------------------------------
def _round_up(x, m):
    return (x + m - 1) // m * m


def _largest_divisor_leq(n, cap):
    for d in range(min(n, cap), 0, -1):
        if n % d == 0:
            return d
    return 1


def _row_tile(R, target=256):
    """Pick a row tile (multiple of 8, <= target) and the padded row count."""
    TR = min(target, _round_up(R, 8))
    return TR, _round_up(R, TR)


# ----------------------------------------------------------------------------
# GELU (exact, erf via Abramowitz-Stegun 7.1.26, |err| < 1.5e-7)
# ----------------------------------------------------------------------------
def _erf_approx(x):
    # TODO(synk): jax.lax.erf may not have a Mosaic lowering; polynomial erf instead.
    a1, a2, a3, a4, a5 = 0.254829592, -0.284496736, 1.421413741, -1.453152027, 1.061405429
    p = 0.3275911
    s = jnp.sign(x)
    ax = jnp.abs(x)
    # exact divide kept here: approx reciprocal would dominate the poly's 1.5e-7 error budget
    t = 1.0 / (1.0 + p * ax)
    poly = ((((a5 * t + a4) * t + a3) * t + a2) * t + a1) * t
    return s * (1.0 - poly * jnp.exp(-ax * ax))


def _gelu_exact(x):
    return 0.5 * x * (1.0 + _erf_approx(x * (1.0 / np.sqrt(2.0))))


# ----------------------------------------------------------------------------
# Kernel 1: fused LayerNorm1 + Q/K/V projections (+ query scale)
# ----------------------------------------------------------------------------
def _ln_qkv_kernel(xq_ref, xk_ref, xv_ref, g_ref, b_ref,
                   wq_ref, wk_ref, wv_ref, bq_ref, bk_ref, bv_ref,
                   q_ref, k_ref, v_ref, *, eps, scale):
    g = g_ref[...]
    b = b_ref[...]

    def ln(x):
        mu = jnp.mean(x, axis=-1, keepdims=True)
        d = x - mu
        var = jnp.mean(d * d, axis=-1, keepdims=True)
        return d * jax.lax.rsqrt(var + eps) * g + b

    nq = ln(xq_ref[...])
    nk = ln(xk_ref[...])
    nv = ln(xv_ref[...])
    q_ref[...] = ((jnp.dot(nq, wq_ref[...], preferred_element_type=jnp.float32)
                   + bq_ref[...]) * scale).astype(q_ref.dtype)
    k_ref[...] = (jnp.dot(nk, wk_ref[...], preferred_element_type=jnp.float32)
                  + bk_ref[...]).astype(k_ref.dtype)
    v_ref[...] = (jnp.dot(nv, wv_ref[...], preferred_element_type=jnp.float32)
                  + bv_ref[...]).astype(v_ref.dtype)


def ln_qkv_project(xq, xk, xv, gamma, beta, wq, wk, wv, bq, bk, bv, scale, eps=1e-5):
    """xq/xk/xv: (R, C); weights already (in, out). Returns projected q,k,v (R, C)."""
    R, C = xq.shape
    TR, Rp = _row_tile(R)
    if Rp != R:
        pad = ((0, Rp - R), (0, 0))
        xq, xk, xv = jnp.pad(xq, pad), jnp.pad(xk, pad), jnp.pad(xv, pad)

    row_spec = pl.BlockSpec((TR, C), lambda i: (i, 0))
    w_spec = pl.BlockSpec((C, C), lambda i: (0, 0))
    vec_spec = pl.BlockSpec((1, C), lambda i: (0, 0))

    kernel = functools.partial(_ln_qkv_kernel, eps=eps, scale=scale)
    q, k, v = pl.pallas_call(
        kernel,
        out_shape=tuple(jax.ShapeDtypeStruct((Rp, C), xq.dtype) for _ in range(3)),
        grid_spec=pltpu.PrefetchScalarGridSpec(
            num_scalar_prefetch=0,
            grid=(Rp // TR,),
            in_specs=[row_spec, row_spec, row_spec,
                      vec_spec, vec_spec,
                      w_spec, w_spec, w_spec,
                      vec_spec, vec_spec, vec_spec],
            out_specs=[row_spec, row_spec, row_spec]),
        compiler_params=pltpu.CompilerParams(dimension_semantics=("parallel",)),
    )(xq, xk, xv, gamma.reshape(1, C), beta.reshape(1, C),
      wq, wk, wv, bq.reshape(1, C), bk.reshape(1, C), bv.reshape(1, C))
    if Rp != R:
        q, k, v = q[:R], k[:R], v[:R]
    return q, k, v


# ----------------------------------------------------------------------------
# Kernel 2: window attention (WB windows x all heads per grid step)
# ----------------------------------------------------------------------------
def _make_window_attn_kernel(shifted):
    def body(q_ref, k_ref, v_ref, bias_ref, mask_ref, o_ref):
        wb, n_heads, n_tok, hd = q_ref.shape
        # Merge (window, head) into a single batch dim -> clean batched matmuls on the MXU.
        q = q_ref[...].reshape(wb * n_heads, n_tok, hd)
        k = k_ref[...].reshape(wb * n_heads, n_tok, hd)
        v = v_ref[...].reshape(wb * n_heads, n_tok, hd)
        s = jnp.einsum("bnc,bmc->bnm", q, k, preferred_element_type=jnp.float32)
        s = s.reshape(wb, n_heads, n_tok, n_tok)
        s = s + bias_ref[...][None]                       # rel-pos bias, broadcast over windows
        if mask_ref is not None:
            s = s + mask_ref[...][:, None]                # shift mask, broadcast over heads
        s = s - jnp.max(s, axis=-1, keepdims=True)
        e = jnp.exp(s)
        p = e * pl.reciprocal(jnp.sum(e, axis=-1, keepdims=True), approx=True)
        p = p.reshape(wb * n_heads, n_tok, n_tok)
        o = jnp.einsum("bnm,bmc->bnc", p, v, preferred_element_type=jnp.float32)
        o_ref[...] = o.reshape(wb, n_heads, n_tok, hd).astype(o_ref.dtype)

    if shifted:
        def kernel(q_ref, k_ref, v_ref, bias_ref, mask_ref, o_ref):
            body(q_ref, k_ref, v_ref, bias_ref, mask_ref, o_ref)
    else:
        def kernel(q_ref, k_ref, v_ref, bias_ref, o_ref):
            body(q_ref, k_ref, v_ref, bias_ref, None, o_ref)
    return kernel


def window_attention(qw, kw, vw, rel_bias, mask, wb):
    """qw/kw/vw: (G, nH, N, hd); rel_bias: (nH, N, N); mask: (nW, N, N) or None.

    Window ordering in G is batch-major / window-minor (window index = wh*nWw + ww), which must
    match build_shift_mask's window ordering -- that is what makes the mask index_map below valid.
    """
    G, nH, N, hd = qw.shape
    assert G % wb == 0
    shifted = mask is not None
    kernel = _make_window_attn_kernel(shifted)

    qkv_spec = pl.BlockSpec((wb, nH, N, hd), lambda g: (g, 0, 0, 0))
    bias_spec = pl.BlockSpec((nH, N, N), lambda g: (0, 0, 0))   # resident across the grid

    in_specs = [qkv_spec, qkv_spec, qkv_spec, bias_spec]
    args = [qw, kw, vw, rel_bias]
    if shifted:
        nW = mask.shape[0]
        assert nW % wb == 0
        n_mask_blocks = nW // wb
        in_specs.append(pl.BlockSpec((wb, N, N), lambda g: (g % n_mask_blocks, 0, 0)))
        args.append(mask)

    return pl.pallas_call(
        kernel,
        out_shape=jax.ShapeDtypeStruct((G, nH, N, hd), qw.dtype),
        grid_spec=pltpu.PrefetchScalarGridSpec(
            num_scalar_prefetch=0,
            grid=(G // wb,),
            in_specs=in_specs,
            out_specs=qkv_spec),
        compiler_params=pltpu.CompilerParams(dimension_semantics=("parallel",)),
    )(*args)


# ----------------------------------------------------------------------------
# Kernel 3: output projection fused with the attention residual add
# ----------------------------------------------------------------------------
def _proj_res_kernel(a_ref, r_ref, w_ref, b_ref, o_ref):
    out = (r_ref[...]
           + jnp.dot(a_ref[...], w_ref[...], preferred_element_type=jnp.float32)
           + b_ref[...])
    o_ref[...] = out.astype(o_ref.dtype)


def proj_residual(attn2d, resid2d, wp, bp):
    R, C = attn2d.shape
    TR, Rp = _row_tile(R)
    if Rp != R:
        pad = ((0, Rp - R), (0, 0))
        attn2d, resid2d = jnp.pad(attn2d, pad), jnp.pad(resid2d, pad)
    row_spec = pl.BlockSpec((TR, C), lambda i: (i, 0))
    out = pl.pallas_call(
        _proj_res_kernel,
        out_shape=jax.ShapeDtypeStruct((Rp, C), resid2d.dtype),
        grid_spec=pltpu.PrefetchScalarGridSpec(
            num_scalar_prefetch=0,
            grid=(Rp // TR,),
            in_specs=[row_spec, row_spec,
                      pl.BlockSpec((C, C), lambda i: (0, 0)),
                      pl.BlockSpec((1, C), lambda i: (0, 0))],
            out_specs=row_spec),
        compiler_params=pltpu.CompilerParams(dimension_semantics=("parallel",)),
    )(attn2d, resid2d, wp, bp.reshape(1, C))
    return out[:R] if Rp != R else out


# ----------------------------------------------------------------------------
# Kernel 4: fused LayerNorm2 + MLP (Linear -> GELU -> Linear) + residual add
# ----------------------------------------------------------------------------
def _ln_mlp_res_kernel(x_ref, g_ref, b_ref, w1_ref, b1_ref, w2_ref, b2_ref, o_ref, *, eps):
    x = x_ref[...]
    mu = jnp.mean(x, axis=-1, keepdims=True)
    d = x - mu
    var = jnp.mean(d * d, axis=-1, keepdims=True)
    h = d * jax.lax.rsqrt(var + eps) * g_ref[...] + b_ref[...]
    h = jnp.dot(h, w1_ref[...], preferred_element_type=jnp.float32) + b1_ref[...]
    h = _gelu_exact(h)
    out = x + jnp.dot(h, w2_ref[...], preferred_element_type=jnp.float32) + b2_ref[...]
    o_ref[...] = out.astype(o_ref.dtype)


def ln_mlp_residual(x2d, gamma, beta, w1, b1, w2, b2, eps=1e-5):
    """x2d: (R, C); w1: (C, Hd); w2: (Hd, C). Returns x + MLP(LN(x))."""
    R, C = x2d.shape
    Hd = w1.shape[1]
    TR, Rp = _row_tile(R)
    if Rp != R:
        x2d = jnp.pad(x2d, ((0, Rp - R), (0, 0)))
    row_spec = pl.BlockSpec((TR, C), lambda i: (i, 0))
    kernel = functools.partial(_ln_mlp_res_kernel, eps=eps)
    out = pl.pallas_call(
        kernel,
        out_shape=jax.ShapeDtypeStruct((Rp, C), x2d.dtype),
        grid_spec=pltpu.PrefetchScalarGridSpec(
            num_scalar_prefetch=0,
            grid=(Rp // TR,),
            in_specs=[row_spec,
                      pl.BlockSpec((1, C), lambda i: (0, 0)),
                      pl.BlockSpec((1, C), lambda i: (0, 0)),
                      pl.BlockSpec((C, Hd), lambda i: (0, 0)),
                      pl.BlockSpec((1, Hd), lambda i: (0, 0)),
                      pl.BlockSpec((Hd, C), lambda i: (0, 0)),
                      pl.BlockSpec((1, C), lambda i: (0, 0))],
            out_specs=row_spec),
        compiler_params=pltpu.CompilerParams(dimension_semantics=("parallel",)),
    )(x2d, gamma.reshape(1, C), beta.reshape(1, C), w1, b1.reshape(1, Hd), w2, b2.reshape(1, C))
    return out[:R] if Rp != R else out


# ----------------------------------------------------------------------------
# Glue: relative position bias, shift mask, the full block
# ----------------------------------------------------------------------------
def relative_position_bias(table, window_size, num_heads):
    Wh, Ww = window_size
    N = Wh * Ww
    coords = jnp.stack(jnp.meshgrid(jnp.arange(Wh), jnp.arange(Ww), indexing="ij"))  # (2,Wh,Ww)
    cf = coords.reshape(2, -1)
    rel = cf[:, :, None] - cf[:, None, :]            # (2, N, N)
    rel = rel.transpose(1, 2, 0)
    rel = rel + jnp.array([Wh - 1, Ww - 1])
    idx = rel[..., 0] * (2 * Ww - 1) + rel[..., 1]   # (N, N)
    bias = jnp.take(table, idx.reshape(-1), axis=0)  # (N*N, nH)
    bias = bias.reshape(N, N, num_heads).transpose(2, 0, 1)
    return bias                                      # (nH, N, N)


def build_shift_mask(pH, pW, window_size, shift_size):
    m = np.zeros((pH, pW), np.float32)
    h_slices = ((0, -window_size[0]), (-window_size[0], -shift_size[0]), (-shift_size[0], None))
    w_slices = ((0, -window_size[1]), (-window_size[1], -shift_size[1]), (-shift_size[1], None))
    count = 0
    for hs in h_slices:
        for ws in w_slices:
            m[hs[0]:hs[1], ws[0]:ws[1]] = count
            count += 1
    nWh, nWw = pH // window_size[0], pW // window_size[1]
    m = m.reshape(nWh, window_size[0], nWw, window_size[1]).transpose(0, 2, 1, 3)
    m = m.reshape(nWh * nWw, window_size[0] * window_size[1])
    diff = m[:, None, :] - m[:, :, None]
    mask = np.where(diff != 0, -100.0, 0.0).astype(np.float32)
    return jnp.asarray(mask)                         # (nW, N, N), window index = wh*nWw + ww


def style_swin_block(input_q, input_k, input_v, p, *, window_size, shift_size, num_heads):
    """exclude_MLP_after=False, dropout=0, stochastic_depth=0, norm_layer=LayerNorm."""
    B, H, W, C = input_q.shape
    hd = C // num_heads
    scale = float(hd) ** (-0.5)
    R = B * H * W

    # ---- fused LN1 + Q/K/V projections (pointwise over tokens, so done pre-window) ----
    q2, k2, v2 = ln_qkv_project(
        input_q.reshape(R, C), input_k.reshape(R, C), input_v.reshape(R, C),
        p["ln1_g"], p["ln1_b"],
        p["wq"].T, p["wk"].T, p["wv"].T,               # torch (out,in) -> (in,out)
        p["bq"], p["bk"], p["bv"], scale)
    q = q2.reshape(B, H, W, C)
    k = k2.reshape(B, H, W, C)
    v = v2.reshape(B, H, W, C)

    # ---- pad / roll (plain JAX) ----
    ws0, ws1 = window_size
    pad_b = (ws0 - H % ws0) % ws0
    pad_r = (ws1 - W % ws1) % ws1
    pH, pW = H + pad_b, W + pad_r
    if pad_b or pad_r:
        # reference zero-pads BEFORE the projection; projecting first means padded rows must
        # equal the projection bias (0 @ W + b), scaled for q.
        def pad_with(x, fill):
            fill = fill.reshape(1, 1, 1, C).astype(x.dtype)
            return jnp.pad(x - fill, ((0, 0), (0, pad_b), (0, pad_r), (0, 0))) + fill
        q = pad_with(q, p["bq"] * scale)
        k = pad_with(k, p["bk"])
        v = pad_with(v, p["bv"])

    ss = list(shift_size)
    if ws0 >= pH:
        ss[0] = 0
    if ws1 >= pW:
        ss[1] = 0
    shifted = sum(ss) > 0
    if shifted:
        q = jnp.roll(q, (-ss[0], -ss[1]), axis=(1, 2))
        k = jnp.roll(k, (-ss[0], -ss[1]), axis=(1, 2))
        v = jnp.roll(v, (-ss[0], -ss[1]), axis=(1, 2))

    nWh, nWw = pH // ws0, pW // ws1
    nW = nWh * nWw
    N = ws0 * ws1
    G = B * nW

    # window partition fused with the head split: (B,pH,pW,C) -> (G, nH, N, hd)
    def part(x):
        x = x.reshape(B, nWh, ws0, nWw, ws1, num_heads, hd)
        x = x.transpose(0, 1, 3, 5, 2, 4, 6)
        return x.reshape(G, num_heads, N, hd)

    qw, kw, vw = part(q), part(k), part(v)

    rel_bias = relative_position_bias(p["rpb_table"], window_size, num_heads)   # (nH, N, N)
    mask = build_shift_mask(pH, pW, window_size, ss) if shifted else None       # (nW, N, N)

    # windows per grid step: amortize per-step overhead, keep blocks within scoped VMEM,
    # keep the grid extent even-ish so v7x's two TensorCores both get work.
    wb = _largest_divisor_leq(nW, 16)

    out_w = window_attention(qw, kw, vw, rel_bias, mask, wb)   # (G, nH, N, hd)

    # de-window + merge heads: (G, nH, N, hd) -> (B, pH, pW, C)
    x = out_w.reshape(B, nWh, nWw, num_heads, ws0, ws1, hd)
    x = x.transpose(0, 1, 4, 2, 5, 3, 6).reshape(B, pH, pW, C)
    if shifted:
        x = jnp.roll(x, (ss[0], ss[1]), axis=(1, 2))
    x = x[:, :H, :W, :]

    # ---- output projection fused with the attention residual ----
    x = proj_residual(x.reshape(R, C), input_q.reshape(R, C), p["wproj"].T, p["bproj"])

    # ---- fused LN2 + MLP + residual ----
    x = ln_mlp_residual(x, p["ln2_g"], p["ln2_b"],
                        p["mlp_w1"].T, p["mlp_b1"], p["mlp_w2"].T, p["mlp_b2"])
    return x.reshape(B, H, W, C)


# ----------------------------------------------------------------------------
# Deterministic parameter init + demo
# ----------------------------------------------------------------------------
def init_params(key, dim, num_heads, window_size, mlp_ratio):
    hidden = int(dim * mlp_ratio)
    ks = jax.random.split(key, 12)

    def xavier(k, shape):
        fan_out, fan_in = shape
        a = np.sqrt(6.0 / (fan_in + fan_out))
        return jax.random.uniform(k, shape, jnp.float32, -a, a)

    return {
        "ln1_g": jnp.ones((dim,), jnp.float32),
        "ln1_b": jnp.zeros((dim,), jnp.float32),
        "ln2_g": jnp.ones((dim,), jnp.float32),
        "ln2_b": jnp.zeros((dim,), jnp.float32),
        # attention projections, torch-style (out, in)
        "wq": xavier(ks[0], (dim, dim)),
        "wk": xavier(ks[1], (dim, dim)),
        "wv": xavier(ks[2], (dim, dim)),
        "wproj": xavier(ks[3], (dim, dim)),
        "bq": 0.02 * jax.random.normal(ks[4], (dim,), jnp.float32),
        "bk": 0.02 * jax.random.normal(ks[5], (dim,), jnp.float32),
        "bv": 0.02 * jax.random.normal(ks[6], (dim,), jnp.float32),
        "bproj": 0.02 * jax.random.normal(ks[7], (dim,), jnp.float32),
        # relative position bias table: ((2*Wh-1)*(2*Ww-1), num_heads), trunc_normal(std=0.02)
        "rpb_table": 0.02 * jax.random.normal(
            ks[8], ((2 * window_size[0] - 1) * (2 * window_size[1] - 1), num_heads), jnp.float32),
        # MLP (torch-style (out, in))
        "mlp_w1": xavier(ks[9], (hidden, dim)),
        "mlp_b1": 1e-6 * jax.random.normal(ks[10], (hidden,), jnp.float32),
        "mlp_w2": xavier(ks[11], (dim, hidden)),
        "mlp_b2": 1e-6 * jax.random.normal(jax.random.fold_in(key, 99), (dim,), jnp.float32),
    }


if __name__ == "__main__":
    B, H, W, C = 2, 16, 16, 32
    num_heads = 4
    window_size = [8, 8]
    shift_size = [4, 4]
    mlp_ratio = 4.0

    key = jax.random.PRNGKey(0)
    kq, kk, kv, kp = jax.random.split(key, 4)
    input_q = jax.random.normal(kq, (B, H, W, C), jnp.float32)
    input_k = jax.random.normal(kk, (B, H, W, C), jnp.float32)
    input_v = jax.random.normal(kv, (B, H, W, C), jnp.float32)

    params = init_params(kp, C, num_heads, window_size, mlp_ratio)

    out = style_swin_block(input_q, input_k, input_v, params,
                           window_size=window_size, shift_size=shift_size,
                           num_heads=num_heads)
    out = jax.block_until_ready(out)
    assert out.shape == (B, H, W, C)
    assert bool(jnp.all(jnp.isfinite(out)))
    print("KERNEL_OK")
</pallas_src>

<mosaic_0001>
module attributes {stable_mosaic.version = 11 : i64} {
  func.func @_ln_qkv_kernel(%arg0: i32, %arg1: memref<256x32xf32, #tpu.memory_space<vmem>>, %arg2: memref<256x32xf32, #tpu.memory_space<vmem>>, %arg3: memref<256x32xf32, #tpu.memory_space<vmem>>, %arg4: memref<1x32xf32, #tpu.memory_space<vmem>>, %arg5: memref<1x32xf32, #tpu.memory_space<vmem>>, %arg6: memref<32x32xf32, #tpu.memory_space<vmem>>, %arg7: memref<32x32xf32, #tpu.memory_space<vmem>>, %arg8: memref<32x32xf32, #tpu.memory_space<vmem>>, %arg9: memref<1x32xf32, #tpu.memory_space<vmem>>, %arg10: memref<1x32xf32, #tpu.memory_space<vmem>>, %arg11: memref<1x32xf32, #tpu.memory_space<vmem>>, %arg12: memref<256x32xf32, #tpu.memory_space<vmem>>, %arg13: memref<256x32xf32, #tpu.memory_space<vmem>>, %arg14: memref<256x32xf32, #tpu.memory_space<vmem>>) attributes {dimension_semantics = [#tpu.dimension_semantics<parallel>], iteration_bounds = array<i64: 2>, scalar_prefetch = 0 : i64, scratch_operands = 0 : i64, tpu.core_type = #tpu.core_type<tc>, window_params = [{transform_indices = @transform_0, window_bounds = array<i64: 256, 32>}, {transform_indices = @transform_1, window_bounds = array<i64: 256, 32>}, {transform_indices = @transform_2, window_bounds = array<i64: 256, 32>}, {pipeline_mode = #tpu.pipeline_mode<synchronous>, transform_indices = @transform_3, window_bounds = array<i64: 1, 32>}, {pipeline_mode = #tpu.pipeline_mode<synchronous>, transform_indices = @transform_4, window_bounds = array<i64: 1, 32>}, {pipeline_mode = #tpu.pipeline_mode<synchronous>, transform_indices = @transform_5, window_bounds = array<i64: 32, 32>}, {pipeline_mode = #tpu.pipeline_mode<synchronous>, transform_indices = @transform_6, window_bounds = array<i64: 32, 32>}, {pipeline_mode = #tpu.pipeline_mode<synchronous>, transform_indices = @transform_7, window_bounds = array<i64: 32, 32>}, {pipeline_mode = #tpu.pipeline_mode<synchronous>, transform_indices = @transform_8, window_bounds = array<i64: 1, 32>}, {pipeline_mode = #tpu.pipeline_mode<synchronous>, transform_indices = @transform_9, window_bounds = array<i64: 1, 32>}, {pipeline_mode = #tpu.pipeline_mode<synchronous>, transform_indices = @transform_10, window_bounds = array<i64: 1, 32>}, {transform_indices = @transform_11, window_bounds = array<i64: 256, 32>}, {transform_indices = @transform_12, window_bounds = array<i64: 256, 32>}, {transform_indices = @transform_13, window_bounds = array<i64: 256, 32>}]} {
    %c0 = arith.constant 0 : index
    %c0_0 = arith.constant 0 : index
    %0 = vector.load %arg4[%c0, %c0_0] : memref<1x32xf32, #tpu.memory_space<vmem>>, vector<1x32xf32>
    %c0_1 = arith.constant 0 : index
    %c0_2 = arith.constant 0 : index
    %1 = vector.load %arg5[%c0_1, %c0_2] : memref<1x32xf32, #tpu.memory_space<vmem>>, vector<1x32xf32>
    %c0_3 = arith.constant 0 : index
    %c0_4 = arith.constant 0 : index
    %2 = vector.load %arg1[%c0_3, %c0_4] : memref<256x32xf32, #tpu.memory_space<vmem>>, vector<256x32xf32>
    %cst = arith.constant dense<0.000000e+00> : vector<256xf32>
    %3 = vector.multi_reduction <add>, %2, %cst [1] : vector<256x32xf32> to vector<256xf32>
    %4 = vector.shape_cast %3 : vector<256xf32> to vector<256x1xf32>
    %cst_5 = arith.constant 3.200000e+01 : f32
    %5 = vector.broadcast %cst_5 : f32 to vector<256x1xf32>
    %6 = arith.divf %4, %5 : vector<256x1xf32>
    %7 = vector.broadcast %6 : vector<256x1xf32> to vector<256x32xf32>
    %8 = arith.subf %2, %7 : vector<256x32xf32>
    %9 = arith.mulf %8, %8 : vector<256x32xf32>
    %cst_6 = arith.constant dense<0.000000e+00> : vector<256xf32>
    %10 = vector.multi_reduction <add>, %9, %cst_6 [1] : vector<256x32xf32> to vector<256xf32>
    %11 = vector.shape_cast %10 : vector<256xf32> to vector<256x1xf32>
    %cst_7 = arith.constant 3.200000e+01 : f32
    %12 = vector.broadcast %cst_7 : f32 to vector<256x1xf32>
    %13 = arith.divf %11, %12 : vector<256x1xf32>
    %cst_8 = arith.constant 9.99999974E-6 : f32
    %14 = vector.broadcast %cst_8 : f32 to vector<256x1xf32>
    %15 = arith.addf %13, %14 : vector<256x1xf32>
    %16 = math.rsqrt %15 : vector<256x1xf32>
    %17 = vector.broadcast %16 : vector<256x1xf32> to vector<256x32xf32>
    %18 = arith.mulf %8, %17 : vector<256x32xf32>
    %19 = vector.broadcast %0 : vector<1x32xf32> to vector<256x32xf32>
    %20 = arith.mulf %18, %19 : vector<256x32xf32>
    %21 = vector.broadcast %1 : vector<1x32xf32> to vector<256x32xf32>
    %22 = arith.addf %20, %21 : vector<256x32xf32>
    %c0_9 = arith.constant 0 : index
    %c0_10 = arith.constant 0 : index
    %23 = vector.load %arg2[%c0_9, %c0_10] : memref<256x32xf32, #tpu.memory_space<vmem>>, vector<256x32xf32>
    %cst_11 = arith.constant dense<0.000000e+00> : vector<256xf32>
    %24 = vector.multi_reduction <add>, %23, %cst_11 [1] : vector<256x32xf32> to vector<256xf32>
    %25 = vector.shape_cast %24 : vector<256xf32> to vector<256x1xf32>
    %cst_12 = arith.constant 3.200000e+01 : f32
    %26 = vector.broadcast %cst_12 : f32 to vector<256x1xf32>
    %27 = arith.divf %25, %26 : vector<256x1xf32>
    %28 = vector.broadcast %27 : vector<256x1xf32> to vector<256x32xf32>
    %29 = arith.subf %23, %28 : vector<256x32xf32>
    %30 = arith.mulf %29, %29 : vector<256x32xf32>
    %cst_13 = arith.constant dense<0.000000e+00> : vector<256xf32>
    %31 = vector.multi_reduction <add>, %30, %cst_13 [1] : vector<256x32xf32> to vector<256xf32>
    %32 = vector.shape_cast %31 : vector<256xf32> to vector<256x1xf32>
    %cst_14 = arith.constant 3.200000e+01 : f32
    %33 = vector.broadcast %cst_14 : f32 to vector<256x1xf32>
    %34 = arith.divf %32, %33 : vector<256x1xf32>
    %cst_15 = arith.constant 9.99999974E-6 : f32
    %35 = vector.broadcast %cst_15 : f32 to vector<256x1xf32>
    %36 = arith.addf %34, %35 : vector<256x1xf32>
    %37 = math.rsqrt %36 : vector<256x1xf32>
    %38 = vector.broadcast %37 : vector<256x1xf32> to vector<256x32xf32>
    %39 = arith.mulf %29, %38 : vector<256x32xf32>
    %40 = vector.broadcast %0 : vector<1x32xf32> to vector<256x32xf32>
    %41 = arith.mulf %39, %40 : vector<256x32xf32>
    %42 = vector.broadcast %1 : vector<1x32xf32> to vector<256x32xf32>
    %43 = arith.addf %41, %42 : vector<256x32xf32>
    %c0_16 = arith.constant 0 : index
    %c0_17 = arith.constant 0 : index
    %44 = vector.load %arg3[%c0_16, %c0_17] : memref<256x32xf32, #tpu.memory_space<vmem>>, vector<256x32xf32>
    %cst_18 = arith.constant dense<0.000000e+00> : vector<256xf32>
    %45 = vector.multi_reduction <add>, %44, %cst_18 [1] : vector<256x32xf32> to vector<256xf32>
    %46 = vector.shape_cast %45 : vector<256xf32> to vector<256x1xf32>
    %cst_19 = arith.constant 3.200000e+01 : f32
    %47 = vector.broadcast %cst_19 : f32 to vector<256x1xf32>
    %48 = arith.divf %46, %47 : vector<256x1xf32>
    %49 = vector.broadcast %48 : vector<256x1xf32> to vector<256x32xf32>
    %50 = arith.subf %44, %49 : vector<256x32xf32>
    %51 = arith.mulf %50, %50 : vector<256x32xf32>
    %cst_20 = arith.constant dense<0.000000e+00> : vector<256xf32>
    %52 = vector.multi_reduction <add>, %51, %cst_20 [1] : vector<256x32xf32> to vector<256xf32>
    %53 = vector.shape_cast %52 : vector<256xf32> to vector<256x1xf32>
    %cst_21 = arith.constant 3.200000e+01 : f32
    %54 = vector.broadcast %cst_21 : f32 to vector<256x1xf32>
    %55 = arith.divf %53, %54 : vector<256x1xf32>
    %cst_22 = arith.constant 9.99999974E-6 : f32
    %56 = vector.broadcast %cst_22 : f32 to vector<256x1xf32>
    %57 = arith.addf %55, %56 : vector<256x1xf32>
    %58 = math.rsqrt %57 : vector<256x1xf32>
    %59 = vector.broadcast %58 : vector<256x1xf32> to vector<256x32xf32>
    %60 = arith.mulf %50, %59 : vector<256x32xf32>
    %61 = vector.broadcast %0 : vector<1x32xf32> to vector<256x32xf32>
    %62 = arith.mulf %60, %61 : vector<256x32xf32>
    %63 = vector.broadcast %1 : vector<1x32xf32> to vector<256x32xf32>
    %64 = arith.addf %62, %63 : vector<256x32xf32>
    %c0_23 = arith.constant 0 : index
    %c0_24 = arith.constant 0 : index
    %65 = vector.load %arg6[%c0_23, %c0_24] : memref<32x32xf32, #tpu.memory_space<vmem>>, vector<32x32xf32>
    %cst_25 = arith.constant dense<0.000000e+00> : vector<256x32xf32>
    %66 = tpu.matmul %22, %65, %cst_25 {dimension_numbers = #tpu.dot_dimension_numbers<[1], [0], [0], [1], [0, 0, 1, 1], [], []>} : vector<256x32xf32>, vector<32x32xf32>, vector<256x32xf32> -> vector<256x32xf32>
    %c0_26 = arith.constant 0 : index
    %c0_27 = arith.constant 0 : index
    %67 = vector.load %arg9[%c0_26, %c0_27] : memref<1x32xf32, #tpu.memory_space<vmem>>, vector<1x32xf32>
    %68 = vector.broadcast %67 : vector<1x32xf32> to vector<256x32xf32>
    %69 = arith.addf %66, %68 : vector<256x32xf32>
    %cst_28 = arith.constant 0.353553385 : f32
    %70 = vector.broadcast %cst_28 : f32 to vector<256x32xf32>
    %71 = arith.mulf %69, %70 : vector<256x32xf32>
    %c0_29 = arith.constant 0 : index
    %c0_30 = arith.constant 0 : index
    %72 = vector.load %arg12[%c0_29, %c0_30] : memref<256x32xf32, #tpu.memory_space<vmem>>, vector<256x32xf32>
    tpu.vector_store %arg12[%c0_29, %c0_30], %71 {strides = array<i32>} : memref<256x32xf32, #tpu.memory_space<vmem>>, vector<256x32xf32>,
    %c0_31 = arith.constant 0 : index
    %c0_32 = arith.constant 0 : index
    %73 = vector.load %arg7[%c0_31, %c0_32] : memref<32x32xf32, #tpu.memory_space<vmem>>, vector<32x32xf32>
    %cst_33 = arith.constant dense<0.000000e+00> : vector<256x32xf32>
    %74 = tpu.matmul %43, %73, %cst_33 {dimension_numbers = #tpu.dot_dimension_numbers<[1], [0], [0], [1], [0, 0, 1, 1], [], []>} : vector<256x32xf32>, vector<32x32xf32>, vector<256x32xf32> -> vector<256x32xf32>
    %c0_34 = arith.constant 0 : index
    %c0_35 = arith.constant 0 : index
    %75 = vector.load %arg10[%c0_34, %c0_35] : memref<1x32xf32, #tpu.memory_space<vmem>>, vector<1x32xf32>
    %76 = vector.broadcast %75 : vector<1x32xf32> to vector<256x32xf32>
    %77 = arith.addf %74, %76 : vector<256x32xf32>
    %c0_36 = arith.constant 0 : index
    %c0_37 = arith.constant 0 : index
    %78 = vector.load %arg13[%c0_36, %c0_37] : memref<256x32xf32, #tpu.memory_space<vmem>>, vector<256x32xf32>
    tpu.vector_store %arg13[%c0_36, %c0_37], %77 {strides = array<i32>} : memref<256x32xf32, #tpu.memory_space<vmem>>, vector<256x32xf32>,
    %c0_38 = arith.constant 0 : index
    %c0_39 = arith.constant 0 : index
    %79 = vector.load %arg8[%c0_38, %c0_39] : memref<32x32xf32, #tpu.memory_space<vmem>>, vector<32x32xf32>
    %cst_40 = arith.constant dense<0.000000e+00> : vector<256x32xf32>
    %80 = tpu.matmul %64, %79, %cst_40 {dimension_numbers = #tpu.dot_dimension_numbers<[1], [0], [0], [1], [0, 0, 1, 1], [], []>} : vector<256x32xf32>, vector<32x32xf32>, vector<256x32xf32> -> vector<256x32xf32>
    %c0_41 = arith.constant 0 : index
    %c0_42 = arith.constant 0 : index
    %81 = vector.load %arg11[%c0_41, %c0_42] : memref<1x32xf32, #tpu.memory_space<vmem>>, vector<1x32xf32>
    %82 = vector.broadcast %81 : vector<1x32xf32> to vector<256x32xf32>
    %83 = arith.addf %80, %82 : vector<256x32xf32>
    %c0_43 = arith.constant 0 : index
    %c0_44 = arith.constant 0 : index
    %84 = vector.load %arg14[%c0_43, %c0_44] : memref<256x32xf32, #tpu.memory_space<vmem>>, vector<256x32xf32>
    tpu.vector_store %arg14[%c0_43, %c0_44], %83 {strides = array<i32>} : memref<256x32xf32, #tpu.memory_space<vmem>>, vector<256x32xf32>,
    return
  }
  func.func @transform_0(%arg0: i32) -> (i32, i32) {
    %c0_i32 = arith.constant 0 : i32
    %c0_i32_0 = arith.constant 0 : i32
    return %arg0, %c0_i32 : i32, i32
  }
  func.func @transform_1(%arg0: i32) -> (i32, i32) {
    %c0_i32 = arith.constant 0 : i32
    %c0_i32_0 = arith.constant 0 : i32
    return %arg0, %c0_i32 : i32, i32
  }
  func.func @transform_2(%arg0: i32) -> (i32, i32) {
    %c0_i32 = arith.constant 0 : i32
    %c0_i32_0 = arith.constant 0 : i32
    return %arg0, %c0_i32 : i32, i32
  }
  func.func @transform_3(%arg0: i32) -> (i32, i32) {
    %c0_i32 = arith.constant 0 : i32
    %c0_i32_0 = arith.constant 0 : i32
    %c0_i32_1 = arith.constant 0 : i32
    return %c0_i32, %c0_i32_0 : i32, i32
  }
  func.func @transform_4(%arg0: i32) -> (i32, i32) {
    %c0_i32 = arith.constant 0 : i32
    %c0_i32_0 = arith.constant 0 : i32
    %c0_i32_1 = arith.constant 0 : i32
    return %c0_i32, %c0_i32_0 : i32, i32
  }
  func.func @transform_5(%arg0: i32) -> (i32, i32) {
    %c0_i32 = arith.constant 0 : i32
    %c0_i32_0 = arith.constant 0 : i32
    %c0_i32_1 = arith.constant 0 : i32
    return %c0_i32, %c0_i32_0 : i32, i32
  }
  func.func @transform_6(%arg0: i32) -> (i32, i32) {
    %c0_i32 = arith.constant 0 : i32
    %c0_i32_0 = arith.constant 0 : i32
    %c0_i32_1 = arith.constant 0 : i32
    return %c0_i32, %c0_i32_0 : i32, i32
  }
  func.func @transform_7(%arg0: i32) -> (i32, i32) {
    %c0_i32 = arith.constant 0 : i32
    %c0_i32_0 = arith.constant 0 : i32
    %c0_i32_1 = arith.constant 0 : i32
    return %c0_i32, %c0_i32_0 : i32, i32
  }
  func.func @transform_8(%arg0: i32) -> (i32, i32) {
    %c0_i32 = arith.constant 0 : i32
    %c0_i32_0 = arith.constant 0 : i32
    %c0_i32_1 = arith.constant 0 : i32
    return %c0_i32, %c0_i32_0 : i32, i32
  }
  func.func @transform_9(%arg0: i32) -> (i32, i32) {
    %c0_i32 = arith.constant 0 : i32
    %c0_i32_0 = arith.constant 0 : i32
    %c0_i32_1 = arith.constant 0 : i32
    return %c0_i32, %c0_i32_0 : i32, i32
  }
  func.func @transform_10(%arg0: i32) -> (i32, i32) {
    %c0_i32 = arith.constant 0 : i32
    %c0_i32_0 = arith.constant 0 : i32
    %c0_i32_1 = arith.constant 0 : i32
    return %c0_i32, %c0_i32_0 : i32, i32
  }
  func.func @transform_11(%arg0: i32) -> (i32, i32) {
    %c0_i32 = arith.constant 0 : i32
    %c0_i32_0 = arith.constant 0 : i32
    return %arg0, %c0_i32 : i32, i32
  }
  func.func @transform_12(%arg0: i32) -> (i32, i32) {
    %c0_i32 = arith.constant 0 : i32
    %c0_i32_0 = arith.constant 0 : i32
    return %arg0, %c0_i32 : i32, i32
  }
  func.func @transform_13(%arg0: i32) -> (i32, i32) {
    %c0_i32 = arith.constant 0 : i32
    %c0_i32_0 = arith.constant 0 : i32
    return %arg0, %c0_i32 : i32, i32
  }
}

</mosaic_0001>

<llo_original>
// kernel: tpu_custom_call.1
$region0: #{tpu_custom_call.1}
  #allocation0 [shape = 'u32[]', space=smem, size = 0x4, offset = 0x4, fixed_abs, tag = 'smem constant byte address 0x4 - core index']
  #allocation1 [shape = 'u32[72,128]{1,0:T(1,128)}', space=vmem, size = 0x9000, scoped, tag = 'internal scratch']
  %s0 = inlined_call_operand.vmem [shape: f32[512,32], index: 0, kind: input, shape index: {}]
  %s1 = inlined_call_operand.vmem [shape: f32[512,32], index: 1, kind: input, shape index: {}]
  %s2 = inlined_call_operand.vmem [shape: f32[512,32], index: 2, kind: input, shape index: {}]
  %s3 = inlined_call_operand.vmem [shape: f32[1,32], index: 3, kind: input, shape index: {}]
  %s4 = inlined_call_operand.vmem [shape: f32[1,32], index: 4, kind: input, shape index: {}]
  %s5 = inlined_call_operand.vmem [shape: f32[32,32], index: 5, kind: input, shape index: {}]
  %s6 = inlined_call_operand.vmem [shape: f32[32,32], index: 6, kind: input, shape index: {}]
  %s7 = inlined_call_operand.vmem [shape: f32[32,32], index: 7, kind: input, shape index: {}]
  %s8 = inlined_call_operand.vmem [shape: f32[1,32], index: 8, kind: input, shape index: {}]
  %s9 = inlined_call_operand.vmem [shape: f32[1,32], index: 9, kind: input, shape index: {}]
  %s10 = inlined_call_operand.vmem [shape: f32[1,32], index: 10, kind: input, shape index: {}]
  %s11 = inlined_call_operand.vmem [shape: f32[512,32], index: 11, kind: output, shape index: {0}]
  %s12 = inlined_call_operand.vmem [shape: f32[512,32], index: 12, kind: output, shape index: {1}]
  %s13 = inlined_call_operand.vmem [shape: f32[512,32], index: 13, kind: output, shape index: {2}]
  %14 = xla_tuple %s11, %s12, %s13
  %s15 = sld [smem:[#allocation0]]
  $region93: #{tpu_custom_call.1} parent=0
    _
  %s17 = ssub.s32 1, %s15
  %s18 = scalar_select 0, %s17, %s15
  loop: start=0, step=1, limit=4
  $region2: #{tpu_custom_call.1} parent=0 // loop_pre_header
    _
  $region3: #{tpu_custom_call.1} parent=0 // loop_header
    %s20 = sphi 0, %s24
    %p21 = scmp.ge.s32.totalorder %s20, 4
    %s30 = sphi 0, %s32
    %s33 = sphi 0, %s30
    %s34 = sphi 0, %s33
    %s50 = sphi 0, %s34
    %s56 = sphi 0, %s58
    %s59 = sphi 0, %s56
    %s60 = sphi 0, %s59
    %s76 = sphi 0, %s60
    %s82 = sphi 0, %s84
    %s85 = sphi 0, %s82
    %s86 = sphi 0, %s85
    %s102 = sphi 0, %s86
    %s106 = sphi 0, %s106
    %s108 = sphi 0, %s106
    %s109 = sphi 0, %s108
    %s123 = sphi 0, %s109
    %s127 = sphi 0, %s127
    %s129 = sphi 0, %s127
    %s130 = sphi 0, %s129
    %s144 = sphi 0, %s130
    %s148 = sphi 0, %s148
    %s150 = sphi 0, %s148
    %s151 = sphi 0, %s150
    %s165 = sphi 0, %s151
    %s169 = sphi 0, %s169
    %s171 = sphi 0, %s169
    %s172 = sphi 0, %s171
    %s186 = sphi 0, %s172
    %s190 = sphi 0, %s190
    %s192 = sphi 0, %s190
    %s193 = sphi 0, %s192
    %s207 = sphi 0, %s193
    %s211 = sphi 0, %s211
    %s213 = sphi 0, %s211
    %s214 = sphi 0, %s213
    %s228 = sphi 0, %s214
    %s232 = sphi 0, %s232
    %s234 = sphi 0, %s232
    %s235 = sphi 0, %s234
    %s249 = sphi 0, %s235
    %s253 = sphi 0, %s253
    %s255 = sphi 0, %s253
    %s256 = sphi 0, %s255
    %s270 = sphi 0, %s256
    %s276 = sphi 0, %s278
    %s279 = sphi 0, %s276
    %s280 = sphi 0, %s279
    %s296 = sphi 0, %s280
    %s302 = sphi 0, %s304
    %s305 = sphi 0, %s302
    %s306 = sphi 0, %s305
    %s322 = sphi 0, %s306
    %s328 = sphi 0, %s330
    %s331 = sphi 0, %s328
    %s332 = sphi 0, %s331
    %s348 = sphi 0, %s332
  $region4: #{tpu_custom_call.1} parent=0 // loop_header_branch
    %23 = sbr.rel (%p21) target = $region8
  $region5: #{tpu_custom_call.1} parent=0 // loop_body
    %s25 = ssub.s32 %s20, 1
    %s26 = ssub.s32 %s20, 2
    %s27 = sadd.s32 %s20, 1
    %s28 = ssub.s32 %s20, %s27
    %p29 = scmp.eq.s32.totalorder %s28, 0
    %s31 = sadd.s32 %s30, 1
    %s32 = scalar_select %p29, %s30, %s31
    %p35 = pneg %p29
    %p36 = scmp.eq.s32.totalorder %s20, 1
    %p37 = por %p35, %p36
    %p38 = scmp.ne.s32.totalorder %s30, %s33
    %p39 = scmp.eq.s32.totalorder %s20, 0
    %p40 = por %p38, %p39
    %p41 = scmp.ne.s32.totalorder %s30, %s33
    %p42 = scmp.eq.s32.totalorder %s25, 1
    %p43 = por %p41, %p42
    %p44 = scmp.ne.s32.totalorder %s33, %s34
    %p45 = scmp.eq.s32.totalorder %s25, 0
    %p46 = por %p44, %p45
    %p47 = scmp.ne.s32.totalorder %s33, %s34
    %p48 = scmp.eq.s32.totalorder %s26, 1
    %p49 = por %p47, %p48
    %p51 = scmp.ne.s32.totalorder %s34, %s50
    %p52 = scmp.eq.s32.totalorder %s26, 0
    %p53 = por %p51, %p52
    %s54 = ssub.s32 %s20, %s27
    %p55 = scmp.eq.s32.totalorder %s54, 0
    %s57 = sadd.s32 %s56, 1
    %s58 = scalar_select %p55, %s56, %s57
    %p61 = pneg %p55
    %p62 = scmp.eq.s32.totalorder %s20, 1
    %p63 = por %p61, %p62
    %p64 = scmp.ne.s32.totalorder %s56, %s59
    %p65 = scmp.eq.s32.totalorder %s20, 0
    %p66 = por %p64, %p65
    %p67 = scmp.ne.s32.totalorder %s56, %s59
    %p68 = scmp.eq.s32.totalorder %s25, 1
    %p69 = por %p67, %p68
    %p70 = scmp.ne.s32.totalorder %s59, %s60
    %p71 = scmp.eq.s32.totalorder %s25, 0
    %p72 = por %p70, %p71
    %p73 = scmp.ne.s32.totalorder %s59, %s60
    %p74 = scmp.eq.s32.totalorder %s26, 1
    %p75 = por %p73, %p74
    %p77 = scmp.ne.s32.totalorder %s60, %s76
    %p78 = scmp.eq.s32.totalorder %s26, 0
    %p79 = por %p77, %p78
    %s80 = ssub.s32 %s20, %s27
    %p81 = scmp.eq.s32.totalorder %s80, 0
    %s83 = sadd.s32 %s82, 1
    %s84 = scalar_select %p81, %s82, %s83
    %p87 = pneg %p81
    %p88 = scmp.eq.s32.totalorder %s20, 1
    %p89 = por %p87, %p88
    %p90 = scmp.ne.s32.totalorder %s82, %s85
    %p91 = scmp.eq.s32.totalorder %s20, 0
    %p92 = por %p90, %p91
    %p93 = scmp.ne.s32.totalorder %s82, %s85
    %p94 = scmp.eq.s32.totalorder %s25, 1
    %p95 = por %p93, %p94
    %p96 = scmp.ne.s32.totalorder %s85, %s86
    %p97 = scmp.eq.s32.totalorder %s25, 0
    %p98 = por %p96, %p97
    %p99 = scmp.ne.s32.totalorder %s85, %s86
    %p100 = scmp.eq.s32.totalorder %s26, 1
    %p101 = por %p99, %p100
    %p103 = scmp.ne.s32.totalorder %s86, %s102
    %p104 = scmp.eq.s32.totalorder %s26, 0
    %p105 = por %p103, %p104
    %s107 = sadd.s32 %s106, 1
    %p110 = scmp.eq.s32.totalorder %s20, 1
    %p111 = scmp.ne.s32.totalorder %s106, %s108
    %p112 = scmp.eq.s32.totalorder %s20, 0
    %p113 = por %p111, %p112
    %p114 = scmp.ne.s32.totalorder %s106, %s108
    %p115 = scmp.eq.s32.totalorder %s25, 1
    %p116 = por %p114, %p115
    %p117 = scmp.ne.s32.totalorder %s108, %s109
    %p118 = scmp.eq.s32.totalorder %s25, 0
    %p119 = por %p117, %p118
    %p120 = scmp.ne.s32.totalorder %s108, %s109
    %p121 = scmp.eq.s32.totalorder %s26, 1
    %p122 = por %p120, %p121
    %p124 = scmp.ne.s32.totalorder %s109, %s123
    %p125 = scmp.eq.s32.totalorder %s26, 0
    %p126 = por %p124, %p125
    %s128 = sadd.s32 %s127, 1
    %p131 = scmp.eq.s32.totalorder %s20, 1
    %p132 = scmp.ne.s32.totalorder %s127, %s129
    %p133 = scmp.eq.s32.totalorder %s20, 0
    %p134 = por %p132, %p133
    %p135 = scmp.ne.s32.totalorder %s127, %s129
    %p136 = scmp.eq.s32.totalorder %s25, 1
    %p137 = por %p135, %p136
    %p138 = scmp.ne.s32.totalorder %s129, %s130
    %p139 = scmp.eq.s32.totalorder %s25, 0
    %p140 = por %p138, %p139
    %p141 = scmp.ne.s32.totalorder %s129, %s130
    %p142 = scmp.eq.s32.totalorder %s26, 1
    %p143 = por %p141, %p142
    %p145 = scmp.ne.s32.totalorder %s130, %s144
    %p146 = scmp.eq.s32.totalorder %s26, 0
    %p147 = por %p145, %p146
    %s149 = sadd.s32 %s148, 1
    %p152 = scmp.eq.s32.totalorder %s20, 1
    %p153 = scmp.ne.s32.totalorder %s148, %s150
    %p154 = scmp.eq.s32.totalorder %s20, 0
    %p155 = por %p153, %p154
    %p156 = scmp.ne.s32.totalorder %s148, %s150
    %p157 = scmp.eq.s32.totalorder %s25, 1
    %p158 = por %p156, %p157
    %p159 = scmp.ne.s32.totalorder %s150, %s151
    %p160 = scmp.eq.s32.totalorder %s25, 0
    %p161 = por %p159, %p160
    %p162 = scmp.ne.s32.totalorder %s150, %s151
    %p163 = scmp.eq.s32.totalorder %s26, 1
    %p164 = por %p162, %p163
    %p166 = scmp.ne.s32.totalorder %s151, %s165
    %p167 = scmp.eq.s32.totalorder %s26, 0
    %p168 = por %p166, %p167
    %s170 = sadd.s32 %s169, 1
    %p173 = scmp.eq.s32.totalorder %s20, 1
    %p174 = scmp.ne.s32.totalorder %s169, %s171
    %p175 = scmp.eq.s32.totalorder %s20, 0
    %p176 = por %p174, %p175
    %p177 = scmp.ne.s32.totalorder %s169, %s171
    %p178 = scmp.eq.s32.totalorder %s25, 1
    %p179 = por %p177, %p178
    %p180 = scmp.ne.s32.totalorder %s171, %s172
    %p181 = scmp.eq.s32.totalorder %s25, 0
    %p182 = por %p180, %p181
    %p183 = scmp.ne.s32.totalorder %s171, %s172
    %p184 = scmp.eq.s32.totalorder %s26, 1
    %p185 = por %p183, %p184
    %p187 = scmp.ne.s32.totalorder %s172, %s186
    %p188 = scmp.eq.s32.totalorder %s26, 0
    %p189 = por %p187, %p188
    %s191 = sadd.s32 %s190, 1
    %p194 = scmp.eq.s32.totalorder %s20, 1
    %p195 = scmp.ne.s32.totalorder %s190, %s192
    %p196 = scmp.eq.s32.totalorder %s20, 0
    %p197 = por %p195, %p196
    %p198 = scmp.ne.s32.totalorder %s190, %s192
    %p199 = scmp.eq.s32.totalorder %s25, 1
    %p200 = por %p198, %p199
    %p201 = scmp.ne.s32.totalorder %s192, %s193
    %p202 = scmp.eq.s32.totalorder %s25, 0
    %p203 = por %p201, %p202
    %p204 = scmp.ne.s32.totalorder %s192, %s193
    %p205 = scmp.eq.s32.totalorder %s26, 1
    %p206 = por %p204, %p205
    %p208 = scmp.ne.s32.totalorder %s193, %s207
    %p209 = scmp.eq.s32.totalorder %s26, 0
    %p210 = por %p208, %p209
    %s212 = sadd.s32 %s211, 1
    %p215 = scmp.eq.s32.totalorder %s20, 1
    %p216 = scmp.ne.s32.totalorder %s211, %s213
    %p217 = scmp.eq.s32.totalorder %s20, 0
    %p218 = por %p216, %p217
    %p219 = scmp.ne.s32.totalorder %s211, %s213
    %p220 = scmp.eq.s32.totalorder %s25, 1
    %p221 = por %p219, %p220
    %p222 = scmp.ne.s32.totalorder %s213, %s214
    %p223 = scmp.eq.s32.totalorder %s25, 0
    %p224 = por %p222, %p223
    %p225 = scmp.ne.s32.totalorder %s213, %s214
    %p226 = scmp.eq.s32.totalorder %s26, 1
    %p227 = por %p225, %p226
    %p229 = scmp.ne.s32.totalorder %s214, %s228
    %p230 = scmp.eq.s32.totalorder %s26, 0
    %p231 = por %p229, %p230
    %s233 = sadd.s32 %s232, 1
    %p236 = scmp.eq.s32.totalorder %s20, 1
    %p237 = scmp.ne.s32.totalorder %s232, %s234
    %p238 = scmp.eq.s32.totalorder %s20, 0
    %p239 = por %p237, %p238
    %p240 = scmp.ne.s32.totalorder %s232, %s234
    %p241 = scmp.eq.s32.totalorder %s25, 1
    %p242 = por %p240, %p241
    %p243 = scmp.ne.s32.totalorder %s234, %s235
    %p244 = scmp.eq.s32.totalorder %s25, 0
    %p245 = por %p243, %p244
    %p246 = scmp.ne.s32.totalorder %s234, %s235
    %p247 = scmp.eq.s32.totalorder %s26, 1
    %p248 = por %p246, %p247
    %p250 = scmp.ne.s32.totalorder %s235, %s249
    %p251 = scmp.eq.s32.totalorder %s26, 0
    %p252 = por %p250, %p251
    %s254 = sadd.s32 %s253, 1
    %p257 = scmp.eq.s32.totalorder %s20, 1
    %p258 = scmp.ne.s32.totalorder %s253, %s255
    %p259 = scmp.eq.s32.totalorder %s20, 0
    %p260 = por %p258, %p259
    %p261 = scmp.ne.s32.totalorder %s253, %s255
    %p262 = scmp.eq.s32.totalorder %s25, 1
    %p263 = por %p261, %p262
    %p264 = scmp.ne.s32.totalorder %s255, %s256
    %p265 = scmp.eq.s32.totalorder %s25, 0
    %p266 = por %p264, %p265
    %p267 = scmp.ne.s32.totalorder %s255, %s256
    %p268 = scmp.eq.s32.totalorder %s26, 1
    %p269 = por %p267, %p268
    %p271 = scmp.ne.s32.totalorder %s256, %s270
    %p272 = scmp.eq.s32.totalorder %s26, 0
    %p273 = por %p271, %p272
    %s274 = ssub.s32 %s20, %s27
    %p275 = scmp.eq.s32.totalorder %s274, 0
    %s277 = sadd.s32 %s276, 1
    %s278 = scalar_select %p275, %s276, %s277
    %p281 = pneg %p275
    %p282 = scmp.eq.s32.totalorder %s20, 1
    %p283 = por %p281, %p282
    %p284 = scmp.ne.s32.totalorder %s276, %s279
    %p285 = scmp.eq.s32.totalorder %s20, 0
    %p286 = por %p284, %p285
    %p287 = scmp.ne.s32.totalorder %s276, %s279
    %p288 = scmp.eq.s32.totalorder %s25, 1
    %p289 = por %p287, %p288
    %p290 = scmp.ne.s32.totalorder %s279, %s280
    %p291 = scmp.eq.s32.totalorder %s25, 0
    %p292 = por %p290, %p291
    %p293 = scmp.ne.s32.totalorder %s279, %s280
    %p294 = scmp.eq.s32.totalorder %s26, 1
    %p295 = por %p293, %p294
    %p297 = scmp.ne.s32.totalorder %s280, %s296
    %p298 = scmp.eq.s32.totalorder %s26, 0
    %p299 = por %p297, %p298
    %s300 = ssub.s32 %s20, %s27
    %p301 = scmp.eq.s32.totalorder %s300, 0
    %s303 = sadd.s32 %s302, 1
    %s304 = scalar_select %p301, %s302, %s303
    %p307 = pneg %p301
    %p308 = scmp.eq.s32.totalorder %s20, 1
    %p309 = por %p307, %p308
    %p310 = scmp.ne.s32.totalorder %s302, %s305
    %p311 = scmp.eq.s32.totalorder %s20, 0
    %p312 = por %p310, %p311
    %p313 = scmp.ne.s32.totalorder %s302, %s305
    %p314 = scmp.eq.s32.totalorder %s25, 1
    %p315 = por %p313, %p314
    %p316 = scmp.ne.s32.totalorder %s305, %s306
    %p317 = scmp.eq.s32.totalorder %s25, 0
    %p318 = por %p316, %p317
    %p319 = scmp.ne.s32.totalorder %s305, %s306
    %p320 = scmp.eq.s32.totalorder %s26, 1
    %p321 = por %p319, %p320
    %p323 = scmp.ne.s32.totalorder %s306, %s322
    %p324 = scmp.eq.s32.totalorder %s26, 0
    %p325 = por %p323, %p324
    %s326 = ssub.s32 %s20, %s27
    %p327 = scmp.eq.s32.totalorder %s326, 0
    %s329 = sadd.s32 %s328, 1
    %s330 = scalar_select %p327, %s328, %s329
    %p333 = pneg %p327
    %p334 = scmp.eq.s32.totalorder %s20, 1
    %p335 = por %p333, %p334
    %p336 = scmp.ne.s32.totalorder %s328, %s331
    %p337 = scmp.eq.s32.totalorder %s20, 0
    %p338 = por %p336, %p337
    %p339 = scmp.ne.s32.totalorder %s328, %s331
    %p340 = scmp.eq.s32.totalorder %s25, 1
    %p341 = por %p339, %p340
    %p342 = scmp.ne.s32.totalorder %s331, %s332
    %p343 = scmp.eq.s32.totalorder %s25, 0
    %p344 = por %p342, %p343
    %p345 = scmp.ne.s32.totalorder %s331, %s332
    %p346 = scmp.eq.s32.totalorder %s26, 1
    %p347 = por %p345, %p346
    %p349 = scmp.ne.s32.totalorder %s332, %s348
    %p350 = scmp.eq.s32.totalorder %s26, 0
    %p351 = por %p349, %p350
    %p352 = scmp.le.s32.totalorder 1, %s20
    %p353 = scmp.lt.s32.totalorder %s20, 3
    %p354 = pnand %p352, %p353
    %p355 = pneg %p354
    // Predicated region
    $region9: #{tpu_custom_call.1} parent=5 // pred_check
      _
    $region10: #{tpu_custom_call.1} parent=5 // pred_check_branch
      %357 = sbr.rel (%p354) target = $region12
    $region11: #{tpu_custom_call.1} parent=5 // pred_region
      %s358 = ssub.s32 %s20, 1
      // Predicated region
      $region13: #{tpu_custom_call.1} parent=11 // pred_check
        %p359 = pneg %p119
      $region14: #{tpu_custom_call.1} parent=11 // pred_check_branch
        %361 = sbr.rel (%p359) target = $region16
      $region15: #{tpu_custom_call.1} parent=11 // pred_region
        _
      $region16: #{tpu_custom_call.1} parent=11 // pred_fallthru
        _
      // Predicated region
      $region17: #{tpu_custom_call.1} parent=11 // pred_check
        %p362 = pneg %p140
      $region18: #{tpu_custom_call.1} parent=11 // pred_check_branch
        %364 = sbr.rel (%p362) target = $region20
      $region19: #{tpu_custom_call.1} parent=11 // pred_region
        _
      $region20: #{tpu_custom_call.1} parent=11 // pred_fallthru
        _
      // Predicated region
      $region21: #{tpu_custom_call.1} parent=11 // pred_check
        %p365 = pneg %p161
      $region22: #{tpu_custom_call.1} parent=11 // pred_check_branch
        %367 = sbr.rel (%p365) target = $region24
      $region23: #{tpu_custom_call.1} parent=11 // pred_region
        _
      $region24: #{tpu_custom_call.1} parent=11 // pred_fallthru
        _
      // Predicated region
      $region25: #{tpu_custom_call.1} parent=11 // pred_check
        %p368 = pneg %p182
      $region26: #{tpu_custom_call.1} parent=11 // pred_check_branch
        %370 = sbr.rel (%p368) target = $region28
      $region27: #{tpu_custom_call.1} parent=11 // pred_region
        _
      $region28: #{tpu_custom_call.1} parent=11 // pred_fallthru
        _
      // Predicated region
      $region29: #{tpu_custom_call.1} parent=11 // pred_check
        %p371 = pneg %p203
      $region30: #{tpu_custom_call.1} parent=11 // pred_check_branch
        %373 = sbr.rel (%p371) target = $region32
      $region31: #{tpu_custom_call.1} parent=11 // pred_region
        _
      $region32: #{tpu_custom_call.1} parent=11 // pred_fallthru
        _
      // Predicated region
      $region33: #{tpu_custom_call.1} parent=11 // pred_check
        %p374 = pneg %p224
      $region34: #{tpu_custom_call.1} parent=11 // pred_check_branch
        %376 = sbr.rel (%p374) target = $region36
      $region35: #{tpu_custom_call.1} parent=11 // pred_region
        _
      $region36: #{tpu_custom_call.1} parent=11 // pred_fallthru
        _
      // Predicated region
      $region37: #{tpu_custom_call.1} parent=11 // pred_check
        %p377 = pneg %p245
      $region38: #{tpu_custom_call.1} parent=11 // pred_check_branch
        %379 = sbr.rel (%p377) target = $region40
      $region39: #{tpu_custom_call.1} parent=11 // pred_region
        _
      $region40: #{tpu_custom_call.1} parent=11 // pred_fallthru
        _
      // Predicated region
      $region41: #{tpu_custom_call.1} parent=11 // pred_check
        %p380 = pneg %p266
      $region42: #{tpu_custom_call.1} parent=11 // pred_check_branch
        %382 = sbr.rel (%p380) target = $region44
      $region43: #{tpu_custom_call.1} parent=11 // pred_region
        _
      $region44: #{tpu_custom_call.1} parent=11 // pred_fallthru
        _
    $region12: #{tpu_custom_call.1} parent=5 // pred_fallthru
      _
    %p383 = scmp.lt.s32.totalorder %s20, 2
    // Predicated region
    $region45: #{tpu_custom_call.1} parent=5 // pred_check
      %p384 = pneg %p383
    $region46: #{tpu_custom_call.1} parent=5 // pred_check_branch
      %386 = sbr.rel (%p384) target = $region48
    $region47: #{tpu_custom_call.1} parent=5 // pred_region
      // Predicated region
      $region49: #{tpu_custom_call.1} parent=47 // pred_check
        %p387 = pneg %p40
      $region50: #{tpu_custom_call.1} parent=47 // pred_check_branch
        %389 = sbr.rel (%p387) target = $region52
      $region51: #{tpu_custom_call.1} parent=47 // pred_region
        %s390 = smul.u32 32, %s20
        %p391 = scmp.lt.s32.totalorder %s390, 63
        %s392 = scalar_select %p391, %s390, 63
        %s393 = smul.addr %s392, 8
        %s394 = scalar_lea.vmem %s0, %s393
        %s395 = smul.u32 32, %s20
      $region52: #{tpu_custom_call.1} parent=47 // pred_fallthru
        _
      // Predicated region
      $region53: #{tpu_custom_call.1} parent=47 // pred_check
        %p396 = pneg %p66
      $region54: #{tpu_custom_call.1} parent=47 // pred_check_branch
        %398 = sbr.rel (%p396) target = $region56
      $region55: #{tpu_custom_call.1} parent=47 // pred_region
        %s399 = smul.u32 32, %s20
        %p400 = scmp.lt.s32.totalorder %s399, 63
        %s401 = scalar_select %p400, %s399, 63
        %s402 = smul.addr %s401, 8
        %s403 = scalar_lea.vmem %s1, %s402
        %s404 = smul.u32 32, %s20
      $region56: #{tpu_custom_call.1} parent=47 // pred_fallthru
        _
      // Predicated region
      $region57: #{tpu_custom_call.1} parent=47 // pred_check
        %p405 = pneg %p92
      $region58: #{tpu_custom_call.1} parent=47 // pred_check_branch
        %407 = sbr.rel (%p405) target = $region60
      $region59: #{tpu_custom_call.1} parent=47 // pred_region
        %s408 = smul.u32 32, %s20
        %p409 = scmp.lt.s32.totalorder %s408, 63
        %s410 = scalar_select %p409, %s408, 63
        %s411 = smul.addr %s410, 8
        %s412 = scalar_lea.vmem %s2, %s411
        %s413 = smul.u32 32, %s20
      $region60: #{tpu_custom_call.1} parent=47 // pred_fallthru
        _
    $region48: #{tpu_custom_call.1} parent=5 // pred_fallthru
      _
    %p414 = scmp.le.s32.totalorder 1, %s20
    %p415 = scmp.lt.s32.totalorder %s20, 3
    %p416 = pnand %p414, %p415
    %p417 = pneg %p416
    // Predicated region
    $region61: #{tpu_custom_call.1} parent=5 // pred_check
      _
    $region62: #{tpu_custom_call.1} parent=5 // pred_check_branch
      %419 = sbr.rel (%p416) target = $region64
    $region63: #{tpu_custom_call.1} parent=5 // pred_region
      %s420 = ssub.s32 %s20, 1
      %s421 = smul.u32 32, %s25
      %p422 = scmp.lt.s32.totalorder %s421, 63
      %s423 = scalar_select %p422, %s421, 63
      %s424 = smul.addr %s423, 8
      %s425 = scalar_lea.vmem %s0, %s424
      %p426 = pneg %p46
      %p427 = pneg %p43
      %s428 = smul.u32 32, %s25
      %p429 = scmp.lt.s32.totalorder %s428, 63
      %s430 = scalar_select %p429, %s428, 63
      %s431 = smul.addr %s430, 8
      %s432 = scalar_lea.vmem %s1, %s431
      %p433 = pneg %p72
      %p434 = pneg %p69
      %s435 = smul.u32 32, %s25
      %p436 = scmp.lt.s32.totalorder %s435, 63
      %s437 = scalar_select %p436, %s435, 63
      %s438 = smul.addr %s437, 8
      %s439 = scalar_lea.vmem %s2, %s438
      %p440 = pneg %p98
      %p441 = pneg %p95
      %p442 = pneg %p119
      %p443 = pneg %p116
      %p444 = pneg %p140
      %p445 = pneg %p137
      %p446 = pneg %p161
      %p447 = pneg %p158
      %p448 = pneg %p182
      %p449 = pneg %p179
      %p450 = pneg %p203
      %p451 = pneg %p200
      %p452 = pneg %p224
      %p453 = pneg %p221
      %p454 = pneg %p245
      %p455 = pneg %p242
      %p456 = pneg %p266
      %p457 = pneg %p263
      %p458 = pneg %p292
      %p459 = pneg %p289
      %s460 = smul.u32 32, %s25
      %p461 = scmp.lt.s32.totalorder %s460, 63
      %s462 = scalar_select %p461, %s460, 63
      %s463 = smul.addr %s462, 8
      %s464 = scalar_lea.vmem %s11, %s463
      %p465 = pneg %p318
      %p466 = pneg %p315
      %s467 = smul.u32 32, %s25
      %p468 = scmp.lt.s32.totalorder %s467, 63
      %s469 = scalar_select %p468, %s467, 63
      %s470 = smul.addr %s469, 8
      %s471 = scalar_lea.vmem %s12, %s470
      %p472 = pneg %p344
      %p473 = pneg %p341
      %s474 = smul.u32 32, %s25
      %p475 = scmp.lt.s32.totalorder %s474, 63
      %s476 = scalar_select %p475, %s474, 63
      %s477 = smul.addr %s476, 8
      %s478 = scalar_lea.vmem %s13, %s477
      %s479 = smul.u32 32, %s25
      %p480 = scmp.lt.s32.totalorder %s479, 63
      %s481 = scalar_select %p480, %s479, 63
      %s482 = smul.addr %s481, 8
      %s483 = scalar_lea.vmem %s0, %s482
      %s484 = smul.u32 32, %s25
      %s485 = smul.u32 32, %s25
      %p486 = scmp.lt.s32.totalorder %s485, 63
      %s487 = scalar_select %p486, %s485, 63
      %s488 = smul.addr %s487, 8
      %s489 = scalar_lea.vmem %s1, %s488
      %s490 = smul.u32 32, %s25
      %s491 = smul.u32 32, %s25
      %p492 = scmp.lt.s32.totalorder %s491, 63
      %s493 = scalar_select %p492, %s491, 63
      %s494 = smul.addr %s493, 8
      %s495 = scalar_lea.vmem %s2, %s494
      %s496 = smul.u32 32, %s25
      %s497 = smul.u32 32, %s25
      %p498 = scmp.lt.s32.totalorder %s497, 63
      %s499 = scalar_select %p498, %s497, 63
      %s500 = smul.addr %s499, 8
      %s501 = scalar_lea.vmem %s11, %s500
      %s502 = smul.u32 32, %s25
      %s503 = smul.u32 32, %s25
      %p504 = scmp.lt.s32.totalorder %s503, 63
      %s505 = scalar_select %p504, %s503, 63
      %s506 = smul.addr %s505, 8
      %s507 = scalar_lea.vmem %s12, %s506
      %s508 = smul.u32 32, %s25
      %s509 = smul.u32 32, %s25
      %p510 = scmp.lt.s32.totalorder %s509, 63
      %s511 = scalar_select %p510, %s509, 63
      %s512 = smul.addr %s511, 8
      %s513 = scalar_lea.vmem %s13, %s512
      %s514 = smul.u32 32, %s25
      %v515 = vld [vmem:[%s3] sm:$0x1]
      %v516 = vld [vmem:[%s4] sm:$0x1]
      %v517 = vld [vmem:[%s483] sm:$0xff]
      %v518 = vld [vmem:[%s483 + $0x8] sm:$0xff]
      %v519 = vld [vmem:[%s483 + $0x10] sm:$0xff]
      %v520 = vld [vmem:[%s483 + $0x18] sm:$0xff]
      %v521 = vld [vmem:[%s483 + $0x20] sm:$0xff]
      %v522 = vld [vmem:[%s483 + $0x28] sm:$0xff]
      %v523 = vld [vmem:[%s483 + $0x30] sm:$0xff]
      %v524 = vld [vmem:[%s483 + $0x38] sm:$0xff]
      %v525 = vld [vmem:[%s483 + $0x40] sm:$0xff]
      %v526 = vld [vmem:[%s483 + $0x48] sm:$0xff]
      %v527 = vld [vmem:[%s483 + $0x50] sm:$0xff]
      %v528 = vld [vmem:[%s483 + $0x58] sm:$0xff]
      %v529 = vld [vmem:[%s483 + $0x60] sm:$0xff]
      %v530 = vld [vmem:[%s483 + $0x68] sm:$0xff]
      %v531 = vld [vmem:[%s483 + $0x70] sm:$0xff]
      %v532 = vld [vmem:[%s483 + $0x78] sm:$0xff]
      %v533 = vld [vmem:[%s483 + $0x80] sm:$0xff]
      %v534 = vld [vmem:[%s483 + $0x88] sm:$0xff]
      %v535 = vld [vmem:[%s483 + $0x90] sm:$0xff]
      %v536 = vld [vmem:[%s483 + $0x98] sm:$0xff]
      %v537 = vld [vmem:[%s483 + $0xa0] sm:$0xff]
      %v538 = vld [vmem:[%s483 + $0xa8] sm:$0xff]
      %v539 = vld [vmem:[%s483 + $0xb0] sm:$0xff]
      %v540 = vld [vmem:[%s483 + $0xb8] sm:$0xff]
      %v541 = vld [vmem:[%s483 + $0xc0] sm:$0xff]
      %v542 = vld [vmem:[%s483 + $0xc8] sm:$0xff]
      %v543 = vld [vmem:[%s483 + $0xd0] sm:$0xff]
      %v544 = vld [vmem:[%s483 + $0xd8] sm:$0xff]
      %v545 = vld [vmem:[%s483 + $0xe0] sm:$0xff]
      %v546 = vld [vmem:[%s483 + $0xe8] sm:$0xff]
      %v547 = vld [vmem:[%s483 + $0xf0] sm:$0xff]
      %v548 = vld [vmem:[%s483 + $0xf8] sm:$0xff]
      %vm549 = vcmask 261120
      %v550 = vsel %vm549, %v517, 0.0
      %551 = vadd.xlane.f32.xlu0 %v550
      %v552 = vpop.xlane.xlu0 %551
      %v553 = vsel %vm549, %v518, 0.0
      %554 = vadd.xlane.f32.xlu0 %v553
      %v555 = vpop.xlane.xlu0 %554
      %v556 = vsel %vm549, %v519, 0.0
      %557 = vadd.xlane.f32.xlu0 %v556
      %v558 = vpop.xlane.xlu0 %557
      %v559 = vsel %vm549, %v520, 0.0
      %560 = vadd.xlane.f32.xlu0 %v559
      %v561 = vpop.xlane.xlu0 %560
      %v562 = vsel %vm549, %v521, 0.0
      %563 = vadd.xlane.f32.xlu0 %v562
      %v564 = vpop.xlane.xlu0 %563
      %v565 = vsel %vm549, %v522, 0.0
      %566 = vadd.xlane.f32.xlu0 %v565
      %v567 = vpop.xlane.xlu0 %566
      %v568 = vsel %vm549, %v523, 0.0
      %569 = vadd.xlane.f32.xlu0 %v568
      %v570 = vpop.xlane.xlu0 %569
      %v571 = vsel %vm549, %v524, 0.0
      %572 = vadd.xlane.f32.xlu0 %v571
      %v573 = vpop.xlane.xlu0 %572
      %v574 = vsel %vm549, %v525, 0.0
      %575 = vadd.xlane.f32.xlu0 %v574
      %v576 = vpop.xlane.xlu0 %575
      %v577 = vsel %vm549, %v526, 0.0
      %578 = vadd.xlane.f32.xlu0 %v577
      %v579 = vpop.xlane.xlu0 %578
      %v580 = vsel %vm549, %v527, 0.0
      %581 = vadd.xlane.f32.xlu0 %v580
      %v582 = vpop.xlane.xlu0 %581
      %v583 = vsel %vm549, %v528, 0.0
      %584 = vadd.xlane.f32.xlu0 %v583
      %v585 = vpop.xlane.xlu0 %584
      %v586 = vsel %vm549, %v529, 0.0
      %587 = vadd.xlane.f32.xlu0 %v586
      %v588 = vpop.xlane.xlu0 %587
      %v589 = vsel %vm549, %v530, 0.0
      %590 = vadd.xlane.f32.xlu0 %v589
      %v591 = vpop.xlane.xlu0 %590
      %v592 = vsel %vm549, %v531, 0.0
      %593 = vadd.xlane.f32.xlu0 %v592
      %v594 = vpop.xlane.xlu0 %593
      %v595 = vsel %vm549, %v532, 0.0
      %596 = vadd.xlane.f32.xlu0 %v595
      %v597 = vpop.xlane.xlu0 %596
      %v598 = vsel %vm549, %v533, 0.0
      %599 = vadd.xlane.f32.xlu0 %v598
      %v600 = vpop.xlane.xlu0 %599
      %v601 = vsel %vm549, %v534, 0.0
      %602 = vadd.xlane.f32.xlu0 %v601
      %v603 = vpop.xlane.xlu0 %602
      %v604 = vsel %vm549, %v535, 0.0
      %605 = vadd.xlane.f32.xlu0 %v604
      %v606 = vpop.xlane.xlu0 %605
      %v607 = vsel %vm549, %v536, 0.0
      %608 = vadd.xlane.f32.xlu0 %v607
      %v609 = vpop.xlane.xlu0 %608
      %v610 = vsel %vm549, %v537, 0.0
      %611 = vadd.xlane.f32.xlu0 %v610
      %v612 = vpop.xlane.xlu0 %611
      %v613 = vsel %vm549, %v538, 0.0
      %614 = vadd.xlane.f32.xlu0 %v613
      %v615 = vpop.xlane.xlu0 %614
      %v616 = vsel %vm549, %v539, 0.0
      %617 = vadd.xlane.f32.xlu0 %v616
      %v618 = vpop.xlane.xlu0 %617
      %v619 = vsel %vm549, %v540, 0.0
      %620 = vadd.xlane.f32.xlu0 %v619
      %v621 = vpop.xlane.xlu0 %620
      %v622 = vsel %vm549, %v541, 0.0
      %623 = vadd.xlane.f32.xlu0 %v622
      %v624 = vpop.xlane.xlu0 %623
      %v625 = vsel %vm549, %v542, 0.0
      %626 = vadd.xlane.f32.xlu0 %v625
      %v627 = vpop.xlane.xlu0 %626
      %v628 = vsel %vm549, %v543, 0.0
      %629 = vadd.xlane.f32.xlu0 %v628
      %v630 = vpop.xlane.xlu0 %629
      %v631 = vsel %vm549, %v544, 0.0
      %632 = vadd.xlane.f32.xlu0 %v631
      %v633 = vpop.xlane.xlu0 %632
      %v634 = vsel %vm549, %v545, 0.0
      %635 = vadd.xlane.f32.xlu0 %v634
      %v636 = vpop.xlane.xlu0 %635
      %v637 = vsel %vm549, %v546, 0.0
      %638 = vadd.xlane.f32.xlu0 %v637
      %v639 = vpop.xlane.xlu0 %638
      %v640 = vsel %vm549, %v547, 0.0
      %641 = vadd.xlane.f32.xlu0 %v640
      %v642 = vpop.xlane.xlu0 %641
      %v643 = vsel %vm549, %v548, 0.0
      %644 = vadd.xlane.f32.xlu0 %v643
      %v645 = vpop.xlane.xlu0 %644
      %v646 = vrcp.pop 32.0
      %v647 = vmul.f32 32.0, %v646
      %v648 = vsub.f32 1.0, %v647
      %v649 = vmul.f32 %v646, %v648
      %v650 = vadd.f32 %v646, %v649
      %vm651 = vweird.f32 %v646
      %v652 = vsel %vm651, %v646, %v650
      %v653 = vmul.f32 %v552, %v652
      %v654 = vmul.f32 %v555, %v652
      %v655 = vmul.f32 %v558, %v652
      %v656 = vmul.f32 %v561, %v652
      %v657 = vmul.f32 %v564, %v652
      %v658 = vmul.f32 %v567, %v652
      %v659 = vmul.f32 %v570, %v652
      %v660 = vmul.f32 %v573, %v652
      %v661 = vmul.f32 %v576, %v652
      %v662 = vmul.f32 %v579, %v652
      %v663 = vmul.f32 %v582, %v652
      %v664 = vmul.f32 %v585, %v652
      %v665 = vmul.f32 %v588, %v652
      %v666 = vmul.f32 %v591, %v652
      %v667 = vmul.f32 %v594, %v652
      %v668 = vmul.f32 %v597, %v652
      %v669 = vmul.f32 %v600, %v652
      %v670 = vmul.f32 %v603, %v652
      %v671 = vmul.f32 %v606, %v652
      %v672 = vmul.f32 %v609, %v652
      %v673 = vmul.f32 %v612, %v652
      %v674 = vmul.f32 %v615, %v652
      %v675 = vmul.f32 %v618, %v652
      %v676 = vmul.f32 %v621, %v652
      %v677 = vmul.f32 %v624, %v652
      %v678 = vmul.f32 %v627, %v652
      %v679 = vmul.f32 %v630, %v652
      %v680 = vmul.f32 %v633, %v652
      %v681 = vmul.f32 %v636, %v652
      %v682 = vmul.f32 %v639, %v652
      %v683 = vmul.f32 %v642, %v652
      %v684 = vmul.f32 %v645, %v652
      %v685 = vsub.f32 %v517, %v653
      %v686 = vsub.f32 %v518, %v654
      %v687 = vsub.f32 %v519, %v655
      %v688 = vsub.f32 %v520, %v656
      %v689 = vsub.f32 %v521, %v657
      %v690 = vsub.f32 %v522, %v658
      %v691 = vsub.f32 %v523, %v659
      %v692 = vsub.f32 %v524, %v660
      %v693 = vsub.f32 %v525, %v661
      %v694 = vsub.f32 %v526, %v662
      %v695 = vsub.f32 %v527, %v663
      %v696 = vsub.f32 %v528, %v664
      %v697 = vsub.f32 %v529, %v665
      %v698 = vsub.f32 %v530, %v666
      %v699 = vsub.f32 %v531, %v667
      %v700 = vsub.f32 %v532, %v668
      %v701 = vsub.f32 %v533, %v669
      %v702 = vsub.f32 %v534, %v670
      %v703 = vsub.f32 %v535, %v671
      %v704 = vsub.f32 %v536, %v672
      %v705 = vsub.f32 %v537, %v673
      %v706 = vsub.f32 %v538, %v674
      %v707 = vsub.f32 %v539, %v675
      %v708 = vsub.f32 %v540, %v676
      %v709 = vsub.f32 %v541, %v677
      %v710 = vsub.f32 %v542, %v678
      %v711 = vsub.f32 %v543, %v679
      %v712 = vsub.f32 %v544, %v680
      %v713 = vsub.f32 %v545, %v681
      %v714 = vsub.f32 %v546, %v682
      %v715 = vsub.f32 %v547, %v683
      %v716 = vsub.f32 %v548, %v684
      %v717 = vmul.f32 %v685, %v685
      %v718 = vmul.f32 %v686, %v686
      %v719 = vmul.f32 %v687, %v687
      %v720 = vmul.f32 %v688, %v688
      %v721 = vmul.f32 %v689, %v689
      %v722 = vmul.f32 %v690, %v690
      %v723 = vmul.f32 %v691, %v691
      %v724 = vmul.f32 %v692, %v692
      %v725 = vmul.f32 %v693, %v693
      %v726 = vmul.f32 %v694, %v694
      %v727 = vmul.f32 %v695, %v695
      %v728 = vmul.f32 %v696, %v696
      %v729 = vmul.f32 %v697, %v697
      %v730 = vmul.f32 %v698, %v698
      %v731 = vmul.f32 %v699, %v699
      %v732 = vmul.f32 %v700, %v700
      %v733 = vmul.f32 %v701, %v701
      %v734 = vmul.f32 %v702, %v702
      %v735 = vmul.f32 %v703, %v703
      %v736 = vmul.f32 %v704, %v704
      %v737 = vmul.f32 %v705, %v705
      %v738 = vmul.f32 %v706, %v706
      %v739 = vmul.f32 %v707, %v707
      %v740 = vmul.f32 %v708, %v708
      %v741 = vmul.f32 %v709, %v709
      %v742 = vmul.f32 %v710, %v710
      %v743 = vmul.f32 %v711, %v711
      %v744 = vmul.f32 %v712, %v712
      %v745 = vmul.f32 %v713, %v713
      %v746 = vmul.f32 %v714, %v714
      %v747 = vmul.f32 %v715, %v715
      %v748 = vmul.f32 %v716, %v716
      %v749 = vsel %vm549, %v717, 0.0
      %750 = vadd.xlane.f32.xlu0 %v749
      %v751 = vpop.xlane.xlu0 %750
      %v752 = vsel %vm549, %v718, 0.0
      %753 = vadd.xlane.f32.xlu0 %v752
      %v754 = vpop.xlane.xlu0 %753
      %v755 = vsel %vm549, %v719, 0.0
      %756 = vadd.xlane.f32.xlu0 %v755
      %v757 = vpop.xlane.xlu0 %756
      %v758 = vsel %vm549, %v720, 0.0
      %759 = vadd.xlane.f32.xlu0 %v758
      %v760 = vpop.xlane.xlu0 %759
      %v761 = vsel %vm549, %v721, 0.0
      %762 = vadd.xlane.f32.xlu0 %v761
      %v763 = vpop.xlane.xlu0 %762
      %v764 = vsel %vm549, %v722, 0.0
      %765 = vadd.xlane.f32.xlu0 %v764
      %v766 = vpop.xlane.xlu0 %765
      %v767 = vsel %vm549, %v723, 0.0
      %768 = vadd.xlane.f32.xlu0 %v767
      %v769 = vpop.xlane.xlu0 %768
      %v770 = vsel %vm549, %v724, 0.0
      %771 = vadd.xlane.f32.xlu0 %v770
      %v772 = vpop.xlane.xlu0 %771
      %v773 = vsel %vm549, %v725, 0.0
      %774 = vadd.xlane.f32.xlu0 %v773
      %v775 = vpop.xlane.xlu0 %774
      %v776 = vsel %vm549, %v726, 0.0
      %777 = vadd.xlane.f32.xlu0 %v776
      %v778 = vpop.xlane.xlu0 %777
      %v779 = vsel %vm549, %v727, 0.0
      %780 = vadd.xlane.f32.xlu0 %v779
      %v781 = vpop.xlane.xlu0 %780
      %v782 = vsel %vm549, %v728, 0.0
      %783 = vadd.xlane.f32.xlu0 %v782
      %v784 = vpop.xlane.xlu0 %783
      %v785 = vsel %vm549, %v729, 0.0
      %786 = vadd.xlane.f32.xlu0 %v785
      %v787 = vpop.xlane.xlu0 %786
      %v788 = vsel %vm549, %v730, 0.0
      %789 = vadd.xlane.f32.xlu0 %v788
      %v790 = vpop.xlane.xlu0 %789
      %v791 = vsel %vm549, %v731, 0.0
      %792 = vadd.xlane.f32.xlu0 %v791
      %v793 = vpop.xlane.xlu0 %792
      %v794 = vsel %vm549, %v732, 0.0
      %795 = vadd.xlane.f32.xlu0 %v794
      %v796 = vpop.xlane.xlu0 %795
      %v797 = vsel %vm549, %v733, 0.0
      %798 = vadd.xlane.f32.xlu0 %v797
      %v799 = vpop.xlane.xlu0 %798
      %v800 = vsel %vm549, %v734, 0.0
      %801 = vadd.xlane.f32.xlu0 %v800
      %v802 = vpop.xlane.xlu0 %801
      %v803 = vsel %vm549, %v735, 0.0
      %804 = vadd.xlane.f32.xlu0 %v803
      %v805 = vpop.xlane.xlu0 %804
      %v806 = vsel %vm549, %v736, 0.0
      %807 = vadd.xlane.f32.xlu0 %v806
      %v808 = vpop.xlane.xlu0 %807
      %v809 = vsel %vm549, %v737, 0.0
      %810 = vadd.xlane.f32.xlu0 %v809
      %v811 = vpop.xlane.xlu0 %810
      %v812 = vsel %vm549, %v738, 0.0
      %813 = vadd.xlane.f32.xlu0 %v812
      %v814 = vpop.xlane.xlu0 %813
      %v815 = vsel %vm549, %v739, 0.0
      %816 = vadd.xlane.f32.xlu0 %v815
      %v817 = vpop.xlane.xlu0 %816
      %v818 = vsel %vm549, %v740, 0.0
      %819 = vadd.xlane.f32.xlu0 %v818
      %v820 = vpop.xlane.xlu0 %819
      %v821 = vsel %vm549, %v741, 0.0
      %822 = vadd.xlane.f32.xlu0 %v821
      %v823 = vpop.xlane.xlu0 %822
      %v824 = vsel %vm549, %v742, 0.0
      %825 = vadd.xlane.f32.xlu0 %v824
      %v826 = vpop.xlane.xlu0 %825
      %v827 = vsel %vm549, %v743, 0.0
      %828 = vadd.xlane.f32.xlu0 %v827
      %v829 = vpop.xlane.xlu0 %828
      %v830 = vsel %vm549, %v744, 0.0
      %831 = vadd.xlane.f32.xlu0 %v830
      %v832 = vpop.xlane.xlu0 %831
      %v833 = vsel %vm549, %v745, 0.0
      %834 = vadd.xlane.f32.xlu0 %v833
      %v835 = vpop.xlane.xlu0 %834
      %v836 = vsel %vm549, %v746, 0.0
      %837 = vadd.xlane.f32.xlu0 %v836
      %v838 = vpop.xlane.xlu0 %837
      %v839 = vsel %vm549, %v747, 0.0
      %840 = vadd.xlane.f32.xlu0 %v839
      %v841 = vpop.xlane.xlu0 %840
      %v842 = vsel %vm549, %v748, 0.0
      %843 = vadd.xlane.f32.xlu0 %v842
      %v844 = vpop.xlane.xlu0 %843
      %v845 = vmul.f32 %v751, %v652
      %v846 = vmul.f32 %v754, %v652
      %v847 = vmul.f32 %v757, %v652
      %v848 = vmul.f32 %v760, %v652
      %v849 = vmul.f32 %v763, %v652
      %v850 = vmul.f32 %v766, %v652
      %v851 = vmul.f32 %v769, %v652
      %v852 = vmul.f32 %v772, %v652
      %v853 = vmul.f32 %v775, %v652
      %v854 = vmul.f32 %v778, %v652
      %v855 = vmul.f32 %v781, %v652
      %v856 = vmul.f32 %v784, %v652
      %v857 = vmul.f32 %v787, %v652
      %v858 = vmul.f32 %v790, %v652
      %v859 = vmul.f32 %v793, %v652
      %v860 = vmul.f32 %v796, %v652
      %v861 = vmul.f32 %v799, %v652
      %v862 = vmul.f32 %v802, %v652
      %v863 = vmul.f32 %v805, %v652
      %v864 = vmul.f32 %v808, %v652
      %v865 = vmul.f32 %v811, %v652
      %v866 = vmul.f32 %v814, %v652
      %v867 = vmul.f32 %v817, %v652
      %v868 = vmul.f32 %v820, %v652
      %v869 = vmul.f32 %v823, %v652
      %v870 = vmul.f32 %v826, %v652
      %v871 = vmul.f32 %v829, %v652
      %v872 = vmul.f32 %v832, %v652
      %v873 = vmul.f32 %v835, %v652
      %v874 = vmul.f32 %v838, %v652
      %v875 = vmul.f32 %v841, %v652
      %v876 = vmul.f32 %v844, %v652
      %v877 = vadd.f32 %v845, 1e-05
      %v878 = vadd.f32 %v846, 1e-05
      %v879 = vadd.f32 %v847, 1e-05
      %v880 = vadd.f32 %v848, 1e-05
      %v881 = vadd.f32 %v849, 1e-05
      %v882 = vadd.f32 %v850, 1e-05
      %v883 = vadd.f32 %v851, 1e-05
      %v884 = vadd.f32 %v852, 1e-05
      %v885 = vadd.f32 %v853, 1e-05
      %v886 = vadd.f32 %v854, 1e-05
      %v887 = vadd.f32 %v855, 1e-05
      %v888 = vadd.f32 %v856, 1e-05
      %v889 = vadd.f32 %v857, 1e-05
      %v890 = vadd.f32 %v858, 1e-05
      %v891 = vadd.f32 %v859, 1e-05
      %v892 = vadd.f32 %v860, 1e-05
      %v893 = vadd.f32 %v861, 1e-05
      %v894 = vadd.f32 %v862, 1e-05
      %v895 = vadd.f32 %v863, 1e-05
      %v896 = vadd.f32 %v864, 1e-05
      %v897 = vadd.f32 %v865, 1e-05
      %v898 = vadd.f32 %v866, 1e-05
      %v899 = vadd.f32 %v867, 1e-05
      %v900 = vadd.f32 %v868, 1e-05
      %v901 = vadd.f32 %v869, 1e-05
      %v902 = vadd.f32 %v870, 1e-05
      %v903 = vadd.f32 %v871, 1e-05
      %v904 = vadd.f32 %v872, 1e-05
      %v905 = vadd.f32 %v873, 1e-05
      %v906 = vadd.f32 %v874, 1e-05
      %v907 = vadd.f32 %v875, 1e-05
      %v908 = vadd.f32 %v876, 1e-05
      %v909 = vrsqrt.pop %v877
      %v910 = vmul.f32 %v909, %v877
      %v911 = vmul.f32 %v910, %v909
      %v912 = vmul.f32 0.5, %v911
      %v913 = vsub.f32 1.5, %v912
      %v914 = vmul.f32 %v909, %v913
      %vm915 = vweird.f32 %v877
      %vm916 = vweird.f32 %v909
      %vm917 = vmor %vm915, %vm916
      %v918 = vsel %vm917, %v909, %v914
      %v919 = vrsqrt.pop %v878
      %v920 = vmul.f32 %v919, %v878
      %v921 = vmul.f32 %v920, %v919
      %v922 = vmul.f32 0.5, %v921
      %v923 = vsub.f32 1.5, %v922
      %v924 = vmul.f32 %v919, %v923
      %vm925 = vweird.f32 %v878
      %vm926 = vweird.f32 %v919
      %vm927 = vmor %vm925, %vm926
      %v928 = vsel %vm927, %v919, %v924
      %v929 = vrsqrt.pop %v879
      %v930 = vmul.f32 %v929, %v879
      %v931 = vmul.f32 %v930, %v929
      %v932 = vmul.f32 0.5, %v931
      %v933 = vsub.f32 1.5, %v932
      %v934 = vmul.f32 %v929, %v933
      %vm935 = vweird.f32 %v879
      %vm936 = vweird.f32 %v929
      %vm937 = vmor %vm935, %vm936
      %v938 = vsel %vm937, %v929, %v934
      %v939 = vrsqrt.pop %v880
      %v940 = vmul.f32 %v939, %v880
      %v941 = vmul.f32 %v940, %v939
      %v942 = vmul.f32 0.5, %v941
      %v943 = vsub.f32 1.5, %v942
      %v944 = vmul.f32 %v939, %v943
      %vm945 = vweird.f32 %v880
      %vm946 = vweird.f32 %v939
      %vm947 = vmor %vm945, %vm946
      %v948 = vsel %vm947, %v939, %v944
      %v949 = vrsqrt.pop %v881
      %v950 = vmul.f32 %v949, %v881
      %v951 = vmul.f32 %v950, %v949
      %v952 = vmul.f32 0.5, %v951
      %v953 = vsub.f32 1.5, %v952
      %v954 = vmul.f32 %v949, %v953
      %vm955 = vweird.f32 %v881
      %vm956 = vweird.f32 %v949
      %vm957 = vmor %vm955, %vm956
      %v958 = vsel %vm957, %v949, %v954
      %v959 = vrsqrt.pop %v882
      %v960 = vmul.f32 %v959, %v882
      %v961 = vmul.f32 %v960, %v959
      %v962 = vmul.f32 0.5, %v961
      %v963 = vsub.f32 1.5, %v962
      %v964 = vmul.f32 %v959, %v963
      %vm965 = vweird.f32 %v882
      %vm966 = vweird.f32 %v959
      %vm967 = vmor %vm965, %vm966
      %v968 = vsel %vm967, %v959, %v964
      %v969 = vrsqrt.pop %v883
      %v970 = vmul.f32 %v969, %v883
      %v971 = vmul.f32 %v970, %v969
      %v972 = vmul.f32 0.5, %v971
      %v973 = vsub.f32 1.5, %v972
      %v974 = vmul.f32 %v969, %v973
      %vm975 = vweird.f32 %v883
      %vm976 = vweird.f32 %v969
      %vm977 = vmor %vm975, %vm976
      %v978 = vsel %vm977, %v969, %v974
      %v979 = vrsqrt.pop %v884
      %v980 = vmul.f32 %v979, %v884
      %v981 = vmul.f32 %v980, %v979
      %v982 = vmul.f32 0.5, %v981
      %v983 = vsub.f32 1.5, %v982
      %v984 = vmul.f32 %v979, %v983
      %vm985 = vweird.f32 %v884
      %vm986 = vweird.f32 %v979
      %vm987 = vmor %vm985, %vm986
      %v988 = vsel %vm987, %v979, %v984
      %v989 = vrsqrt.pop %v885
      %v990 = vmul.f32 %v989, %v885
      %v991 = vmul.f32 %v990, %v989
      %v992 = vmul.f32 0.5, %v991
      %v993 = vsub.f32 1.5, %v992
      %v994 = vmul.f32 %v989, %v993
      %vm995 = vweird.f32 %v885
      %vm996 = vweird.f32 %v989
      %vm997 = vmor %vm995, %vm996
      %v998 = vsel %vm997, %v989, %v994
      %v999 = vrsqrt.pop %v886
      %v1000 = vmul.f32 %v999, %v886
      %v1001 = vmul.f32 %v1000, %v999
      %v1002 = vmul.f32 0.5, %v1001
      %v1003 = vsub.f32 1.5, %v1002
      %v1004 = vmul.f32 %v999, %v1003
      %vm1005 = vweird.f32 %v886
      %vm1006 = vweird.f32 %v999
      %vm1007 = vmor %vm1005, %vm1006
      %v1008 = vsel %vm1007, %v999, %v1004
      %v1009 = vrsqrt.pop %v887
      %v1010 = vmul.f32 %v1009, %v887
      %v1011 = vmul.f32 %v1010, %v1009
      %v1012 = vmul.f32 0.5, %v1011
      %v1013 = vsub.f32 1.5, %v1012
      %v1014 = vmul.f32 %v1009, %v1013
      %vm1015 = vweird.f32 %v887
      %vm1016 = vweird.f32 %v1009
      %vm1017 = vmor %vm1015, %vm1016
      %v1018 = vsel %vm1017, %v1009, %v1014
      %v1019 = vrsqrt.pop %v888
      %v1020 = vmul.f32 %v1019, %v888
      %v1021 = vmul.f32 %v1020, %v1019
      %v1022 = vmul.f32 0.5, %v1021
      %v1023 = vsub.f32 1.5, %v1022
      %v1024 = vmul.f32 %v1019, %v1023
      %vm1025 = vweird.f32 %v888
      %vm1026 = vweird.f32 %v1019
      %vm1027 = vmor %vm1025, %vm1026
      %v1028 = vsel %vm1027, %v1019, %v1024
      %v1029 = vrsqrt.pop %v889
      %v1030 = vmul.f32 %v1029, %v889
      %v1031 = vmul.f32 %v1030, %v1029
      %v1032 = vmul.f32 0.5, %v1031
      %v1033 = vsub.f32 1.5, %v1032
      %v1034 = vmul.f32 %v1029, %v1033
      %vm1035 = vweird.f32 %v889
      %vm1036 = vweird.f32 %v1029
      %vm1037 = vmor %vm1035, %vm1036
      %v1038 = vsel %vm1037, %v1029, %v1034
      %v1039 = vrsqrt.pop %v890
      %v1040 = vmul.f32 %v1039, %v890
      %v1041 = vmul.f32 %v1040, %v1039
      %v1042 = vmul.f32 0.5, %v1041
      %v1043 = vsub.f32 1.5, %v1042
      %v1044 = vmul.f32 %v1039, %v1043
      %vm1045 = vweird.f32 %v890
      %vm1046 = vweird.f32 %v1039
      %vm1047 = vmor %vm1045, %vm1046
      %v1048 = vsel %vm1047, %v1039, %v1044
      %v1049 = vrsqrt.pop %v891
      %v1050 = vmul.f32 %v1049, %v891
      %v1051 = vmul.f32 %v1050, %v1049
      %v1052 = vmul.f32 0.5, %v1051
      %v1053 = vsub.f32 1.5, %v1052
      %v1054 = vmul.f32 %v1049, %v1053
      %vm1055 = vweird.f32 %v891
      %vm1056 = vweird.f32 %v1049
      %vm1057 = vmor %vm1055, %vm1056
      %v1058 = vsel %vm1057, %v1049, %v1054
      %v1059 = vrsqrt.pop %v892
      %v1060 = vmul.f32 %v1059, %v892
      %v1061 = vmul.f32 %v1060, %v1059
      %v1062 = vmul.f32 0.5, %v1061
      %v1063 = vsub.f32 1.5, %v1062
      %v1064 = vmul.f32 %v1059, %v1063
      %vm1065 = vweird.f32 %v892
      %vm1066 = vweird.f32 %v1059
      %vm1067 = vmor %vm1065, %vm1066
      %v1068 = vsel %vm1067, %v1059, %v1064
      %v1069 = vrsqrt.pop %v893
      %v1070 = vmul.f32 %v1069, %v893
      %v1071 = vmul.f32 %v1070, %v1069
      %v1072 = vmul.f32 0.5, %v1071
      %v1073 = vsub.f32 1.5, %v1072
      %v1074 = vmul.f32 %v1069, %v1073
      %vm1075 = vweird.f32 %v893
      %vm1076 = vweird.f32 %v1069
      %vm1077 = vmor %vm1075, %vm1076
      %v1078 = vsel %vm1077, %v1069, %v1074
      %v1079 = vrsqrt.pop %v894
      %v1080 = vmul.f32 %v1079, %v894
      %v1081 = vmul.f32 %v1080, %v1079
      %v1082 = vmul.f32 0.5, %v1081
      %v1083 = vsub.f32 1.5, %v1082
      %v1084 = vmul.f32 %v1079, %v1083
      %vm1085 = vweird.f32 %v894
      %vm1086 = vweird.f32 %v1079
      %vm1087 = vmor %vm1085, %vm1086
      %v1088 = vsel %vm1087, %v1079, %v1084
      %v1089 = vrsqrt.pop %v895
      %v1090 = vmul.f32 %v1089, %v895
      %v1091 = vmul.f32 %v1090, %v1089
      %v1092 = vmul.f32 0.5, %v1091
      %v1093 = vsub.f32 1.5, %v1092
      %v1094 = vmul.f32 %v1089, %v1093
      %vm1095 = vweird.f32 %v895
      %vm1096 = vweird.f32 %v1089
      %vm1097 = vmor %vm1095, %vm1096
      %v1098 = vsel %vm1097, %v1089, %v1094
      %v1099 = vrsqrt.pop %v896
      %v1100 = vmul.f32 %v1099, %v896
      %v1101 = vmul.f32 %v1100, %v1099
      %v1102 = vmul.f32 0.5, %v1101
      %v1103 = vsub.f32 1.5, %v1102
      %v1104 = vmul.f32 %v1099, %v1103
      %vm1105 = vweird.f32 %v896
      %vm1106 = vweird.f32 %v1099
      %vm1107 = vmor %vm1105, %vm1106
      %v1108 = vsel %vm1107, %v1099, %v1104
      %v1109 = vrsqrt.pop %v897
      %v1110 = vmul.f32 %v1109, %v897
      %v1111 = vmul.f32 %v1110, %v1109
      %v1112 = vmul.f32 0.5, %v1111
      %v1113 = vsub.f32 1.5, %v1112
      %v1114 = vmul.f32 %v1109, %v1113
      %vm1115 = vweird.f32 %v897
      %vm1116 = vweird.f32 %v1109
      %vm1117 = vmor %vm1115, %vm1116
      %v1118 = vsel %vm1117, %v1109, %v1114
      %v1119 = vrsqrt.pop %v898
      %v1120 = vmul.f32 %v1119, %v898
      %v1121 = vmul.f32 %v1120, %v1119
      %v1122 = vmul.f32 0.5, %v1121
      %v1123 = vsub.f32 1.5, %v1122
      %v1124 = vmul.f32 %v1119, %v1123
      %vm1125 = vweird.f32 %v898
      %vm1126 = vweird.f32 %v1119
      %vm1127 = vmor %vm1125, %vm1126
      %v1128 = vsel %vm1127, %v1119, %v1124
      %v1129 = vrsqrt.pop %v899
      %v1130 = vmul.f32 %v1129, %v899
      %v1131 = vmul.f32 %v1130, %v1129
      %v1132 = vmul.f32 0.5, %v1131
      %v1133 = vsub.f32 1.5, %v1132
      %v1134 = vmul.f32 %v1129, %v1133
      %vm1135 = vweird.f32 %v899
      %vm1136 = vweird.f32 %v1129
      %vm1137 = vmor %vm1135, %vm1136
      %v1138 = vsel %vm1137, %v1129, %v1134
      %v1139 = vrsqrt.pop %v900
      %v1140 = vmul.f32 %v1139, %v900
      %v1141 = vmul.f32 %v1140, %v1139
      %v1142 = vmul.f32 0.5, %v1141
      %v1143 = vsub.f32 1.5, %v1142
      %v1144 = vmul.f32 %v1139, %v1143
      %vm1145 = vweird.f32 %v900
      %vm1146 = vweird.f32 %v1139
      %vm1147 = vmor %vm1145, %vm1146
      %v1148 = vsel %vm1147, %v1139, %v1144
      %v1149 = vrsqrt.pop %v901
      %v1150 = vmul.f32 %v1149, %v901
      %v1151 = vmul.f32 %v1150, %v1149
      %v1152 = vmul.f32 0.5, %v1151
      %v1153 = vsub.f32 1.5, %v1152
      %v1154 = vmul.f32 %v1149, %v1153
      %vm1155 = vweird.f32 %v901
      %vm1156 = vweird.f32 %v1149
      %vm1157 = vmor %vm1155, %vm1156
      %v1158 = vsel %vm1157, %v1149, %v1154
      %v1159 = vrsqrt.pop %v902
      %v1160 = vmul.f32 %v1159, %v902
      %v1161 = vmul.f32 %v1160, %v1159
      %v1162 = vmul.f32 0.5, %v1161
      %v1163 = vsub.f32 1.5, %v1162
      %v1164 = vmul.f32 %v1159, %v1163
      %vm1165 = vweird.f32 %v902
      %vm1166 = vweird.f32 %v1159
      %vm1167 = vmor %vm1165, %vm1166
      %v1168 = vsel %vm1167, %v1159, %v1164
      %v1169 = vrsqrt.pop %v903
      %v1170 = vmul.f32 %v1169, %v903
      %v1171 = vmul.f32 %v1170, %v1169
      %v1172 = vmul.f32 0.5, %v1171
      %v1173 = vsub.f32 1.5, %v1172
      %v1174 = vmul.f32 %v1169, %v1173
      %vm1175 = vweird.f32 %v903
      %vm1176 = vweird.f32 %v1169
      %vm1177 = vmor %vm1175, %vm1176
      %v1178 = vsel %vm1177, %v1169, %v1174
      %v1179 = vrsqrt.pop %v904
      %v1180 = vmul.f32 %v1179, %v904
      %v1181 = vmul.f32 %v1180, %v1179
      %v1182 = vmul.f32 0.5, %v1181
      %v1183 = vsub.f32 1.5, %v1182
      %v1184 = vmul.f32 %v1179, %v1183
      %vm1185 = vweird.f32 %v904
      %vm1186 = vweird.f32 %v1179
      %vm1187 = vmor %vm1185, %vm1186
      %v1188 = vsel %vm1187, %v1179, %v1184
      %v1189 = vrsqrt.pop %v905
      %v1190 = vmul.f32 %v1189, %v905
      %v1191 = vmul.f32 %v1190, %v1189
      %v1192 = vmul.f32 0.5, %v1191
      %v1193 = vsub.f32 1.5, %v1192
      %v1194 = vmul.f32 %v1189, %v1193
      %vm1195 = vweird.f32 %v905
      %vm1196 = vweird.f32 %v1189
      %vm1197 = vmor %vm1195, %vm1196
      %v1198 = vsel %vm1197, %v1189, %v1194
      %v1199 = vrsqrt.pop %v906
      %v1200 = vmul.f32 %v1199, %v906
      %v1201 = vmul.f32 %v1200, %v1199
      %v1202 = vmul.f32 0.5, %v1201
      %v1203 = vsub.f32 1.5, %v1202
      %v1204 = vmul.f32 %v1199, %v1203
      %vm1205 = vweird.f32 %v906
      %vm1206 = vweird.f32 %v1199
      %vm1207 = vmor %vm1205, %vm1206
      %v1208 = vsel %vm1207, %v1199, %v1204
      %v1209 = vrsqrt.pop %v907
      %v1210 = vmul.f32 %v1209, %v907
      %v1211 = vmul.f32 %v1210, %v1209
      %v1212 = vmul.f32 0.5, %v1211
      %v1213 = vsub.f32 1.5, %v1212
      %v1214 = vmul.f32 %v1209, %v1213
      %vm1215 = vweird.f32 %v907
      %vm1216 = vweird.f32 %v1209
      %vm1217 = vmor %vm1215, %vm1216
      %v1218 = vsel %vm1217, %v1209, %v1214
      %v1219 = vrsqrt.pop %v908
      %v1220 = vmul.f32 %v1219, %v908
      %v1221 = vmul.f32 %v1220, %v1219
      %v1222 = vmul.f32 0.5, %v1221
      %v1223 = vsub.f32 1.5, %v1222
      %v1224 = vmul.f32 %v1219, %v1223
      %vm1225 = vweird.f32 %v908
      %vm1226 = vweird.f32 %v1219
      %vm1227 = vmor %vm1225, %vm1226
      %v1228 = vsel %vm1227, %v1219, %v1224
      %v1229 = vmul.f32 %v685, %v918
      %v1230 = vmul.f32 %v686, %v928
      %v1231 = vmul.f32 %v687, %v938
      %v1232 = vmul.f32 %v688, %v948
      %v1233 = vmul.f32 %v689, %v958
      %v1234 = vmul.f32 %v690, %v968
      %v1235 = vmul.f32 %v691, %v978
      %v1236 = vmul.f32 %v692, %v988
      %v1237 = vmul.f32 %v693, %v998
      %v1238 = vmul.f32 %v694, %v1008
      %v1239 = vmul.f32 %v695, %v1018
      %v1240 = vmul.f32 %v696, %v1028
      %v1241 = vmul.f32 %v697, %v1038
      %v1242 = vmul.f32 %v698, %v1048
      %v1243 = vmul.f32 %v699, %v1058
      %v1244 = vmul.f32 %v700, %v1068
      %v1245 = vmul.f32 %v701, %v1078
      %v1246 = vmul.f32 %v702, %v1088
      %v1247 = vmul.f32 %v703, %v1098
      %v1248 = vmul.f32 %v704, %v1108
      %v1249 = vmul.f32 %v705, %v1118
      %v1250 = vmul.f32 %v706, %v1128
      %v1251 = vmul.f32 %v707, %v1138
      %v1252 = vmul.f32 %v708, %v1148
      %v1253 = vmul.f32 %v709, %v1158
      %v1254 = vmul.f32 %v710, %v1168
      %v1255 = vmul.f32 %v711, %v1178
      %v1256 = vmul.f32 %v712, %v1188
      %v1257 = vmul.f32 %v713, %v1198
      %v1258 = vmul.f32 %v714, %v1208
      %v1259 = vmul.f32 %v715, %v1218
      %v1260 = vmul.f32 %v716, %v1228
      %v1262 = vperm.slane %v515, 0
      %v1264 = vmul.f32 %v1229, %v1262
      %v1265 = vmul.f32 %v1230, %v1262
      %v1266 = vmul.f32 %v1231, %v1262
      %v1267 = vmul.f32 %v1232, %v1262
      %v1268 = vmul.f32 %v1233, %v1262
      %v1269 = vmul.f32 %v1234, %v1262
      %v1270 = vmul.f32 %v1235, %v1262
      %v1271 = vmul.f32 %v1236, %v1262
      %v1272 = vmul.f32 %v1237, %v1262
      %v1273 = vmul.f32 %v1238, %v1262
      %v1274 = vmul.f32 %v1239, %v1262
      %v1275 = vmul.f32 %v1240, %v1262
      %v1276 = vmul.f32 %v1241, %v1262
      %v1277 = vmul.f32 %v1242, %v1262
      %v1278 = vmul.f32 %v1243, %v1262
      %v1279 = vmul.f32 %v1244, %v1262
      %v1280 = vmul.f32 %v1245, %v1262
      %v1281 = vmul.f32 %v1246, %v1262
      %v1282 = vmul.f32 %v1247, %v1262
      %v1283 = vmul.f32 %v1248, %v1262
      %v1284 = vmul.f32 %v1249, %v1262
      %v1285 = vmul.f32 %v1250, %v1262
      %v1286 = vmul.f32 %v1251, %v1262
      %v1287 = vmul.f32 %v1252, %v1262
      %v1288 = vmul.f32 %v1253, %v1262
      %v1289 = vmul.f32 %v1254, %v1262
      %v1290 = vmul.f32 %v1255, %v1262
      %v1291 = vmul.f32 %v1256, %v1262
      %v1292 = vmul.f32 %v1257, %v1262
      %v1293 = vmul.f32 %v1258, %v1262
      %v1294 = vmul.f32 %v1259, %v1262
      %v1295 = vmul.f32 %v1260, %v1262
      %v1297 = vperm.slane %v516, 0
      %v1299 = vadd.f32 %v1264, %v1297
      %v1300 = vadd.f32 %v1265, %v1297
      %v1301 = vadd.f32 %v1266, %v1297
      %v1302 = vadd.f32 %v1267, %v1297
      %v1303 = vadd.f32 %v1268, %v1297
      %v1304 = vadd.f32 %v1269, %v1297
      %v1305 = vadd.f32 %v1270, %v1297
      %v1306 = vadd.f32 %v1271, %v1297
      %v1307 = vadd.f32 %v1272, %v1297
      %v1308 = vadd.f32 %v1273, %v1297
      %v1309 = vadd.f32 %v1274, %v1297
      %v1310 = vadd.f32 %v1275, %v1297
      %v1311 = vadd.f32 %v1276, %v1297
      %v1312 = vadd.f32 %v1277, %v1297
      %v1313 = vadd.f32 %v1278, %v1297
      %v1314 = vadd.f32 %v1279, %v1297
      %v1315 = vadd.f32 %v1280, %v1297
      %v1316 = vadd.f32 %v1281, %v1297
      %v1317 = vadd.f32 %v1282, %v1297
      %v1318 = vadd.f32 %v1283, %v1297
      %v1319 = vadd.f32 %v1284, %v1297
      %v1320 = vadd.f32 %v1285, %v1297
      %v1321 = vadd.f32 %v1286, %v1297
      %v1322 = vadd.f32 %v1287, %v1297
      %v1323 = vadd.f32 %v1288, %v1297
      %v1324 = vadd.f32 %v1289, %v1297
      %v1325 = vadd.f32 %v1290, %v1297
      %v1326 = vadd.f32 %v1291, %v1297
      %v1327 = vadd.f32 %v1292, %v1297
      %v1328 = vadd.f32 %v1293, %v1297
      %v1329 = vadd.f32 %v1294, %v1297
      %v1330 = vadd.f32 %v1295, %v1297
      %v1331 = vld [vmem:[%s489] sm:$0xff]
      %v1332 = vld [vmem:[%s489 + $0x8] sm:$0xff]
      %v1333 = vld [vmem:[%s489 + $0x10] sm:$0xff]
      %v1334 = vld [vmem:[%s489 + $0x18] sm:$0xff]
      %v1335 = vld [vmem:[%s489 + $0x20] sm:$0xff]
      %v1336 = vld [vmem:[%s489 + $0x28] sm:$0xff]
      %v1337 = vld [vmem:[%s489 + $0x30] sm:$0xff]
      %v1338 = vld [vmem:[%s489 + $0x38] sm:$0xff]
      %v1339 = vld [vmem:[%s489 + $0x40] sm:$0xff]
      %v1340 = vld [vmem:[%s489 + $0x48] sm:$0xff]
      %v1341 = vld [vmem:[%s489 + $0x50] sm:$0xff]
      %v1342 = vld [vmem:[%s489 + $0x58] sm:$0xff]
      %v1343 = vld [vmem:[%s489 + $0x60] sm:$0xff]
      %v1344 = vld [vmem:[%s489 + $0x68] sm:$0xff]
      %v1345 = vld [vmem:[%s489 + $0x70] sm:$0xff]
      %v1346 = vld [vmem:[%s489 + $0x78] sm:$0xff]
      %v1347 = vld [vmem:[%s489 + $0x80] sm:$0xff]
      %v1348 = vld [vmem:[%s489 + $0x88] sm:$0xff]
      %v1349 = vld [vmem:[%s489 + $0x90] sm:$0xff]
      %v1350 = vld [vmem:[%s489 + $0x98] sm:$0xff]
      %v1351 = vld [vmem:[%s489 + $0xa0] sm:$0xff]
      %v1352 = vld [vmem:[%s489 + $0xa8] sm:$0xff]
      %v1353 = vld [vmem:[%s489 + $0xb0] sm:$0xff]
      %v1354 = vld [vmem:[%s489 + $0xb8] sm:$0xff]
      %v1355 = vld [vmem:[%s489 + $0xc0] sm:$0xff]
      %v1356 = vld [vmem:[%s489 + $0xc8] sm:$0xff]
      %v1357 = vld [vmem:[%s489 + $0xd0] sm:$0xff]
      %v1358 = vld [vmem:[%s489 + $0xd8] sm:$0xff]
      %v1359 = vld [vmem:[%s489 + $0xe0] sm:$0xff]
      %v1360 = vld [vmem:[%s489 + $0xe8] sm:$0xff]
      %v1361 = vld [vmem:[%s489 + $0xf0] sm:$0xff]
      %v1362 = vld [vmem:[%s489 + $0xf8] sm:$0xff]
      %v1363 = vsel %vm549, %v1331, 0.0
      %1364 = vadd.xlane.f32.xlu0 %v1363
      %v1365 = vpop.xlane.xlu0 %1364
      %v1366 = vsel %vm549, %v1332, 0.0
      %1367 = vadd.xlane.f32.xlu0 %v1366
      %v1368 = vpop.xlane.xlu0 %1367
      %v1369 = vsel %vm549, %v1333, 0.0
      %1370 = vadd.xlane.f32.xlu0 %v1369
      %v1371 = vpop.xlane.xlu0 %1370
      %v1372 = vsel %vm549, %v1334, 0.0
      %1373 = vadd.xlane.f32.xlu0 %v1372
      %v1374 = vpop.xlane.xlu0 %1373
      %v1375 = vsel %vm549, %v1335, 0.0
      %1376 = vadd.xlane.f32.xlu0 %v1375
      %v1377 = vpop.xlane.xlu0 %1376
      %v1378 = vsel %vm549, %v1336, 0.0
      %1379 = vadd.xlane.f32.xlu0 %v1378
      %v1380 = vpop.xlane.xlu0 %1379
      %v1381 = vsel %vm549, %v1337, 0.0
      %1382 = vadd.xlane.f32.xlu0 %v1381
      %v1383 = vpop.xlane.xlu0 %1382
      %v1384 = vsel %vm549, %v1338, 0.0
      %1385 = vadd.xlane.f32.xlu0 %v1384
      %v1386 = vpop.xlane.xlu0 %1385
      %v1387 = vsel %vm549, %v1339, 0.0
      %1388 = vadd.xlane.f32.xlu0 %v1387
      %v1389 = vpop.xlane.xlu0 %1388
      %v1390 = vsel %vm549, %v1340, 0.0
      %1391 = vadd.xlane.f32.xlu0 %v1390
      %v1392 = vpop.xlane.xlu0 %1391
      %v1393 = vsel %vm549, %v1341, 0.0
      %1394 = vadd.xlane.f32.xlu0 %v1393
      %v1395 = vpop.xlane.xlu0 %1394
      %v1396 = vsel %vm549, %v1342, 0.0
      %1397 = vadd.xlane.f32.xlu0 %v1396
      %v1398 = vpop.xlane.xlu0 %1397
      %v1399 = vsel %vm549, %v1343, 0.0
      %1400 = vadd.xlane.f32.xlu0 %v1399
      %v1401 = vpop.xlane.xlu0 %1400
      %v1402 = vsel %vm549, %v1344, 0.0
      %1403 = vadd.xlane.f32.xlu0 %v1402
      %v1404 = vpop.xlane.xlu0 %1403
      %v1405 = vsel %vm549, %v1345, 0.0
      %1406 = vadd.xlane.f32.xlu0 %v1405
      %v1407 = vpop.xlane.xlu0 %1406
      %v1408 = vsel %vm549, %v1346, 0.0
      %1409 = vadd.xlane.f32.xlu0 %v1408
      %v1410 = vpop.xlane.xlu0 %1409
      %v1411 = vsel %vm549, %v1347, 0.0
      %1412 = vadd.xlane.f32.xlu0 %v1411
      %v1413 = vpop.xlane.xlu0 %1412
      %v1414 = vsel %vm549, %v1348, 0.0
      %1415 = vadd.xlane.f32.xlu0 %v1414
      %v1416 = vpop.xlane.xlu0 %1415
      %v1417 = vsel %vm549, %v1349, 0.0
      %1418 = vadd.xlane.f32.xlu0 %v1417
      %v1419 = vpop.xlane.xlu0 %1418
      %v1420 = vsel %vm549, %v1350, 0.0
      %1421 = vadd.xlane.f32.xlu0 %v1420
      %v1422 = vpop.xlane.xlu0 %1421
      %v1423 = vsel %vm549, %v1351, 0.0
      %1424 = vadd.xlane.f32.xlu0 %v1423
      %v1425 = vpop.xlane.xlu0 %1424
      %v1426 = vsel %vm549, %v1352, 0.0
      %1427 = vadd.xlane.f32.xlu0 %v1426
      %v1428 = vpop.xlane.xlu0 %1427
      %v1429 = vsel %vm549, %v1353, 0.0
      %1430 = vadd.xlane.f32.xlu0 %v1429
      %v1431 = vpop.xlane.xlu0 %1430
      %v1432 = vsel %vm549, %v1354, 0.0
      %1433 = vadd.xlane.f32.xlu0 %v1432
      %v1434 = vpop.xlane.xlu0 %1433
      %v1435 = vsel %vm549, %v1355, 0.0
      %1436 = vadd.xlane.f32.xlu0 %v1435
      %v1437 = vpop.xlane.xlu0 %1436
      %v1438 = vsel %vm549, %v1356, 0.0
      %1439 = vadd.xlane.f32.xlu0 %v1438
      %v1440 = vpop.xlane.xlu0 %1439
      %v1441 = vsel %vm549, %v1357, 0.0
      %1442 = vadd.xlane.f32.xlu0 %v1441
      %v1443 = vpop.xlane.xlu0 %1442
      %v1444 = vsel %vm549, %v1358, 0.0
      %1445 = vadd.xlane.f32.xlu0 %v1444
      %v1446 = vpop.xlane.xlu0 %1445
      %v1447 = vsel %vm549, %v1359, 0.0
      %1448 = vadd.xlane.f32.xlu0 %v1447
      %v1449 = vpop.xlane.xlu0 %1448
      %v1450 = vsel %vm549, %v1360, 0.0
      %1451 = vadd.xlane.f32.xlu0 %v1450
      %v1452 = vpop.xlane.xlu0 %1451
      %v1453 = vsel %vm549, %v1361, 0.0
      %1454 = vadd.xlane.f32.xlu0 %v1453
      %v1455 = vpop.xlane.xlu0 %1454
      %v1456 = vsel %vm549, %v1362, 0.0
      %1457 = vadd.xlane.f32.xlu0 %v1456
      %v1458 = vpop.xlane.xlu0 %1457
      %v1459 = vmul.f32 %v1365, %v652
      %v1460 = vmul.f32 %v1368, %v652
      %v1461 = vmul.f32 %v1371, %v652
      %v1462 = vmul.f32 %v1374, %v652
      %v1463 = vmul.f32 %v1377, %v652
      %v1464 = vmul.f32 %v1380, %v652
      %v1465 = vmul.f32 %v1383, %v652
      %v1466 = vmul.f32 %v1386, %v652
      %v1467 = vmul.f32 %v1389, %v652
      %v1468 = vmul.f32 %v1392, %v652
      %v1469 = vmul.f32 %v1395, %v652
      %v1470 = vmul.f32 %v1398, %v652
      %v1471 = vmul.f32 %v1401, %v652
      %v1472 = vmul.f32 %v1404, %v652
      %v1473 = vmul.f32 %v1407, %v652
      %v1474 = vmul.f32 %v1410, %v652
      %v1475 = vmul.f32 %v1413, %v652
      %v1476 = vmul.f32 %v1416, %v652
      %v1477 = vmul.f32 %v1419, %v652
      %v1478 = vmul.f32 %v1422, %v652
      %v1479 = vmul.f32 %v1425, %v652
      %v1480 = vmul.f32 %v1428, %v652
      %v1481 = vmul.f32 %v1431, %v652
      %v1482 = vmul.f32 %v1434, %v652
      %v1483 = vmul.f32 %v1437, %v652
      %v1484 = vmul.f32 %v1440, %v652
      %v1485 = vmul.f32 %v1443, %v652
      %v1486 = vmul.f32 %v1446, %v652
      %v1487 = vmul.f32 %v1449, %v652
      %v1488 = vmul.f32 %v1452, %v652
      %v1489 = vmul.f32 %v1455, %v652
      %v1490 = vmul.f32 %v1458, %v652
      %v1491 = vsub.f32 %v1331, %v1459
      %v1492 = vsub.f32 %v1332, %v1460
      %v1493 = vsub.f32 %v1333, %v1461
      %v1494 = vsub.f32 %v1334, %v1462
      %v1495 = vsub.f32 %v1335, %v1463
      %v1496 = vsub.f32 %v1336, %v1464
      %v1497 = vsub.f32 %v1337, %v1465
      %v1498 = vsub.f32 %v1338, %v1466
      %v1499 = vsub.f32 %v1339, %v1467
      %v1500 = vsub.f32 %v1340, %v1468
      %v1501 = vsub.f32 %v1341, %v1469
      %v1502 = vsub.f32 %v1342, %v1470
      %v1503 = vsub.f32 %v1343, %v1471
      %v1504 = vsub.f32 %v1344, %v1472
      %v1505 = vsub.f32 %v1345, %v1473
      %v1506 = vsub.f32 %v1346, %v1474
      %v1507 = vsub.f32 %v1347, %v1475
      %v1508 = vsub.f32 %v1348, %v1476
      %v1509 = vsub.f32 %v1349, %v1477
      %v1510 = vsub.f32 %v1350, %v1478
      %v1511 = vsub.f32 %v1351, %v1479
      %v1512 = vsub.f32 %v1352, %v1480
      %v1513 = vsub.f32 %v1353, %v1481
      %v1514 = vsub.f32 %v1354, %v1482
      %v1515 = vsub.f32 %v1355, %v1483
      %v1516 = vsub.f32 %v1356, %v1484
      %v1517 = vsub.f32 %v1357, %v1485
      %v1518 = vsub.f32 %v1358, %v1486
      %v1519 = vsub.f32 %v1359, %v1487
      %v1520 = vsub.f32 %v1360, %v1488
      %v1521 = vsub.f32 %v1361, %v1489
      %v1522 = vsub.f32 %v1362, %v1490
      %v1523 = vmul.f32 %v1491, %v1491
      %v1524 = vmul.f32 %v1492, %v1492
      %v1525 = vmul.f32 %v1493, %v1493
      %v1526 = vmul.f32 %v1494, %v1494
      %v1527 = vmul.f32 %v1495, %v1495
      %v1528 = vmul.f32 %v1496, %v1496
      %v1529 = vmul.f32 %v1497, %v1497
      %v1530 = vmul.f32 %v1498, %v1498
      %v1531 = vmul.f32 %v1499, %v1499
      %v1532 = vmul.f32 %v1500, %v1500
      %v1533 = vmul.f32 %v1501, %v1501
      %v1534 = vmul.f32 %v1502, %v1502
      %v1535 = vmul.f32 %v1503, %v1503
      %v1536 = vmul.f32 %v1504, %v1504
      %v1537 = vmul.f32 %v1505, %v1505
      %v1538 = vmul.f32 %v1506, %v1506
      %v1539 = vmul.f32 %v1507, %v1507
      %v1540 = vmul.f32 %v1508, %v1508
      %v1541 = vmul.f32 %v1509, %v1509
      %v1542 = vmul.f32 %v1510, %v1510
      %v1543 = vmul.f32 %v1511, %v1511
      %v1544 = vmul.f32 %v1512, %v1512
      %v1545 = vmul.f32 %v1513, %v1513
      %v1546 = vmul.f32 %v1514, %v1514
      %v1547 = vmul.f32 %v1515, %v1515
      %v1548 = vmul.f32 %v1516, %v1516
      %v1549 = vmul.f32 %v1517, %v1517
      %v1550 = vmul.f32 %v1518, %v1518
      %v1551 = vmul.f32 %v1519, %v1519
      %v1552 = vmul.f32 %v1520, %v1520
      %v1553 = vmul.f32 %v1521, %v1521
      %v1554 = vmul.f32 %v1522, %v1522
      %v1555 = vsel %vm549, %v1523, 0.0
      %1556 = vadd.xlane.f32.xlu0 %v1555
      %v1557 = vpop.xlane.xlu0 %1556
      %v1558 = vsel %vm549, %v1524, 0.0
      %1559 = vadd.xlane.f32.xlu0 %v1558
      %v1560 = vpop.xlane.xlu0 %1559
      %v1561 = vsel %vm549, %v1525, 0.0
      %1562 = vadd.xlane.f32.xlu0 %v1561
      %v1563 = vpop.xlane.xlu0 %1562
      %v1564 = vsel %vm549, %v1526, 0.0
      %1565 = vadd.xlane.f32.xlu0 %v1564
      %v1566 = vpop.xlane.xlu0 %1565
      %v1567 = vsel %vm549, %v1527, 0.0
      %1568 = vadd.xlane.f32.xlu0 %v1567
      %v1569 = vpop.xlane.xlu0 %1568
      %v1570 = vsel %vm549, %v1528, 0.0
      %1571 = vadd.xlane.f32.xlu0 %v1570
      %v1572 = vpop.xlane.xlu0 %1571
      %v1573 = vsel %vm549, %v1529, 0.0
      %1574 = vadd.xlane.f32.xlu0 %v1573
      %v1575 = vpop.xlane.xlu0 %1574
      %v1576 = vsel %vm549, %v1530, 0.0
      %1577 = vadd.xlane.f32.xlu0 %v1576
      %v1578 = vpop.xlane.xlu0 %1577
      %v1579 = vsel %vm549, %v1531, 0.0
      %1580 = vadd.xlane.f32.xlu0 %v1579
      %v1581 = vpop.xlane.xlu0 %1580
      %v1582 = vsel %vm549, %v1532, 0.0
      %1583 = vadd.xlane.f32.xlu0 %v1582
      %v1584 = vpop.xlane.xlu0 %1583
      %v1585 = vsel %vm549, %v1533, 0.0
      %1586 = vadd.xlane.f32.xlu0 %v1585
      %v1587 = vpop.xlane.xlu0 %1586
      %v1588 = vsel %vm549, %v1534, 0.0
      %1589 = vadd.xlane.f32.xlu0 %v1588
      %v1590 = vpop.xlane.xlu0 %1589
      %v1591 = vsel %vm549, %v1535, 0.0
      %1592 = vadd.xlane.f32.xlu0 %v1591
      %v1593 = vpop.xlane.xlu0 %1592
      %v1594 = vsel %vm549, %v1536, 0.0
      %1595 = vadd.xlane.f32.xlu0 %v1594
      %v1596 = vpop.xlane.xlu0 %1595
      %v1597 = vsel %vm549, %v1537, 0.0
      %1598 = vadd.xlane.f32.xlu0 %v1597
      %v1599 = vpop.xlane.xlu0 %1598
      %v1600 = vsel %vm549, %v1538, 0.0
      %1601 = vadd.xlane.f32.xlu0 %v1600
      %v1602 = vpop.xlane.xlu0 %1601
      %v1603 = vsel %vm549, %v1539, 0.0
      %1604 = vadd.xlane.f32.xlu0 %v1603
      %v1605 = vpop.xlane.xlu0 %1604
      %v1606 = vsel %vm549, %v1540, 0.0
      %1607 = vadd.xlane.f32.xlu0 %v1606
      %v1608 = vpop.xlane.xlu0 %1607
      %v1609 = vsel %vm549, %v1541, 0.0
      %1610 = vadd.xlane.f32.xlu0 %v1609
      %v1611 = vpop.xlane.xlu0 %1610
      %v1612 = vsel %vm549, %v1542, 0.0
      %1613 = vadd.xlane.f32.xlu0 %v1612
      %v1614 = vpop.xlane.xlu0 %1613
      %v1615 = vsel %vm549, %v1543, 0.0
      %1616 = vadd.xlane.f32.xlu0 %v1615
      %v1617 = vpop.xlane.xlu0 %1616
      %v1618 = vsel %vm549, %v1544, 0.0
      %1619 = vadd.xlane.f32.xlu0 %v1618
      %v1620 = vpop.xlane.xlu0 %1619
      %v1621 = vsel %vm549, %v1545, 0.0
      %1622 = vadd.xlane.f32.xlu0 %v1621
      %v1623 = vpop.xlane.xlu0 %1622
      %v1624 = vsel %vm549, %v1546, 0.0
      %1625 = vadd.xlane.f32.xlu0 %v1624
      %v1626 = vpop.xlane.xlu0 %1625
      %v1627 = vsel %vm549, %v1547, 0.0
      %1628 = vadd.xlane.f32.xlu0 %v1627
      %v1629 = vpop.xlane.xlu0 %1628
      %v1630 = vsel %vm549, %v1548, 0.0
      %1631 = vadd.xlane.f32.xlu0 %v1630
      %v1632 = vpop.xlane.xlu0 %1631
      %v1633 = vsel %vm549, %v1549, 0.0
      %1634 = vadd.xlane.f32.xlu0 %v1633
      %v1635 = vpop.xlane.xlu0 %1634
      %v1636 = vsel %vm549, %v1550, 0.0
      %1637 = vadd.xlane.f32.xlu0 %v1636
      %v1638 = vpop.xlane.xlu0 %1637
      %v1639 = vsel %vm549, %v1551, 0.0
      %1640 = vadd.xlane.f32.xlu0 %v1639
      %v1641 = vpop.xlane.xlu0 %1640
      %v1642 = vsel %vm549, %v1552, 0.0
      %1643 = vadd.xlane.f32.xlu0 %v1642
      %v1644 = vpop.xlane.xlu0 %1643
      %v1645 = vsel %vm549, %v1553, 0.0
      %1646 = vadd.xlane.f32.xlu0 %v1645
      %v1647 = vpop.xlane.xlu0 %1646
      %v1648 = vsel %vm549, %v1554, 0.0
      %1649 = vadd.xlane.f32.xlu0 %v1648
      %v1650 = vpop.xlane.xlu0 %1649
      %v1651 = vmul.f32 %v1557, %v652
      %v1652 = vmul.f32 %v1560, %v652
      %v1653 = vmul.f32 %v1563, %v652
      %v1654 = vmul.f32 %v1566, %v652
      %v1655 = vmul.f32 %v1569, %v652
      %v1656 = vmul.f32 %v1572, %v652
      %v1657 = vmul.f32 %v1575, %v652
      %v1658 = vmul.f32 %v1578, %v652
      %v1659 = vmul.f32 %v1581, %v652
      %v1660 = vmul.f32 %v1584, %v652
      %v1661 = vmul.f32 %v1587, %v652
      %v1662 = vmul.f32 %v1590, %v652
      %v1663 = vmul.f32 %v1593, %v652
      %v1664 = vmul.f32 %v1596, %v652
      %v1665 = vmul.f32 %v1599, %v652
      %v1666 = vmul.f32 %v1602, %v652
      %v1667 = vmul.f32 %v1605, %v652
      %v1668 = vmul.f32 %v1608, %v652
      %v1669 = vmul.f32 %v1611, %v652
      %v1670 = vmul.f32 %v1614, %v652
      %v1671 = vmul.f32 %v1617, %v652
      %v1672 = vmul.f32 %v1620, %v652
      %v1673 = vmul.f32 %v1623, %v652
      %v1674 = vmul.f32 %v1626, %v652
      %v1675 = vmul.f32 %v1629, %v652
      %v1676 = vmul.f32 %v1632, %v652
      %v1677 = vmul.f32 %v1635, %v652
      %v1678 = vmul.f32 %v1638, %v652
      %v1679 = vmul.f32 %v1641, %v652
      %v1680 = vmul.f32 %v1644, %v652
      %v1681 = vmul.f32 %v1647, %v652
      %v1682 = vmul.f32 %v1650, %v652
      %v1683 = vadd.f32 %v1651, 1e-05
      %v1684 = vadd.f32 %v1652, 1e-05
      %v1685 = vadd.f32 %v1653, 1e-05
      %v1686 = vadd.f32 %v1654, 1e-05
      %v1687 = vadd.f32 %v1655, 1e-05
      %v1688 = vadd.f32 %v1656, 1e-05
      %v1689 = vadd.f32 %v1657, 1e-05
      %v1690 = vadd.f32 %v1658, 1e-05
      %v1691 = vadd.f32 %v1659, 1e-05
      %v1692 = vadd.f32 %v1660, 1e-05
      %v1693 = vadd.f32 %v1661, 1e-05
      %v1694 = vadd.f32 %v1662, 1e-05
      %v1695 = vadd.f32 %v1663, 1e-05
      %v1696 = vadd.f32 %v1664, 1e-05
      %v1697 = vadd.f32 %v1665, 1e-05
      %v1698 = vadd.f32 %v1666, 1e-05
      %v1699 = vadd.f32 %v1667, 1e-05
      %v1700 = vadd.f32 %v1668, 1e-05
      %v1701 = vadd.f32 %v1669, 1e-05
      %v1702 = vadd.f32 %v1670, 1e-05
      %v1703 = vadd.f32 %v1671, 1e-05
      %v1704 = vadd.f32 %v1672, 1e-05
      %v1705 = vadd.f32 %v1673, 1e-05
      %v1706 = vadd.f32 %v1674, 1e-05
      %v1707 = vadd.f32 %v1675, 1e-05
      %v1708 = vadd.f32 %v1676, 1e-05
      %v1709 = vadd.f32 %v1677, 1e-05
      %v1710 = vadd.f32 %v1678, 1e-05
      %v1711 = vadd.f32 %v1679, 1e-05
      %v1712 = vadd.f32 %v1680, 1e-05
      %v1713 = vadd.f32 %v1681, 1e-05
      %v1714 = vadd.f32 %v1682, 1e-05
      %v1715 = vrsqrt.pop %v1683
      %v1716 = vmul.f32 %v1715, %v1683
      %v1717 = vmul.f32 %v1716, %v1715
      %v1718 = vmul.f32 0.5, %v1717
      %v1719 = vsub.f32 1.5, %v1718
      %v1720 = vmul.f32 %v1715, %v1719
      %vm1721 = vweird.f32 %v1683
      %vm1722 = vweird.f32 %v1715
      %vm1723 = vmor %vm1721, %vm1722
      %v1724 = vsel %vm1723, %v1715, %v1720
      %v1725 = vrsqrt.pop %v1684
      %v1726 = vmul.f32 %v1725, %v1684
      %v1727 = vmul.f32 %v1726, %v1725
      %v1728 = vmul.f32 0.5, %v1727
      %v1729 = vsub.f32 1.5, %v1728
      %v1730 = vmul.f32 %v1725, %v1729
      %vm1731 = vweird.f32 %v1684
      %vm1732 = vweird.f32 %v1725
      %vm1733 = vmor %vm1731, %vm1732
      %v1734 = vsel %vm1733, %v1725, %v1730
      %v1735 = vrsqrt.pop %v1685
      %v1736 = vmul.f32 %v1735, %v1685
      %v1737 = vmul.f32 %v1736, %v1735
      %v1738 = vmul.f32 0.5, %v1737
      %v1739 = vsub.f32 1.5, %v1738
      %v1740 = vmul.f32 %v1735, %v1739
      %vm1741 = vweird.f32 %v1685
      %vm1742 = vweird.f32 %v1735
      %vm1743 = vmor %vm1741, %vm1742
      %v1744 = vsel %vm1743, %v1735, %v1740
      %v1745 = vrsqrt.pop %v1686
      %v1746 = vmul.f32 %v1745, %v1686
      %v1747 = vmul.f32 %v1746, %v1745
      %v1748 = vmul.f32 0.5, %v1747
      %v1749 = vsub.f32 1.5, %v1748
      %v1750 = vmul.f32 %v1745, %v1749
      %vm1751 = vweird.f32 %v1686
      %vm1752 = vweird.f32 %v1745
      %vm1753 = vmor %vm1751, %vm1752
      %v1754 = vsel %vm1753, %v1745, %v1750
      %v1755 = vrsqrt.pop %v1687
      %v1756 = vmul.f32 %v1755, %v1687
      %v1757 = vmul.f32 %v1756, %v1755
      %v1758 = vmul.f32 0.5, %v1757
      %v1759 = vsub.f32 1.5, %v1758
      %v1760 = vmul.f32 %v1755, %v1759
      %vm1761 = vweird.f32 %v1687
      %vm1762 = vweird.f32 %v1755
      %vm1763 = vmor %vm1761, %vm1762
      %v1764 = vsel %vm1763, %v1755, %v1760
      %v1765 = vrsqrt.pop %v1688
      %v1766 = vmul.f32 %v1765, %v1688
      %v1767 = vmul.f32 %v1766, %v1765
      %v1768 = vmul.f32 0.5, %v1767
      %v1769 = vsub.f32 1.5, %v1768
      %v1770 = vmul.f32 %v1765, %v1769
      %vm1771 = vweird.f32 %v1688
      %vm1772 = vweird.f32 %v1765
      %vm1773 = vmor %vm1771, %vm1772
      %v1774 = vsel %vm1773, %v1765, %v1770
      %v1775 = vrsqrt.pop %v1689
      %v1776 = vmul.f32 %v1775, %v1689
      %v1777 = vmul.f32 %v1776, %v1775
      %v1778 = vmul.f32 0.5, %v1777
      %v1779 = vsub.f32 1.5, %v1778
      %v1780 = vmul.f32 %v1775, %v1779
      %vm1781 = vweird.f32 %v1689
      %vm1782 = vweird.f32 %v1775
      %vm1783 = vmor %vm1781, %vm1782
      %v1784 = vsel %vm1783, %v1775, %v1780
      %v1785 = vrsqrt.pop %v1690
      %v1786 = vmul.f32 %v1785, %v1690
      %v1787 = vmul.f32 %v1786, %v1785
      %v1788 = vmul.f32 0.5, %v1787
      %v1789 = vsub.f32 1.5, %v1788
      %v1790 = vmul.f32 %v1785, %v1789
      %vm1791 = vweird.f32 %v1690
      %vm1792 = vweird.f32 %v1785
      %vm1793 = vmor %vm1791, %vm1792
      %v1794 = vsel %vm1793, %v1785, %v1790
      %v1795 = vrsqrt.pop %v1691
      %v1796 = vmul.f32 %v1795, %v1691
      %v1797 = vmul.f32 %v1796, %v1795
      %v1798 = vmul.f32 0.5, %v1797
      %v1799 = vsub.f32 1.5, %v1798
      %v1800 = vmul.f32 %v1795, %v1799
      %vm1801 = vweird.f32 %v1691
      %vm1802 = vweird.f32 %v1795
      %vm1803 = vmor %vm1801, %vm1802
      %v1804 = vsel %vm1803, %v1795, %v1800
      %v1805 = vrsqrt.pop %v1692
      %v1806 = vmul.f32 %v1805, %v1692
      %v1807 = vmul.f32 %v1806, %v1805
      %v1808 = vmul.f32 0.5, %v1807
      %v1809 = vsub.f32 1.5, %v1808
      %v1810 = vmul.f32 %v1805, %v1809
      %vm1811 = vweird.f32 %v1692
      %vm1812 = vweird.f32 %v1805
      %vm1813 = vmor %vm1811, %vm1812
      %v1814 = vsel %vm1813, %v1805, %v1810
      %v1815 = vrsqrt.pop %v1693
      %v1816 = vmul.f32 %v1815, %v1693
      %v1817 = vmul.f32 %v1816, %v1815
      %v1818 = vmul.f32 0.5, %v1817
      %v1819 = vsub.f32 1.5, %v1818
      %v1820 = vmul.f32 %v1815, %v1819
      %vm1821 = vweird.f32 %v1693
      %vm1822 = vweird.f32 %v1815
      %vm1823 = vmor %vm1821, %vm1822
      %v1824 = vsel %vm1823, %v1815, %v1820
      %v1825 = vrsqrt.pop %v1694
      %v1826 = vmul.f32 %v1825, %v1694
      %v1827 = vmul.f32 %v1826, %v1825
      %v1828 = vmul.f32 0.5, %v1827
      %v1829 = vsub.f32 1.5, %v1828
      %v1830 = vmul.f32 %v1825, %v1829
      %vm1831 = vweird.f32 %v1694
      %vm1832 = vweird.f32 %v1825
      %vm1833 = vmor %vm1831, %vm1832
      %v1834 = vsel %vm1833, %v1825, %v1830
      %v1835 = vrsqrt.pop %v1695
      %v1836 = vmul.f32 %v1835, %v1695
      %v1837 = vmul.f32 %v1836, %v1835
      %v1838 = vmul.f32 0.5, %v1837
      %v1839 = vsub.f32 1.5, %v1838
      %v1840 = vmul.f32 %v1835, %v1839
      %vm1841 = vweird.f32 %v1695
      %vm1842 = vweird.f32 %v1835
      %vm1843 = vmor %vm1841, %vm1842
      %v1844 = vsel %vm1843, %v1835, %v1840
      %v1845 = vrsqrt.pop %v1696
      %v1846 = vmul.f32 %v1845, %v1696
      %v1847 = vmul.f32 %v1846, %v1845
      %v1848 = vmul.f32 0.5, %v1847
      %v1849 = vsub.f32 1.5, %v1848
      %v1850 = vmul.f32 %v1845, %v1849
      %vm1851 = vweird.f32 %v1696
      %vm1852 = vweird.f32 %v1845
      %vm1853 = vmor %vm1851, %vm1852
      %v1854 = vsel %vm1853, %v1845, %v1850
      %v1855 = vrsqrt.pop %v1697
      %v1856 = vmul.f32 %v1855, %v1697
      %v1857 = vmul.f32 %v1856, %v1855
      %v1858 = vmul.f32 0.5, %v1857
      %v1859 = vsub.f32 1.5, %v1858
      %v1860 = vmul.f32 %v1855, %v1859
      %vm1861 = vweird.f32 %v1697
      %vm1862 = vweird.f32 %v1855
      %vm1863 = vmor %vm1861, %vm1862
      %v1864 = vsel %vm1863, %v1855, %v1860
      %v1865 = vrsqrt.pop %v1698
      %v1866 = vmul.f32 %v1865, %v1698
      %v1867 = vmul.f32 %v1866, %v1865
      %v1868 = vmul.f32 0.5, %v1867
      %v1869 = vsub.f32 1.5, %v1868
      %v1870 = vmul.f32 %v1865, %v1869
      %vm1871 = vweird.f32 %v1698
      %vm1872 = vweird.f32 %v1865
      %vm1873 = vmor %vm1871, %vm1872
      %v1874 = vsel %vm1873, %v1865, %v1870
      %v1875 = vrsqrt.pop %v1699
      %v1876 = vmul.f32 %v1875, %v1699
      %v1877 = vmul.f32 %v1876, %v1875
      %v1878 = vmul.f32 0.5, %v1877
      %v1879 = vsub.f32 1.5, %v1878
      %v1880 = vmul.f32 %v1875, %v1879
      %vm1881 = vweird.f32 %v1699
      %vm1882 = vweird.f32 %v1875
      %vm1883 = vmor %vm1881, %vm1882
      %v1884 = vsel %vm1883, %v1875, %v1880
      %v1885 = vrsqrt.pop %v1700
      %v1886 = vmul.f32 %v1885, %v1700
      %v1887 = vmul.f32 %v1886, %v1885
      %v1888 = vmul.f32 0.5, %v1887
      %v1889 = vsub.f32 1.5, %v1888
      %v1890 = vmul.f32 %v1885, %v1889
      %vm1891 = vweird.f32 %v1700
      %vm1892 = vweird.f32 %v1885
      %vm1893 = vmor %vm1891, %vm1892
      %v1894 = vsel %vm1893, %v1885, %v1890
      %v1895 = vrsqrt.pop %v1701
      %v1896 = vmul.f32 %v1895, %v1701
      %v1897 = vmul.f32 %v1896, %v1895
      %v1898 = vmul.f32 0.5, %v1897
      %v1899 = vsub.f32 1.5, %v1898
      %v1900 = vmul.f32 %v1895, %v1899
      %vm1901 = vweird.f32 %v1701
      %vm1902 = vweird.f32 %v1895
      %vm1903 = vmor %vm1901, %vm1902
      %v1904 = vsel %vm1903, %v1895, %v1900
      %v1905 = vrsqrt.pop %v1702
      %v1906 = vmul.f32 %v1905, %v1702
      %v1907 = vmul.f32 %v1906, %v1905
      %v1908 = vmul.f32 0.5, %v1907
      %v1909 = vsub.f32 1.5, %v1908
      %v1910 = vmul.f32 %v1905, %v1909
      %vm1911 = vweird.f32 %v1702
      %vm1912 = vweird.f32 %v1905
      %vm1913 = vmor %vm1911, %vm1912
      %v1914 = vsel %vm1913, %v1905, %v1910
      %v1915 = vrsqrt.pop %v1703
      %v1916 = vmul.f32 %v1915, %v1703
      %v1917 = vmul.f32 %v1916, %v1915
      %v1918 = vmul.f32 0.5, %v1917
      %v1919 = vsub.f32 1.5, %v1918
      %v1920 = vmul.f32 %v1915, %v1919
      %vm1921 = vweird.f32 %v1703
      %vm1922 = vweird.f32 %v1915
      %vm1923 = vmor %vm1921, %vm1922
      %v1924 = vsel %vm1923, %v1915, %v1920
      %v1925 = vrsqrt.pop %v1704
      %v1926 = vmul.f32 %v1925, %v1704
      %v1927 = vmul.f32 %v1926, %v1925
      %v1928 = vmul.f32 0.5, %v1927
      %v1929 = vsub.f32 1.5, %v1928
      %v1930 = vmul.f32 %v1925, %v1929
      %vm1931 = vweird.f32 %v1704
      %vm1932 = vweird.f32 %v1925
      %vm1933 = vmor %vm1931, %vm1932
      %v1934 = vsel %vm1933, %v1925, %v1930
      %v1935 = vrsqrt.pop %v1705
      %v1936 = vmul.f32 %v1935, %v1705
      %v1937 = vmul.f32 %v1936, %v1935
      %v1938 = vmul.f32 0.5, %v1937
      %v1939 = vsub.f32 1.5, %v1938
      %v1940 = vmul.f32 %v1935, %v1939
      %vm1941 = vweird.f32 %v1705
      %vm1942 = vweird.f32 %v1935
      %vm1943 = vmor %vm1941, %vm1942
      %v1944 = vsel %vm1943, %v1935, %v1940
      %v1945 = vrsqrt.pop %v1706
      %v1946 = vmul.f32 %v1945, %v1706
      %v1947 = vmul.f32 %v1946, %v1945
      %v1948 = vmul.f32 0.5, %v1947
      %v1949 = vsub.f32 1.5, %v1948
      %v1950 = vmul.f32 %v1945, %v1949
      %vm1951 = vweird.f32 %v1706
      %vm1952 = vweird.f32 %v1945
      %vm1953 = vmor %vm1951, %vm1952
      %v1954 = vsel %vm1953, %v1945, %v1950
      %v1955 = vrsqrt.pop %v1707
      %v1956 = vmul.f32 %v1955, %v1707
      %v1957 = vmul.f32 %v1956, %v1955
      %v1958 = vmul.f32 0.5, %v1957
      %v1959 = vsub.f32 1.5, %v1958
      %v1960 = vmul.f32 %v1955, %v1959
      %vm1961 = vweird.f32 %v1707
      %vm1962 = vweird.f32 %v1955
      %vm1963 = vmor %vm1961, %vm1962
      %v1964 = vsel %vm1963, %v1955, %v1960
      %v1965 = vrsqrt.pop %v1708
      %v1966 = vmul.f32 %v1965, %v1708
      %v1967 = vmul.f32 %v1966, %v1965
      %v1968 = vmul.f32 0.5, %v1967
      %v1969 = vsub.f32 1.5, %v1968
      %v1970 = vmul.f32 %v1965, %v1969
      %vm1971 = vweird.f32 %v1708
      %vm1972 = vweird.f32 %v1965
      %vm1973 = vmor %vm1971, %vm1972
      %v1974 = vsel %vm1973, %v1965, %v1970
      %v1975 = vrsqrt.pop %v1709
      %v1976 = vmul.f32 %v1975, %v1709
      %v1977 = vmul.f32 %v1976, %v1975
      %v1978 = vmul.f32 0.5, %v1977
      %v1979 = vsub.f32 1.5, %v1978
      %v1980 = vmul.f32 %v1975, %v1979
      %vm1981 = vweird.f32 %v1709
      %vm1982 = vweird.f32 %v1975
      %vm1983 = vmor %vm1981, %vm1982
      %v1984 = vsel %vm1983, %v1975, %v1980
      %v1985 = vrsqrt.pop %v1710
      %v1986 = vmul.f32 %v1985, %v1710
      %v1987 = vmul.f32 %v1986, %v1985
      %v1988 = vmul.f32 0.5, %v1987
      %v1989 = vsub.f32 1.5, %v1988
      %v1990 = vmul.f32 %v1985, %v1989
      %vm1991 = vweird.f32 %v1710
      %vm1992 = vweird.f32 %v1985
      %vm1993 = vmor %vm1991, %vm1992
      %v1994 = vsel %vm1993, %v1985, %v1990
      %v1995 = vrsqrt.pop %v1711
      %v1996 = vmul.f32 %v1995, %v1711
      %v1997 = vmul.f32 %v1996, %v1995
      %v1998 = vmul.f32 0.5, %v1997
      %v1999 = vsub.f32 1.5, %v1998
      %v2000 = vmul.f32 %v1995, %v1999
      %vm2001 = vweird.f32 %v1711
      %vm2002 = vweird.f32 %v1995
      %vm2003 = vmor %vm2001, %vm2002
      %v2004 = vsel %vm2003, %v1995, %v2000
      %v2005 = vrsqrt.pop %v1712
      %v2006 = vmul.f32 %v2005, %v1712
      %v2007 = vmul.f32 %v2006, %v2005
      %v2008 = vmul.f32 0.5, %v2007
      %v2009 = vsub.f32 1.5, %v2008
      %v2010 = vmul.f32 %v2005, %v2009
      %vm2011 = vweird.f32 %v1712
      %vm2012 = vweird.f32 %v2005
      %vm2013 = vmor %vm2011, %vm2012
      %v2014 = vsel %vm2013, %v2005, %v2010
      %v2015 = vrsqrt.pop %v1713
      %v2016 = vmul.f32 %v2015, %v1713
      %v2017 = vmul.f32 %v2016, %v2015
      %v2018 = vmul.f32 0.5, %v2017
      %v2019 = vsub.f32 1.5, %v2018
      %v2020 = vmul.f32 %v2015, %v2019
      %vm2021 = vweird.f32 %v1713
      %vm2022 = vweird.f32 %v2015
      %vm2023 = vmor %vm2021, %vm2022
      %v2024 = vsel %vm2023, %v2015, %v2020
      %v2025 = vrsqrt.pop %v1714
      %v2026 = vmul.f32 %v2025, %v1714
      %v2027 = vmul.f32 %v2026, %v2025
      %v2028 = vmul.f32 0.5, %v2027
      %v2029 = vsub.f32 1.5, %v2028
      %v2030 = vmul.f32 %v2025, %v2029
      %vm2031 = vweird.f32 %v1714
      %vm2032 = vweird.f32 %v2025
      %vm2033 = vmor %vm2031, %vm2032
      %v2034 = vsel %vm2033, %v2025, %v2030
      %v2035 = vmul.f32 %v1491, %v1724
      %v2036 = vmul.f32 %v1492, %v1734
      %v2037 = vmul.f32 %v1493, %v1744
      %v2038 = vmul.f32 %v1494, %v1754
      %v2039 = vmul.f32 %v1495, %v1764
      %v2040 = vmul.f32 %v1496, %v1774
      %v2041 = vmul.f32 %v1497, %v1784
      %v2042 = vmul.f32 %v1498, %v1794
      %v2043 = vmul.f32 %v1499, %v1804
      %v2044 = vmul.f32 %v1500, %v1814
      %v2045 = vmul.f32 %v1501, %v1824
      %v2046 = vmul.f32 %v1502, %v1834
      %v2047 = vmul.f32 %v1503, %v1844
      %v2048 = vmul.f32 %v1504, %v1854
      %v2049 = vmul.f32 %v1505, %v1864
      %v2050 = vmul.f32 %v1506, %v1874
      %v2051 = vmul.f32 %v1507, %v1884
      %v2052 = vmul.f32 %v1508, %v1894
      %v2053 = vmul.f32 %v1509, %v1904
      %v2054 = vmul.f32 %v1510, %v1914
      %v2055 = vmul.f32 %v1511, %v1924
      %v2056 = vmul.f32 %v1512, %v1934
      %v2057 = vmul.f32 %v1513, %v1944
      %v2058 = vmul.f32 %v1514, %v1954
      %v2059 = vmul.f32 %v1515, %v1964
      %v2060 = vmul.f32 %v1516, %v1974
      %v2061 = vmul.f32 %v1517, %v1984
      %v2062 = vmul.f32 %v1518, %v1994
      %v2063 = vmul.f32 %v1519, %v2004
      %v2064 = vmul.f32 %v1520, %v2014
      %v2065 = vmul.f32 %v1521, %v2024
      %v2066 = vmul.f32 %v1522, %v2034
      %v2067 = vmul.f32 %v2035, %v1262
      %v2068 = vmul.f32 %v2036, %v1262
      %v2069 = vmul.f32 %v2037, %v1262
      %v2070 = vmul.f32 %v2038, %v1262
      %v2071 = vmul.f32 %v2039, %v1262
      %v2072 = vmul.f32 %v2040, %v1262
      %v2073 = vmul.f32 %v2041, %v1262
      %v2074 = vmul.f32 %v2042, %v1262
      %v2075 = vmul.f32 %v2043, %v1262
      %v2076 = vmul.f32 %v2044, %v1262
      %v2077 = vmul.f32 %v2045, %v1262
      %v2078 = vmul.f32 %v2046, %v1262
      %v2079 = vmul.f32 %v2047, %v1262
      %v2080 = vmul.f32 %v2048, %v1262
      %v2081 = vmul.f32 %v2049, %v1262
      %v2082 = vmul.f32 %v2050, %v1262
      %v2083 = vmul.f32 %v2051, %v1262
      %v2084 = vmul.f32 %v2052, %v1262
      %v2085 = vmul.f32 %v2053, %v1262
      %v2086 = vmul.f32 %v2054, %v1262
      %v2087 = vmul.f32 %v2055, %v1262
      %v2088 = vmul.f32 %v2056, %v1262
      %v2089 = vmul.f32 %v2057, %v1262
      %v2090 = vmul.f32 %v2058, %v1262
      %v2091 = vmul.f32 %v2059, %v1262
      %v2092 = vmul.f32 %v2060, %v1262
      %v2093 = vmul.f32 %v2061, %v1262
      %v2094 = vmul.f32 %v2062, %v1262
      %v2095 = vmul.f32 %v2063, %v1262
      %v2096 = vmul.f32 %v2064, %v1262
      %v2097 = vmul.f32 %v2065, %v1262
      %v2098 = vmul.f32 %v2066, %v1262
      %v2099 = vadd.f32 %v2067, %v1297
      %v2100 = vadd.f32 %v2068, %v1297
      %v2101 = vadd.f32 %v2069, %v1297
      %v2102 = vadd.f32 %v2070, %v1297
      %v2103 = vadd.f32 %v2071, %v1297
      %v2104 = vadd.f32 %v2072, %v1297
      %v2105 = vadd.f32 %v2073, %v1297
      %v2106 = vadd.f32 %v2074, %v1297
      %v2107 = vadd.f32 %v2075, %v1297
      %v2108 = vadd.f32 %v2076, %v1297
      %v2109 = vadd.f32 %v2077, %v1297
      %v2110 = vadd.f32 %v2078, %v1297
      %v2111 = vadd.f32 %v2079, %v1297
      %v2112 = vadd.f32 %v2080, %v1297
      %v2113 = vadd.f32 %v2081, %v1297
      %v2114 = vadd.f32 %v2082, %v1297
      %v2115 = vadd.f32 %v2083, %v1297
      %v2116 = vadd.f32 %v2084, %v1297
      %v2117 = vadd.f32 %v2085, %v1297
      %v2118 = vadd.f32 %v2086, %v1297
      %v2119 = vadd.f32 %v2087, %v1297
      %v2120 = vadd.f32 %v2088, %v1297
      %v2121 = vadd.f32 %v2089, %v1297
      %v2122 = vadd.f32 %v2090, %v1297
      %v2123 = vadd.f32 %v2091, %v1297
      %v2124 = vadd.f32 %v2092, %v1297
      %v2125 = vadd.f32 %v2093, %v1297
      %v2126 = vadd.f32 %v2094, %v1297
      %v2127 = vadd.f32 %v2095, %v1297
      %v2128 = vadd.f32 %v2096, %v1297
      %v2129 = vadd.f32 %v2097, %v1297
      %v2130 = vadd.f32 %v2098, %v1297
      %v2131 = vld [vmem:[%s495] sm:$0xff]
      %v2132 = vld [vmem:[%s495 + $0x8] sm:$0xff]
      %v2133 = vld [vmem:[%s495 + $0x10] sm:$0xff]
      %v2134 = vld [vmem:[%s495 + $0x18] sm:$0xff]
      %v2135 = vld [vmem:[%s495 + $0x20] sm:$0xff]
      %v2136 = vld [vmem:[%s495 + $0x28] sm:$0xff]
      %v2137 = vld [vmem:[%s495 + $0x30] sm:$0xff]
      %v2138 = vld [vmem:[%s495 + $0x38] sm:$0xff]
      %v2139 = vld [vmem:[%s495 + $0x40] sm:$0xff]
      %v2140 = vld [vmem:[%s495 + $0x48] sm:$0xff]
      %v2141 = vld [vmem:[%s495 + $0x50] sm:$0xff]
      %v2142 = vld [vmem:[%s495 + $0x58] sm:$0xff]
      %v2143 = vld [vmem:[%s495 + $0x60] sm:$0xff]
      %v2144 = vld [vmem:[%s495 + $0x68] sm:$0xff]
      %v2145 = vld [vmem:[%s495 + $0x70] sm:$0xff]
      %v2146 = vld [vmem:[%s495 + $0x78] sm:$0xff]
      %v2147 = vld [vmem:[%s495 + $0x80] sm:$0xff]
      %v2148 = vld [vmem:[%s495 + $0x88] sm:$0xff]
      %v2149 = vld [vmem:[%s495 + $0x90] sm:$0xff]
      %v2150 = vld [vmem:[%s495 + $0x98] sm:$0xff]
      %v2151 = vld [vmem:[%s495 + $0xa0] sm:$0xff]
      %v2152 = vld [vmem:[%s495 + $0xa8] sm:$0xff]
      %v2153 = vld [vmem:[%s495 + $0xb0] sm:$0xff]
      %v2154 = vld [vmem:[%s495 + $0xb8] sm:$0xff]
      %v2155 = vld [vmem:[%s495 + $0xc0] sm:$0xff]
      %v2156 = vld [vmem:[%s495 + $0xc8] sm:$0xff]
      %v2157 = vld [vmem:[%s495 + $0xd0] sm:$0xff]
      %v2158 = vld [vmem:[%s495 + $0xd8] sm:$0xff]
      %v2159 = vld [vmem:[%s495 + $0xe0] sm:$0xff]
      %v2160 = vld [vmem:[%s495 + $0xe8] sm:$0xff]
      %v2161 = vld [vmem:[%s495 + $0xf0] sm:$0xff]
      %v2162 = vld [vmem:[%s495 + $0xf8] sm:$0xff]
      %v2163 = vsel %vm549, %v2131, 0.0
      %2164 = vadd.xlane.f32.xlu0 %v2163
      %v2165 = vpop.xlane.xlu0 %2164
      %v2166 = vsel %vm549, %v2132, 0.0
      %2167 = vadd.xlane.f32.xlu0 %v2166
      %v2168 = vpop.xlane.xlu0 %2167
      %v2169 = vsel %vm549, %v2133, 0.0
      %2170 = vadd.xlane.f32.xlu0 %v2169
      %v2171 = vpop.xlane.xlu0 %2170
      %v2172 = vsel %vm549, %v2134, 0.0
      %2173 = vadd.xlane.f32.xlu0 %v2172
      %v2174 = vpop.xlane.xlu0 %2173
      %v2175 = vsel %vm549, %v2135, 0.0
      %2176 = vadd.xlane.f32.xlu0 %v2175
      %v2177 = vpop.xlane.xlu0 %2176
      %v2178 = vsel %vm549, %v2136, 0.0
      %2179 = vadd.xlane.f32.xlu0 %v2178
      %v2180 = vpop.xlane.xlu0 %2179
      %v2181 = vsel %vm549, %v2137, 0.0
      %2182 = vadd.xlane.f32.xlu0 %v2181
      %v2183 = vpop.xlane.xlu0 %2182
      %v2184 = vsel %vm549, %v2138, 0.0
      %2185 = vadd.xlane.f32.xlu0 %v2184
      %v2186 = vpop.xlane.xlu0 %2185
      %v2187 = vsel %vm549, %v2139, 0.0
      %2188 = vadd.xlane.f32.xlu0 %v2187
      %v2189 = vpop.xlane.xlu0 %2188
      %v2190 = vsel %vm549, %v2140, 0.0
      %2191 = vadd.xlane.f32.xlu0 %v2190
      %v2192 = vpop.xlane.xlu0 %2191
      %v2193 = vsel %vm549, %v2141, 0.0
      %2194 = vadd.xlane.f32.xlu0 %v2193
      %v2195 = vpop.xlane.xlu0 %2194
      %v2196 = vsel %vm549, %v2142, 0.0
      %2197 = vadd.xlane.f32.xlu0 %v2196
      %v2198 = vpop.xlane.xlu0 %2197
      %v2199 = vsel %vm549, %v2143, 0.0
      %2200 = vadd.xlane.f32.xlu0 %v2199
      %v2201 = vpop.xlane.xlu0 %2200
      %v2202 = vsel %vm549, %v2144, 0.0
      %2203 = vadd.xlane.f32.xlu0 %v2202
      %v2204 = vpop.xlane.xlu0 %2203
      %v2205 = vsel %vm549, %v2145, 0.0
      %2206 = vadd.xlane.f32.xlu0 %v2205
      %v2207 = vpop.xlane.xlu0 %2206
      %v2208 = vsel %vm549, %v2146, 0.0
      %2209 = vadd.xlane.f32.xlu0 %v2208
      %v2210 = vpop.xlane.xlu0 %2209
      %v2211 = vsel %vm549, %v2147, 0.0
      %2212 = vadd.xlane.f32.xlu0 %v2211
      %v2213 = vpop.xlane.xlu0 %2212
      %v2214 = vsel %vm549, %v2148, 0.0
      %2215 = vadd.xlane.f32.xlu0 %v2214
      %v2216 = vpop.xlane.xlu0 %2215
      %v2217 = vsel %vm549, %v2149, 0.0
      %2218 = vadd.xlane.f32.xlu0 %v2217
      %v2219 = vpop.xlane.xlu0 %2218
      %v2220 = vsel %vm549, %v2150, 0.0
      %2221 = vadd.xlane.f32.xlu0 %v2220
      %v2222 = vpop.xlane.xlu0 %2221
      %v2223 = vsel %vm549, %v2151, 0.0
      %2224 = vadd.xlane.f32.xlu0 %v2223
      %v2225 = vpop.xlane.xlu0 %2224
      %v2226 = vsel %vm549, %v2152, 0.0
      %2227 = vadd.xlane.f32.xlu0 %v2226
      %v2228 = vpop.xlane.xlu0 %2227
      %v2229 = vsel %vm549, %v2153, 0.0
      %2230 = vadd.xlane.f32.xlu0 %v2229
      %v2231 = vpop.xlane.xlu0 %2230
      %v2232 = vsel %vm549, %v2154, 0.0
      %2233 = vadd.xlane.f32.xlu0 %v2232
      %v2234 = vpop.xlane.xlu0 %2233
      %v2235 = vsel %vm549, %v2155, 0.0
      %2236 = vadd.xlane.f32.xlu0 %v2235
      %v2237 = vpop.xlane.xlu0 %2236
      %v2238 = vsel %vm549, %v2156, 0.0
      %2239 = vadd.xlane.f32.xlu0 %v2238
      %v2240 = vpop.xlane.xlu0 %2239
      %v2241 = vsel %vm549, %v2157, 0.0
      %2242 = vadd.xlane.f32.xlu0 %v2241
      %v2243 = vpop.xlane.xlu0 %2242
      %v2244 = vsel %vm549, %v2158, 0.0
      %2245 = vadd.xlane.f32.xlu0 %v2244
      %v2246 = vpop.xlane.xlu0 %2245
      %v2247 = vsel %vm549, %v2159, 0.0
      %2248 = vadd.xlane.f32.xlu0 %v2247
      %v2249 = vpop.xlane.xlu0 %2248
      %v2250 = vsel %vm549, %v2160, 0.0
      %2251 = vadd.xlane.f32.xlu0 %v2250
      %v2252 = vpop.xlane.xlu0 %2251
      %v2253 = vsel %vm549, %v2161, 0.0
      %2254 = vadd.xlane.f32.xlu0 %v2253
      %v2255 = vpop.xlane.xlu0 %2254
      %v2256 = vsel %vm549, %v2162, 0.0
      %2257 = vadd.xlane.f32.xlu0 %v2256
      %v2258 = vpop.xlane.xlu0 %2257
      %v2259 = vmul.f32 %v2165, %v652
      %v2260 = vmul.f32 %v2168, %v652
      %v2261 = vmul.f32 %v2171, %v652
      %v2262 = vmul.f32 %v2174, %v652
      %v2263 = vmul.f32 %v2177, %v652
      %v2264 = vmul.f32 %v2180, %v652
      %v2265 = vmul.f32 %v2183, %v652
      %v2266 = vmul.f32 %v2186, %v652
      %v2267 = vmul.f32 %v2189, %v652
      %v2268 = vmul.f32 %v2192, %v652
      %v2269 = vmul.f32 %v2195, %v652
      %v2270 = vmul.f32 %v2198, %v652
      %v2271 = vmul.f32 %v2201, %v652
      %v2272 = vmul.f32 %v2204, %v652
      %v2273 = vmul.f32 %v2207, %v652
      %v2274 = vmul.f32 %v2210, %v652
      %v2275 = vmul.f32 %v2213, %v652
      %v2276 = vmul.f32 %v2216, %v652
      %v2277 = vmul.f32 %v2219, %v652
      %v2278 = vmul.f32 %v2222, %v652
      %v2279 = vmul.f32 %v2225, %v652
      %v2280 = vmul.f32 %v2228, %v652
      %v2281 = vmul.f32 %v2231, %v652
      %v2282 = vmul.f32 %v2234, %v652
      %v2283 = vmul.f32 %v2237, %v652
      %v2284 = vmul.f32 %v2240, %v652
      %v2285 = vmul.f32 %v2243, %v652
      %v2286 = vmul.f32 %v2246, %v652
      %v2287 = vmul.f32 %v2249, %v652
      %v2288 = vmul.f32 %v2252, %v652
      %v2289 = vmul.f32 %v2255, %v652
      %v2290 = vmul.f32 %v2258, %v652
      %v2291 = vsub.f32 %v2131, %v2259
      %v2292 = vsub.f32 %v2132, %v2260
      %v2293 = vsub.f32 %v2133, %v2261
      %v2294 = vsub.f32 %v2134, %v2262
      %v2295 = vsub.f32 %v2135, %v2263
      %v2296 = vsub.f32 %v2136, %v2264
      %v2297 = vsub.f32 %v2137, %v2265
      %v2298 = vsub.f32 %v2138, %v2266
      %v2299 = vsub.f32 %v2139, %v2267
      %v2300 = vsub.f32 %v2140, %v2268
      %v2301 = vsub.f32 %v2141, %v2269
      %v2302 = vsub.f32 %v2142, %v2270
      %v2303 = vsub.f32 %v2143, %v2271
      %v2304 = vsub.f32 %v2144, %v2272
      %v2305 = vsub.f32 %v2145, %v2273
      %v2306 = vsub.f32 %v2146, %v2274
      %v2307 = vsub.f32 %v2147, %v2275
      %v2308 = vsub.f32 %v2148, %v2276
      %v2309 = vsub.f32 %v2149, %v2277
      %v2310 = vsub.f32 %v2150, %v2278
      %v2311 = vsub.f32 %v2151, %v2279
      %v2312 = vsub.f32 %v2152, %v2280
      %v2313 = vsub.f32 %v2153, %v2281
      %v2314 = vsub.f32 %v2154, %v2282
      %v2315 = vsub.f32 %v2155, %v2283
      %v2316 = vsub.f32 %v2156, %v2284
      %v2317 = vsub.f32 %v2157, %v2285
      %v2318 = vsub.f32 %v2158, %v2286
      %v2319 = vsub.f32 %v2159, %v2287
      %v2320 = vsub.f32 %v2160, %v2288
      %v2321 = vsub.f32 %v2161, %v2289
      %v2322 = vsub.f32 %v2162, %v2290
      %v2323 = vmul.f32 %v2291, %v2291
      %v2324 = vmul.f32 %v2292, %v2292
      %v2325 = vmul.f32 %v2293, %v2293
      %v2326 = vmul.f32 %v2294, %v2294
      %v2327 = vmul.f32 %v2295, %v2295
      %v2328 = vmul.f32 %v2296, %v2296
      %v2329 = vmul.f32 %v2297, %v2297
      %v2330 = vmul.f32 %v2298, %v2298
      %v2331 = vmul.f32 %v2299, %v2299
      %v2332 = vmul.f32 %v2300, %v2300
      %v2333 = vmul.f32 %v2301, %v2301
      %v2334 = vmul.f32 %v2302, %v2302
      %v2335 = vmul.f32 %v2303, %v2303
      %v2336 = vmul.f32 %v2304, %v2304
      %v2337 = vmul.f32 %v2305, %v2305
      %v2338 = vmul.f32 %v2306, %v2306
      %v2339 = vmul.f32 %v2307, %v2307
      %v2340 = vmul.f32 %v2308, %v2308
      %v2341 = vmul.f32 %v2309, %v2309
      %v2342 = vmul.f32 %v2310, %v2310
      %v2343 = vmul.f32 %v2311, %v2311
      %v2344 = vmul.f32 %v2312, %v2312
      %v2345 = vmul.f32 %v2313, %v2313
      %v2346 = vmul.f32 %v2314, %v2314
      %v2347 = vmul.f32 %v2315, %v2315
      %v2348 = vmul.f32 %v2316, %v2316
      %v2349 = vmul.f32 %v2317, %v2317
      %v2350 = vmul.f32 %v2318, %v2318
      %v2351 = vmul.f32 %v2319, %v2319
      %v2352 = vmul.f32 %v2320, %v2320
      %v2353 = vmul.f32 %v2321, %v2321
      %v2354 = vmul.f32 %v2322, %v2322
      %v2355 = vsel %vm549, %v2323, 0.0
      %2356 = vadd.xlane.f32.xlu0 %v2355
      %v2357 = vpop.xlane.xlu0 %2356
      %v2358 = vsel %vm549, %v2324, 0.0
      %2359 = vadd.xlane.f32.xlu0 %v2358
      %v2360 = vpop.xlane.xlu0 %2359
      %v2361 = vsel %vm549, %v2325, 0.0
      %2362 = vadd.xlane.f32.xlu0 %v2361
      %v2363 = vpop.xlane.xlu0 %2362
      %v2364 = vsel %vm549, %v2326, 0.0
      %2365 = vadd.xlane.f32.xlu0 %v2364
      %v2366 = vpop.xlane.xlu0 %2365
      %v2367 = vsel %vm549, %v2327, 0.0
      %2368 = vadd.xlane.f32.xlu0 %v2367
      %v2369 = vpop.xlane.xlu0 %2368
      %v2370 = vsel %vm549, %v2328, 0.0
      %2371 = vadd.xlane.f32.xlu0 %v2370
      %v2372 = vpop.xlane.xlu0 %2371
      %v2373 = vsel %vm549, %v2329, 0.0
      %2374 = vadd.xlane.f32.xlu0 %v2373
      %v2375 = vpop.xlane.xlu0 %2374
      %v2376 = vsel %vm549, %v2330, 0.0
      %2377 = vadd.xlane.f32.xlu0 %v2376
      %v2378 = vpop.xlane.xlu0 %2377
      %v2379 = vsel %vm549, %v2331, 0.0
      %2380 = vadd.xlane.f32.xlu0 %v2379
      %v2381 = vpop.xlane.xlu0 %2380
      %v2382 = vsel %vm549, %v2332, 0.0
      %2383 = vadd.xlane.f32.xlu0 %v2382
      %v2384 = vpop.xlane.xlu0 %2383
      %v2385 = vsel %vm549, %v2333, 0.0
      %2386 = vadd.xlane.f32.xlu0 %v2385
      %v2387 = vpop.xlane.xlu0 %2386
      %v2388 = vsel %vm549, %v2334, 0.0
      %2389 = vadd.xlane.f32.xlu0 %v2388
      %v2390 = vpop.xlane.xlu0 %2389
      %v2391 = vsel %vm549, %v2335, 0.0
      %2392 = vadd.xlane.f32.xlu0 %v2391
      %v2393 = vpop.xlane.xlu0 %2392
      %v2394 = vsel %vm549, %v2336, 0.0
      %2395 = vadd.xlane.f32.xlu0 %v2394
      %v2396 = vpop.xlane.xlu0 %2395
      %v2397 = vsel %vm549, %v2337, 0.0
      %2398 = vadd.xlane.f32.xlu0 %v2397
      %v2399 = vpop.xlane.xlu0 %2398
      %v2400 = vsel %vm549, %v2338, 0.0
      %2401 = vadd.xlane.f32.xlu0 %v2400
      %v2402 = vpop.xlane.xlu0 %2401
      %v2403 = vsel %vm549, %v2339, 0.0
      %2404 = vadd.xlane.f32.xlu0 %v2403
      %v2405 = vpop.xlane.xlu0 %2404
      %v2406 = vsel %vm549, %v2340, 0.0
      %2407 = vadd.xlane.f32.xlu0 %v2406
      %v2408 = vpop.xlane.xlu0 %2407
      %v2409 = vsel %vm549, %v2341, 0.0
      %2410 = vadd.xlane.f32.xlu0 %v2409
      %v2411 = vpop.xlane.xlu0 %2410
      %v2412 = vsel %vm549, %v2342, 0.0
      %2413 = vadd.xlane.f32.xlu0 %v2412
      %v2414 = vpop.xlane.xlu0 %2413
      %v2415 = vsel %vm549, %v2343, 0.0
      %2416 = vadd.xlane.f32.xlu0 %v2415
      %v2417 = vpop.xlane.xlu0 %2416
      %v2418 = vsel %vm549, %v2344, 0.0
      %2419 = vadd.xlane.f32.xlu0 %v2418
      %v2420 = vpop.xlane.xlu0 %2419
      %v2421 = vsel %vm549, %v2345, 0.0
      %2422 = vadd.xlane.f32.xlu0 %v2421
      %v2423 = vpop.xlane.xlu0 %2422
      %v2424 = vsel %vm549, %v2346, 0.0
      %2425 = vadd.xlane.f32.xlu0 %v2424
      %v2426 = vpop.xlane.xlu0 %2425
      %v2427 = vsel %vm549, %v2347, 0.0
      %2428 = vadd.xlane.f32.xlu0 %v2427
      %v2429 = vpop.xlane.xlu0 %2428
      %v2430 = vsel %vm549, %v2348, 0.0
      %2431 = vadd.xlane.f32.xlu0 %v2430
      %v2432 = vpop.xlane.xlu0 %2431
      %v2433 = vsel %vm549, %v2349, 0.0
      %2434 = vadd.xlane.f32.xlu0 %v2433
      %v2435 = vpop.xlane.xlu0 %2434
      %v2436 = vsel %vm549, %v2350, 0.0
      %2437 = vadd.xlane.f32.xlu0 %v2436
      %v2438 = vpop.xlane.xlu0 %2437
      %v2439 = vsel %vm549, %v2351, 0.0
      %2440 = vadd.xlane.f32.xlu0 %v2439
      %v2441 = vpop.xlane.xlu0 %2440
      %v2442 = vsel %vm549, %v2352, 0.0
      %2443 = vadd.xlane.f32.xlu0 %v2442
      %v2444 = vpop.xlane.xlu0 %2443
      %v2445 = vsel %vm549, %v2353, 0.0
      %2446 = vadd.xlane.f32.xlu0 %v2445
      %v2447 = vpop.xlane.xlu0 %2446
      %v2448 = vsel %vm549, %v2354, 0.0
      %2449 = vadd.xlane.f32.xlu0 %v2448
      %v2450 = vpop.xlane.xlu0 %2449
      %v2451 = vmul.f32 %v2357, %v652
      %v2452 = vmul.f32 %v2360, %v652
      %v2453 = vmul.f32 %v2363, %v652
      %v2454 = vmul.f32 %v2366, %v652
      %v2455 = vmul.f32 %v2369, %v652
      %v2456 = vmul.f32 %v2372, %v652
      %v2457 = vmul.f32 %v2375, %v652
      %v2458 = vmul.f32 %v2378, %v652
      %v2459 = vmul.f32 %v2381, %v652
      %v2460 = vmul.f32 %v2384, %v652
      %v2461 = vmul.f32 %v2387, %v652
      %v2462 = vmul.f32 %v2390, %v652
      %v2463 = vmul.f32 %v2393, %v652
      %v2464 = vmul.f32 %v2396, %v652
      %v2465 = vmul.f32 %v2399, %v652
      %v2466 = vmul.f32 %v2402, %v652
      %v2467 = vmul.f32 %v2405, %v652
      %v2468 = vmul.f32 %v2408, %v652
      %v2469 = vmul.f32 %v2411, %v652
      %v2470 = vmul.f32 %v2414, %v652
      %v2471 = vmul.f32 %v2417, %v652
      %v2472 = vmul.f32 %v2420, %v652
      %v2473 = vmul.f32 %v2423, %v652
      %v2474 = vmul.f32 %v2426, %v652
      %v2475 = vmul.f32 %v2429, %v652
      %v2476 = vmul.f32 %v2432, %v652
      %v2477 = vmul.f32 %v2435, %v652
      %v2478 = vmul.f32 %v2438, %v652
      %v2479 = vmul.f32 %v2441, %v652
      %v2480 = vmul.f32 %v2444, %v652
      %v2481 = vmul.f32 %v2447, %v652
      %v2482 = vmul.f32 %v2450, %v652
      %v2483 = vadd.f32 %v2451, 1e-05
      %v2484 = vadd.f32 %v2452, 1e-05
      %v2485 = vadd.f32 %v2453, 1e-05
      %v2486 = vadd.f32 %v2454, 1e-05
      %v2487 = vadd.f32 %v2455, 1e-05
      %v2488 = vadd.f32 %v2456, 1e-05
      %v2489 = vadd.f32 %v2457, 1e-05
      %v2490 = vadd.f32 %v2458, 1e-05
      %v2491 = vadd.f32 %v2459, 1e-05
      %v2492 = vadd.f32 %v2460, 1e-05
      %v2493 = vadd.f32 %v2461, 1e-05
      %v2494 = vadd.f32 %v2462, 1e-05
      %v2495 = vadd.f32 %v2463, 1e-05
      %v2496 = vadd.f32 %v2464, 1e-05
      %v2497 = vadd.f32 %v2465, 1e-05
      %v2498 = vadd.f32 %v2466, 1e-05
      %v2499 = vadd.f32 %v2467, 1e-05
      %v2500 = vadd.f32 %v2468, 1e-05
      %v2501 = vadd.f32 %v2469, 1e-05
      %v2502 = vadd.f32 %v2470, 1e-05
      %v2503 = vadd.f32 %v2471, 1e-05
      %v2504 = vadd.f32 %v2472, 1e-05
      %v2505 = vadd.f32 %v2473, 1e-05
      %v2506 = vadd.f32 %v2474, 1e-05
      %v2507 = vadd.f32 %v2475, 1e-05
      %v2508 = vadd.f32 %v2476, 1e-05
      %v2509 = vadd.f32 %v2477, 1e-05
      %v2510 = vadd.f32 %v2478, 1e-05
      %v2511 = vadd.f32 %v2479, 1e-05
      %v2512 = vadd.f32 %v2480, 1e-05
      %v2513 = vadd.f32 %v2481, 1e-05
      %v2514 = vadd.f32 %v2482, 1e-05
      %v2515 = vrsqrt.pop %v2483
      %v2516 = vmul.f32 %v2515, %v2483
      %v2517 = vmul.f32 %v2516, %v2515
      %v2518 = vmul.f32 0.5, %v2517
      %v2519 = vsub.f32 1.5, %v2518
      %v2520 = vmul.f32 %v2515, %v2519
      %vm2521 = vweird.f32 %v2483
      %vm2522 = vweird.f32 %v2515
      %vm2523 = vmor %vm2521, %vm2522
      %v2524 = vsel %vm2523, %v2515, %v2520
      %v2525 = vrsqrt.pop %v2484
      %v2526 = vmul.f32 %v2525, %v2484
      %v2527 = vmul.f32 %v2526, %v2525
      %v2528 = vmul.f32 0.5, %v2527
      %v2529 = vsub.f32 1.5, %v2528
      %v2530 = vmul.f32 %v2525, %v2529
      %vm2531 = vweird.f32 %v2484
      %vm2532 = vweird.f32 %v2525
      %vm2533 = vmor %vm2531, %vm2532
      %v2534 = vsel %vm2533, %v2525, %v2530
      %v2535 = vrsqrt.pop %v2485
      %v2536 = vmul.f32 %v2535, %v2485
      %v2537 = vmul.f32 %v2536, %v2535
      %v2538 = vmul.f32 0.5, %v2537
      %v2539 = vsub.f32 1.5, %v2538
      %v2540 = vmul.f32 %v2535, %v2539
      %vm2541 = vweird.f32 %v2485
      %vm2542 = vweird.f32 %v2535
      %vm2543 = vmor %vm2541, %vm2542
      %v2544 = vsel %vm2543, %v2535, %v2540
      %v2545 = vrsqrt.pop %v2486
      %v2546 = vmul.f32 %v2545, %v2486
      %v2547 = vmul.f32 %v2546, %v2545
      %v2548 = vmul.f32 0.5, %v2547
      %v2549 = vsub.f32 1.5, %v2548
      %v2550 = vmul.f32 %v2545, %v2549
      %vm2551 = vweird.f32 %v2486
      %vm2552 = vweird.f32 %v2545
      %vm2553 = vmor %vm2551, %vm2552
      %v2554 = vsel %vm2553, %v2545, %v2550
      %v2555 = vrsqrt.pop %v2487
      %v2556 = vmul.f32 %v2555, %v2487
      %v2557 = vmul.f32 %v2556, %v2555
      %v2558 = vmul.f32 0.5, %v2557
      %v2559 = vsub.f32 1.5, %v2558
      %v2560 = vmul.f32 %v2555, %v2559
      %vm2561 = vweird.f32 %v2487
      %vm2562 = vweird.f32 %v2555
      %vm2563 = vmor %vm2561, %vm2562
      %v2564 = vsel %vm2563, %v2555, %v2560
      %v2565 = vrsqrt.pop %v2488
      %v2566 = vmul.f32 %v2565, %v2488
      %v2567 = vmul.f32 %v2566, %v2565
      %v2568 = vmul.f32 0.5, %v2567
      %v2569 = vsub.f32 1.5, %v2568
      %v2570 = vmul.f32 %v2565, %v2569
      %vm2571 = vweird.f32 %v2488
      %vm2572 = vweird.f32 %v2565
      %vm2573 = vmor %vm2571, %vm2572
      %v2574 = vsel %vm2573, %v2565, %v2570
      %v2575 = vrsqrt.pop %v2489
      %v2576 = vmul.f32 %v2575, %v2489
      %v2577 = vmul.f32 %v2576, %v2575
      %v2578 = vmul.f32 0.5, %v2577
      %v2579 = vsub.f32 1.5, %v2578
      %v2580 = vmul.f32 %v2575, %v2579
      %vm2581 = vweird.f32 %v2489
      %vm2582 = vweird.f32 %v2575
      %vm2583 = vmor %vm2581, %vm2582
      %v2584 = vsel %vm2583, %v2575, %v2580
      %v2585 = vrsqrt.pop %v2490
      %v2586 = vmul.f32 %v2585, %v2490
      %v2587 = vmul.f32 %v2586, %v2585
      %v2588 = vmul.f32 0.5, %v2587
      %v2589 = vsub.f32 1.5, %v2588
      %v2590 = vmul.f32 %v2585, %v2589
      %vm2591 = vweird.f32 %v2490
      %vm2592 = vweird.f32 %v2585
      %vm2593 = vmor %vm2591, %vm2592
      %v2594 = vsel %vm2593, %v2585, %v2590
      %v2595 = vrsqrt.pop %v2491
      %v2596 = vmul.f32 %v2595, %v2491
      %v2597 = vmul.f32 %v2596, %v2595
      %v2598 = vmul.f32 0.5, %v2597
      %v2599 = vsub.f32 1.5, %v2598
      %v2600 = vmul.f32 %v2595, %v2599
      %vm2601 = vweird.f32 %v2491
      %vm2602 = vweird.f32 %v2595
      %vm2603 = vmor %vm2601, %vm2602
      %v2604 = vsel %vm2603, %v2595, %v2600
      %v2605 = vrsqrt.pop %v2492
      %v2606 = vmul.f32 %v2605, %v2492
      %v2607 = vmul.f32 %v2606, %v2605
      %v2608 = vmul.f32 0.5, %v2607
      %v2609 = vsub.f32 1.5, %v2608
      %v2610 = vmul.f32 %v2605, %v2609
      %vm2611 = vweird.f32 %v2492
      %vm2612 = vweird.f32 %v2605
      %vm2613 = vmor %vm2611, %vm2612
      %v2614 = vsel %vm2613, %v2605, %v2610
      %v2615 = vrsqrt.pop %v2493
      %v2616 = vmul.f32 %v2615, %v2493
      %v2617 = vmul.f32 %v2616, %v2615
      %v2618 = vmul.f32 0.5, %v2617
      %v2619 = vsub.f32 1.5, %v2618
      %v2620 = vmul.f32 %v2615, %v2619
      %vm2621 = vweird.f32 %v2493
      %vm2622 = vweird.f32 %v2615
      %vm2623 = vmor %vm2621, %vm2622
      %v2624 = vsel %vm2623, %v2615, %v2620
      %v2625 = vrsqrt.pop %v2494
      %v2626 = vmul.f32 %v2625, %v2494
      %v2627 = vmul.f32 %v2626, %v2625
      %v2628 = vmul.f32 0.5, %v2627
      %v2629 = vsub.f32 1.5, %v2628
      %v2630 = vmul.f32 %v2625, %v2629
      %vm2631 = vweird.f32 %v2494
      %vm2632 = vweird.f32 %v2625
      %vm2633 = vmor %vm2631, %vm2632
      %v2634 = vsel %vm2633, %v2625, %v2630
      %v2635 = vrsqrt.pop %v2495
      %v2636 = vmul.f32 %v2635, %v2495
      %v2637 = vmul.f32 %v2636, %v2635
      %v2638 = vmul.f32 0.5, %v2637
      %v2639 = vsub.f32 1.5, %v2638
      %v2640 = vmul.f32 %v2635, %v2639
      %vm2641 = vweird.f32 %v2495
      %vm2642 = vweird.f32 %v2635
      %vm2643 = vmor %vm2641, %vm2642
      %v2644 = vsel %vm2643, %v2635, %v2640
      %v2645 = vrsqrt.pop %v2496
      %v2646 = vmul.f32 %v2645, %v2496
      %v2647 = vmul.f32 %v2646, %v2645
      %v2648 = vmul.f32 0.5, %v2647
      %v2649 = vsub.f32 1.5, %v2648
      %v2650 = vmul.f32 %v2645, %v2649
      %vm2651 = vweird.f32 %v2496
      %vm2652 = vweird.f32 %v2645
      %vm2653 = vmor %vm2651, %vm2652
      %v2654 = vsel %vm2653, %v2645, %v2650
      %v2655 = vrsqrt.pop %v2497
      %v2656 = vmul.f32 %v2655, %v2497
      %v2657 = vmul.f32 %v2656, %v2655
      %v2658 = vmul.f32 0.5, %v2657
      %v2659 = vsub.f32 1.5, %v2658
      %v2660 = vmul.f32 %v2655, %v2659
      %vm2661 = vweird.f32 %v2497
      %vm2662 = vweird.f32 %v2655
      %vm2663 = vmor %vm2661, %vm2662
      %v2664 = vsel %vm2663, %v2655, %v2660
      %v2665 = vrsqrt.pop %v2498
      %v2666 = vmul.f32 %v2665, %v2498
      %v2667 = vmul.f32 %v2666, %v2665
      %v2668 = vmul.f32 0.5, %v2667
      %v2669 = vsub.f32 1.5, %v2668
      %v2670 = vmul.f32 %v2665, %v2669
      %vm2671 = vweird.f32 %v2498
      %vm2672 = vweird.f32 %v2665
      %vm2673 = vmor %vm2671, %vm2672
      %v2674 = vsel %vm2673, %v2665, %v2670
      %v2675 = vrsqrt.pop %v2499
      %v2676 = vmul.f32 %v2675, %v2499
      %v2677 = vmul.f32 %v2676, %v2675
      %v2678 = vmul.f32 0.5, %v2677
      %v2679 = vsub.f32 1.5, %v2678
      %v2680 = vmul.f32 %v2675, %v2679
      %vm2681 = vweird.f32 %v2499
      %vm2682 = vweird.f32 %v2675
      %vm2683 = vmor %vm2681, %vm2682
      %v2684 = vsel %vm2683, %v2675, %v2680
      %v2685 = vrsqrt.pop %v2500
      %v2686 = vmul.f32 %v2685, %v2500
      %v2687 = vmul.f32 %v2686, %v2685
      %v2688 = vmul.f32 0.5, %v2687
      %v2689 = vsub.f32 1.5, %v2688
      %v2690 = vmul.f32 %v2685, %v2689
      %vm2691 = vweird.f32 %v2500
      %vm2692 = vweird.f32 %v2685
      %vm2693 = vmor %vm2691, %vm2692
      %v2694 = vsel %vm2693, %v2685, %v2690
      %v2695 = vrsqrt.pop %v2501
      %v2696 = vmul.f32 %v2695, %v2501
      %v2697 = vmul.f32 %v2696, %v2695
      %v2698 = vmul.f32 0.5, %v2697
      %v2699 = vsub.f32 1.5, %v2698
      %v2700 = vmul.f32 %v2695, %v2699
      %vm2701 = vweird.f32 %v2501
      %vm2702 = vweird.f32 %v2695
      %vm2703 = vmor %vm2701, %vm2702
      %v2704 = vsel %vm2703, %v2695, %v2700
      %v2705 = vrsqrt.pop %v2502
      %v2706 = vmul.f32 %v2705, %v2502
      %v2707 = vmul.f32 %v2706, %v2705
      %v2708 = vmul.f32 0.5, %v2707
      %v2709 = vsub.f32 1.5, %v2708
      %v2710 = vmul.f32 %v2705, %v2709
      %vm2711 = vweird.f32 %v2502
      %vm2712 = vweird.f32 %v2705
      %vm2713 = vmor %vm2711, %vm2712
      %v2714 = vsel %vm2713, %v2705, %v2710
      %v2715 = vrsqrt.pop %v2503
      %v2716 = vmul.f32 %v2715, %v2503
      %v2717 = vmul.f32 %v2716, %v2715
      %v2718 = vmul.f32 0.5, %v2717
      %v2719 = vsub.f32 1.5, %v2718
      %v2720 = vmul.f32 %v2715, %v2719
      %vm2721 = vweird.f32 %v2503
      %vm2722 = vweird.f32 %v2715
      %vm2723 = vmor %vm2721, %vm2722
      %v2724 = vsel %vm2723, %v2715, %v2720
      %v2725 = vrsqrt.pop %v2504
      %v2726 = vmul.f32 %v2725, %v2504
      %v2727 = vmul.f32 %v2726, %v2725
      %v2728 = vmul.f32 0.5, %v2727
      %v2729 = vsub.f32 1.5, %v2728
      %v2730 = vmul.f32 %v2725, %v2729
      %vm2731 = vweird.f32 %v2504
      %vm2732 = vweird.f32 %v2725
      %vm2733 = vmor %vm2731, %vm2732
      %v2734 = vsel %vm2733, %v2725, %v2730
      %v2735 = vrsqrt.pop %v2505
      %v2736 = vmul.f32 %v2735, %v2505
      %v2737 = vmul.f32 %v2736, %v2735
      %v2738 = vmul.f32 0.5, %v2737
      %v2739 = vsub.f32 1.5, %v2738
      %v2740 = vmul.f32 %v2735, %v2739
      %vm2741 = vweird.f32 %v2505
      %vm2742 = vweird.f32 %v2735
      %vm2743 = vmor %vm2741, %vm2742
      %v2744 = vsel %vm2743, %v2735, %v2740
      %v2745 = vrsqrt.pop %v2506
      %v2746 = vmul.f32 %v2745, %v2506
      %v2747 = vmul.f32 %v2746, %v2745
      %v2748 = vmul.f32 0.5, %v2747
      %v2749 = vsub.f32 1.5, %v2748
      %v2750 = vmul.f32 %v2745, %v2749
      %vm2751 = vweird.f32 %v2506
      %vm2752 = vweird.f32 %v2745
      %vm2753 = vmor %vm2751, %vm2752
      %v2754 = vsel %vm2753, %v2745, %v2750
      %v2755 = vrsqrt.pop %v2507
      %v2756 = vmul.f32 %v2755, %v2507
      %v2757 = vmul.f32 %v2756, %v2755
      %v2758 = vmul.f32 0.5, %v2757
      %v2759 = vsub.f32 1.5, %v2758
      %v2760 = vmul.f32 %v2755, %v2759
      %vm2761 = vweird.f32 %v2507
      %vm2762 = vweird.f32 %v2755
      %vm2763 = vmor %vm2761, %vm2762
      %v2764 = vsel %vm2763, %v2755, %v2760
      %v2765 = vrsqrt.pop %v2508
      %v2766 = vmul.f32 %v2765, %v2508
      %v2767 = vmul.f32 %v2766, %v2765
      %v2768 = vmul.f32 0.5, %v2767
      %v2769 = vsub.f32 1.5, %v2768
      %v2770 = vmul.f32 %v2765, %v2769
      %vm2771 = vweird.f32 %v2508
      %vm2772 = vweird.f32 %v2765
      %vm2773 = vmor %vm2771, %vm2772
      %v2774 = vsel %vm2773, %v2765, %v2770
      %v2775 = vrsqrt.pop %v2509
      %v2776 = vmul.f32 %v2775, %v2509
      %v2777 = vmul.f32 %v2776, %v2775
      %v2778 = vmul.f32 0.5, %v2777
      %v2779 = vsub.f32 1.5, %v2778
      %v2780 = vmul.f32 %v2775, %v2779
      %vm2781 = vweird.f32 %v2509
      %vm2782 = vweird.f32 %v2775
      %vm2783 = vmor %vm2781, %vm2782
      %v2784 = vsel %vm2783, %v2775, %v2780
      %v2785 = vrsqrt.pop %v2510
      %v2786 = vmul.f32 %v2785, %v2510
      %v2787 = vmul.f32 %v2786, %v2785
      %v2788 = vmul.f32 0.5, %v2787
      %v2789 = vsub.f32 1.5, %v2788
      %v2790 = vmul.f32 %v2785, %v2789
      %vm2791 = vweird.f32 %v2510
      %vm2792 = vweird.f32 %v2785
      %vm2793 = vmor %vm2791, %vm2792
      %v2794 = vsel %vm2793, %v2785, %v2790
      %v2795 = vrsqrt.pop %v2511
      %v2796 = vmul.f32 %v2795, %v2511
      %v2797 = vmul.f32 %v2796, %v2795
      %v2798 = vmul.f32 0.5, %v2797
      %v2799 = vsub.f32 1.5, %v2798
      %v2800 = vmul.f32 %v2795, %v2799
      %vm2801 = vweird.f32 %v2511
      %vm2802 = vweird.f32 %v2795
      %vm2803 = vmor %vm2801, %vm2802
      %v2804 = vsel %vm2803, %v2795, %v2800
      %v2805 = vrsqrt.pop %v2512
      %v2806 = vmul.f32 %v2805, %v2512
      %v2807 = vmul.f32 %v2806, %v2805
      %v2808 = vmul.f32 0.5, %v2807
      %v2809 = vsub.f32 1.5, %v2808
      %v2810 = vmul.f32 %v2805, %v2809
      %vm2811 = vweird.f32 %v2512
      %vm2812 = vweird.f32 %v2805
      %vm2813 = vmor %vm2811, %vm2812
      %v2814 = vsel %vm2813, %v2805, %v2810
      %v2815 = vrsqrt.pop %v2513
      %v2816 = vmul.f32 %v2815, %v2513
      %v2817 = vmul.f32 %v2816, %v2815
      %v2818 = vmul.f32 0.5, %v2817
      %v2819 = vsub.f32 1.5, %v2818
      %v2820 = vmul.f32 %v2815, %v2819
      %vm2821 = vweird.f32 %v2513
      %vm2822 = vweird.f32 %v2815
      %vm2823 = vmor %vm2821, %vm2822
      %v2824 = vsel %vm2823, %v2815, %v2820
      %v2825 = vrsqrt.pop %v2514
      %v2826 = vmul.f32 %v2825, %v2514
      %v2827 = vmul.f32 %v2826, %v2825
      %v2828 = vmul.f32 0.5, %v2827
      %v2829 = vsub.f32 1.5, %v2828
      %v2830 = vmul.f32 %v2825, %v2829
      %vm2831 = vweird.f32 %v2514
      %vm2832 = vweird.f32 %v2825
      %vm2833 = vmor %vm2831, %vm2832
      %v2834 = vsel %vm2833, %v2825, %v2830
      %v2835 = vmul.f32 %v2291, %v2524
      %v2836 = vmul.f32 %v2292, %v2534
      %v2837 = vmul.f32 %v2293, %v2544
      %v2838 = vmul.f32 %v2294, %v2554
      %v2839 = vmul.f32 %v2295, %v2564
      %v2840 = vmul.f32 %v2296, %v2574
      %v2841 = vmul.f32 %v2297, %v2584
      %v2842 = vmul.f32 %v2298, %v2594
      %v2843 = vmul.f32 %v2299, %v2604
      %v2844 = vmul.f32 %v2300, %v2614
      %v2845 = vmul.f32 %v2301, %v2624
      %v2846 = vmul.f32 %v2302, %v2634
      %v2847 = vmul.f32 %v2303, %v2644
      %v2848 = vmul.f32 %v2304, %v2654
      %v2849 = vmul.f32 %v2305, %v2664
      %v2850 = vmul.f32 %v2306, %v2674
      %v2851 = vmul.f32 %v2307, %v2684
      %v2852 = vmul.f32 %v2308, %v2694
      %v2853 = vmul.f32 %v2309, %v2704
      %v2854 = vmul.f32 %v2310, %v2714
      %v2855 = vmul.f32 %v2311, %v2724
      %v2856 = vmul.f32 %v2312, %v2734
      %v2857 = vmul.f32 %v2313, %v2744
      %v2858 = vmul.f32 %v2314, %v2754
      %v2859 = vmul.f32 %v2315, %v2764
      %v2860 = vmul.f32 %v2316, %v2774
      %v2861 = vmul.f32 %v2317, %v2784
      %v2862 = vmul.f32 %v2318, %v2794
      %v2863 = vmul.f32 %v2319, %v2804
      %v2864 = vmul.f32 %v2320, %v2814
      %v2865 = vmul.f32 %v2321, %v2824
      %v2866 = vmul.f32 %v2322, %v2834
      %v2867 = vmul.f32 %v2835, %v1262
      %v2868 = vmul.f32 %v2836, %v1262
      %v2869 = vmul.f32 %v2837, %v1262
      %v2870 = vmul.f32 %v2838, %v1262
      %v2871 = vmul.f32 %v2839, %v1262
      %v2872 = vmul.f32 %v2840, %v1262
      %v2873 = vmul.f32 %v2841, %v1262
      %v2874 = vmul.f32 %v2842, %v1262
      %v2875 = vmul.f32 %v2843, %v1262
      %v2876 = vmul.f32 %v2844, %v1262
      %v2877 = vmul.f32 %v2845, %v1262
      %v2878 = vmul.f32 %v2846, %v1262
      %v2879 = vmul.f32 %v2847, %v1262
      %v2880 = vmul.f32 %v2848, %v1262
      %v2881 = vmul.f32 %v2849, %v1262
      %v2882 = vmul.f32 %v2850, %v1262
      %v2883 = vmul.f32 %v2851, %v1262
      %v2884 = vmul.f32 %v2852, %v1262
      %v2885 = vmul.f32 %v2853, %v1262
      %v2886 = vmul.f32 %v2854, %v1262
      %v2887 = vmul.f32 %v2855, %v1262
      %v2888 = vmul.f32 %v2856, %v1262
      %v2889 = vmul.f32 %v2857, %v1262
      %v2890 = vmul.f32 %v2858, %v1262
      %v2891 = vmul.f32 %v2859, %v1262
      %v2892 = vmul.f32 %v2860, %v1262
      %v2893 = vmul.f32 %v2861, %v1262
      %v2894 = vmul.f32 %v2862, %v1262
      %v2895 = vmul.f32 %v2863, %v1262
      %v2896 = vmul.f32 %v2864, %v1262
      %v2897 = vmul.f32 %v2865, %v1262
      %v2898 = vmul.f32 %v2866, %v1262
      %v2899 = vadd.f32 %v2867, %v1297
      %v2900 = vadd.f32 %v2868, %v1297
      %v2901 = vadd.f32 %v2869, %v1297
      %v2902 = vadd.f32 %v2870, %v1297
      %v2903 = vadd.f32 %v2871, %v1297
      %v2904 = vadd.f32 %v2872, %v1297
      %v2905 = vadd.f32 %v2873, %v1297
      %v2906 = vadd.f32 %v2874, %v1297
      %v2907 = vadd.f32 %v2875, %v1297
      %v2908 = vadd.f32 %v2876, %v1297
      %v2909 = vadd.f32 %v2877, %v1297
      %v2910 = vadd.f32 %v2878, %v1297
      %v2911 = vadd.f32 %v2879, %v1297
      %v2912 = vadd.f32 %v2880, %v1297
      %v2913 = vadd.f32 %v2881, %v1297
      %v2914 = vadd.f32 %v2882, %v1297
      %v2915 = vadd.f32 %v2883, %v1297
      %v2916 = vadd.f32 %v2884, %v1297
      %v2917 = vadd.f32 %v2885, %v1297
      %v2918 = vadd.f32 %v2886, %v1297
      %v2919 = vadd.f32 %v2887, %v1297
      %v2920 = vadd.f32 %v2888, %v1297
      %v2921 = vadd.f32 %v2889, %v1297
      %v2922 = vadd.f32 %v2890, %v1297
      %v2923 = vadd.f32 %v2891, %v1297
      %v2924 = vadd.f32 %v2892, %v1297
      %v2925 = vadd.f32 %v2893, %v1297
      %v2926 = vadd.f32 %v2894, %v1297
      %v2927 = vadd.f32 %v2895, %v1297
      %v2928 = vadd.f32 %v2896, %v1297
      %v2929 = vadd.f32 %v2897, %v1297
      %v2930 = vadd.f32 %v2898, %v1297
      %v2931 = vld [vmem:[%s5] sm:$0xff]
      %v2932 = vld [vmem:[%s5 + $0x8] sm:$0xff]
      %v2933 = vld [vmem:[%s5 + $0x10] sm:$0xff]
      %v2934 = vld [vmem:[%s5 + $0x18] sm:$0xff]
      %v2935 = vld [vmem:[%s8] sm:$0x1]
      %v2937 = vperm.slane %v2935, 0
      %v2940 = vsel %vm549, %v1299, 0
      %v2943 = vsel %vm549, %v1300, 0
      %v2946 = vsel %vm549, %v1301, 0
      %v2949 = vsel %vm549, %v1302, 0
      %v2952 = vsel %vm549, %v1303, 0
      %v2955 = vsel %vm549, %v1304, 0
      %v2958 = vsel %vm549, %v1305, 0
      %v2961 = vsel %vm549, %v1306, 0
      %v2964 = vsel %vm549, %v1307, 0
      %v2967 = vsel %vm549, %v1308, 0
      %v2970 = vsel %vm549, %v1309, 0
      %v2973 = vsel %vm549, %v1310, 0
      %v2976 = vsel %vm549, %v1311, 0
      %v2979 = vsel %vm549, %v1312, 0
      %v2982 = vsel %vm549, %v1313, 0
      %v2985 = vsel %vm549, %v1314, 0
      %v2988 = vsel %vm549, %v1315, 0
      %v2991 = vsel %vm549, %v1316, 0
      %v2994 = vsel %vm549, %v1317, 0
      %v2997 = vsel %vm549, %v1318, 0
      %v3000 = vsel %vm549, %v1319, 0
      %v3003 = vsel %vm549, %v1320, 0
      %v3006 = vsel %vm549, %v1321, 0
      %v3009 = vsel %vm549, %v1322, 0
      %v3012 = vsel %vm549, %v1323, 0
      %v3015 = vsel %vm549, %v1324, 0
      %v3018 = vsel %vm549, %v1325, 0
      %v3021 = vsel %vm549, %v1326, 0
      %v3024 = vsel %vm549, %v1327, 0
      %v3027 = vsel %vm549, %v1328, 0
      %v3030 = vsel %vm549, %v1329, 0
      %v3033 = vsel %vm549, %v1330, 0
      %3035 = vmatpush.msra.mxu0 0.0
      %3036 = vmatpush.msra.mxu0 0.0
      %3037 = vmatpush.msra.mxu0 0.0
      %3038 = vmatpush.msra.mxu0 0.0
      %3039 = vmatpush.msra.mxu0 0.0
      %3040 = vmatpush.msra.mxu0 0.0
      %3041 = vmatpush.msra.mxu0 0.0
      %3042 = vmatpush.msra.mxu0 0.0
      %3043 = vmatpush.msra.mxu0 0.0
      %3044 = vmatpush.msra.mxu0 0.0
      %3045 = vmatpush.msra.mxu0 0.0
      %3046 = vmatpush.msra.mxu0 0.0
      %3047 = vmatpush.msra.mxu0 %v2934
      %3048 = vmatpush.msra.mxu0 %v2933
      %3049 = vmatpush.msra.mxu0 %v2932
      %3050 = vmatpush.msra.mxu0 %v2931
      %3051 = vmatmul.f32.gmra.mxu0 %v2940
      %v3052 = vpop.f32.mrf.mxu0
      %v3053 = vadd.f32 %v2937, %v3052
      %3054 = vmatmul.f32.gmra.mxu0 %v2943
      %v3055 = vpop.f32.mrf.mxu0
      %v3056 = vadd.f32 %v2937, %v3055
      %3057 = vmatmul.f32.gmra.mxu0 %v2946
      %v3058 = vpop.f32.mrf.mxu0
      %v3059 = vadd.f32 %v2937, %v3058
      %3060 = vmatmul.f32.gmra.mxu0 %v2949
      %v3061 = vpop.f32.mrf.mxu0
      %v3062 = vadd.f32 %v2937, %v3061
      %3063 = vmatmul.f32.gmra.mxu0 %v2952
      %v3064 = vpop.f32.mrf.mxu0
      %v3065 = vadd.f32 %v2937, %v3064
      %3066 = vmatmul.f32.gmra.mxu0 %v2955
      %v3067 = vpop.f32.mrf.mxu0
      %v3068 = vadd.f32 %v2937, %v3067
      %3069 = vmatmul.f32.gmra.mxu0 %v2958
      %v3070 = vpop.f32.mrf.mxu0
      %v3071 = vadd.f32 %v2937, %v3070
      %3072 = vmatmul.f32.gmra.mxu0 %v2961
      %v3073 = vpop.f32.mrf.mxu0
      %v3074 = vadd.f32 %v2937, %v3073
      %3075 = vmatmul.f32.gmra.mxu0 %v2964
      %v3076 = vpop.f32.mrf.mxu0
      %v3077 = vadd.f32 %v2937, %v3076
      %3078 = vmatmul.f32.gmra.mxu0 %v2967
      %v3079 = vpop.f32.mrf.mxu0
      %v3080 = vadd.f32 %v2937, %v3079
      %3081 = vmatmul.f32.gmra.mxu0 %v2970
      %v3082 = vpop.f32.mrf.mxu0
      %v3083 = vadd.f32 %v2937, %v3082
      %3084 = vmatmul.f32.gmra.mxu0 %v2973
      %v3085 = vpop.f32.mrf.mxu0
      %v3086 = vadd.f32 %v2937, %v3085
      %3087 = vmatmul.f32.gmra.mxu0 %v2976
      %v3088 = vpop.f32.mrf.mxu0
      %v3089 = vadd.f32 %v2937, %v3088
      %3090 = vmatmul.f32.gmra.mxu0 %v2979
      %v3091 = vpop.f32.mrf.mxu0
      %v3092 = vadd.f32 %v2937, %v3091
      %3093 = vmatmul.f32.gmra.mxu0 %v2982
      %v3094 = vpop.f32.mrf.mxu0
      %v3095 = vadd.f32 %v2937, %v3094
      %3096 = vmatmul.f32.gmra.mxu0 %v2985
      %v3097 = vpop.f32.mrf.mxu0
      %v3098 = vadd.f32 %v2937, %v3097
      %3099 = vmatmul.f32.gmra.mxu0 %v2988
      %v3100 = vpop.f32.mrf.mxu0
      %v3101 = vadd.f32 %v2937, %v3100
      %3102 = vmatmul.f32.gmra.mxu0 %v2991
      %v3103 = vpop.f32.mrf.mxu0
      %v3104 = vadd.f32 %v2937, %v3103
      %3105 = vmatmul.f32.gmra.mxu0 %v2994
      %v3106 = vpop.f32.mrf.mxu0
      %v3107 = vadd.f32 %v2937, %v3106
      %3108 = vmatmul.f32.gmra.mxu0 %v2997
      %v3109 = vpop.f32.mrf.mxu0
      %v3110 = vadd.f32 %v2937, %v3109
      %3111 = vmatmul.f32.gmra.mxu0 %v3000
      %v3112 = vpop.f32.mrf.mxu0
      %v3113 = vadd.f32 %v2937, %v3112
      %3114 = vmatmul.f32.gmra.mxu0 %v3003
      %v3115 = vpop.f32.mrf.mxu0
      %v3116 = vadd.f32 %v2937, %v3115
      %3117 = vmatmul.f32.gmra.mxu0 %v3006
      %v3118 = vpop.f32.mrf.mxu0
      %v3119 = vadd.f32 %v2937, %v3118
      %3120 = vmatmul.f32.gmra.mxu0 %v3009
      %v3121 = vpop.f32.mrf.mxu0
      %v3122 = vadd.f32 %v2937, %v3121
      %3123 = vmatmul.f32.gmra.mxu0 %v3012
      %v3124 = vpop.f32.mrf.mxu0
      %v3125 = vadd.f32 %v2937, %v3124
      %3126 = vmatmul.f32.gmra.mxu0 %v3015
      %v3127 = vpop.f32.mrf.mxu0
      %v3128 = vadd.f32 %v2937, %v3127
      %3129 = vmatmul.f32.gmra.mxu0 %v3018
      %v3130 = vpop.f32.mrf.mxu0
      %v3131 = vadd.f32 %v2937, %v3130
      %3132 = vmatmul.f32.gmra.mxu0 %v3021
      %v3133 = vpop.f32.mrf.mxu0
      %v3134 = vadd.f32 %v2937, %v3133
      %3135 = vmatmul.f32.gmra.mxu0 %v3024
      %v3136 = vpop.f32.mrf.mxu0
      %v3137 = vadd.f32 %v2937, %v3136
      %3138 = vmatmul.f32.gmra.mxu0 %v3027
      %v3139 = vpop.f32.mrf.mxu0
      %v3140 = vadd.f32 %v2937, %v3139
      %3141 = vmatmul.f32.gmra.mxu0 %v3030
      %v3142 = vpop.f32.mrf.mxu0
      %v3143 = vadd.f32 %v2937, %v3142
      %3144 = vmatmul.f32.gmra.mxu0 %v3033
      %v3145 = vpop.f32.mrf.mxu0
      %v3146 = vadd.f32 %v2937, %v3145
      %3147 = vdwg.mxu0
      %v3148 = vmul.f32 %v3053, 0.35355338
      %v3149 = vmul.f32 %v3056, 0.35355338
      %v3150 = vmul.f32 %v3059, 0.35355338
      %v3151 = vmul.f32 %v3062, 0.35355338
      %v3152 = vmul.f32 %v3065, 0.35355338
      %v3153 = vmul.f32 %v3068, 0.35355338
      %v3154 = vmul.f32 %v3071, 0.35355338
      %v3155 = vmul.f32 %v3074, 0.35355338
      %v3156 = vmul.f32 %v3077, 0.35355338
      %v3157 = vmul.f32 %v3080, 0.35355338
      %v3158 = vmul.f32 %v3083, 0.35355338
      %v3159 = vmul.f32 %v3086, 0.35355338
      %v3160 = vmul.f32 %v3089, 0.35355338
      %v3161 = vmul.f32 %v3092, 0.35355338
      %v3162 = vmul.f32 %v3095, 0.35355338
      %v3163 = vmul.f32 %v3098, 0.35355338
      %v3164 = vmul.f32 %v3101, 0.35355338
      %v3165 = vmul.f32 %v3104, 0.35355338
      %v3166 = vmul.f32 %v3107, 0.35355338
      %v3167 = vmul.f32 %v3110, 0.35355338
      %v3168 = vmul.f32 %v3113, 0.35355338
      %v3169 = vmul.f32 %v3116, 0.35355338
      %v3170 = vmul.f32 %v3119, 0.35355338
      %v3171 = vmul.f32 %v3122, 0.35355338
      %v3172 = vmul.f32 %v3125, 0.35355338
      %v3173 = vmul.f32 %v3128, 0.35355338
      %v3174 = vmul.f32 %v3131, 0.35355338
      %v3175 = vmul.f32 %v3134, 0.35355338
      %v3176 = vmul.f32 %v3137, 0.35355338
      %v3177 = vmul.f32 %v3140, 0.35355338
      %v3178 = vmul.f32 %v3143, 0.35355338
      %v3179 = vmul.f32 %v3146, 0.35355338
      %3180 = vst.msk [vmem:[%s501] sm:$0xff] %vm549, %v3148
      %3181 = vst.msk [vmem:[%s501 + $0x8] sm:$0xff] %vm549, %v3149
      %3182 = vst.msk [vmem:[%s501 + $0x10] sm:$0xff] %vm549, %v3150
      %3183 = vst.msk [vmem:[%s501 + $0x18] sm:$0xff] %vm549, %v3151
      %3184 = vst.msk [vmem:[%s501 + $0x20] sm:$0xff] %vm549, %v3152
      %3185 = vst.msk [vmem:[%s501 + $0x28] sm:$0xff] %vm549, %v3153
      %3186 = vst.msk [vmem:[%s501 + $0x30] sm:$0xff] %vm549, %v3154
      %3187 = vst.msk [vmem:[%s501 + $0x38] sm:$0xff] %vm549, %v3155
      %3188 = vst.msk [vmem:[%s501 + $0x40] sm:$0xff] %vm549, %v3156
      %3189 = vst.msk [vmem:[%s501 + $0x48] sm:$0xff] %vm549, %v3157
      %3190 = vst.msk [vmem:[%s501 + $0x50] sm:$0xff] %vm549, %v3158
      %3191 = vst.msk [vmem:[%s501 + $0x58] sm:$0xff] %vm549, %v3159
      %3192 = vst.msk [vmem:[%s501 + $0x60] sm:$0xff] %vm549, %v3160
      %3193 = vst.msk [vmem:[%s501 + $0x68] sm:$0xff] %vm549, %v3161
      %3194 = vst.msk [vmem:[%s501 + $0x70] sm:$0xff] %vm549, %v3162
      %3195 = vst.msk [vmem:[%s501 + $0x78] sm:$0xff] %vm549, %v3163
      %3196 = vst.msk [vmem:[%s501 + $0x80] sm:$0xff] %vm549, %v3164
      %3197 = vst.msk [vmem:[%s501 + $0x88] sm:$0xff] %vm549, %v3165
      %3198 = vst.msk [vmem:[%s501 + $0x90] sm:$0xff] %vm549, %v3166
      %3199 = vst.msk [vmem:[%s501 + $0x98] sm:$0xff] %vm549, %v3167
      %3200 = vst.msk [vmem:[%s501 + $0xa0] sm:$0xff] %vm549, %v3168
      %3201 = vst.msk [vmem:[%s501 + $0xa8] sm:$0xff] %vm549, %v3169
      %3202 = vst.msk [vmem:[%s501 + $0xb0] sm:$0xff] %vm549, %v3170
      %3203 = vst.msk [vmem:[%s501 + $0xb8] sm:$0xff] %vm549, %v3171
      %3204 = vst.msk [vmem:[%s501 + $0xc0] sm:$0xff] %vm549, %v3172
      %3205 = vst.msk [vmem:[%s501 + $0xc8] sm:$0xff] %vm549, %v3173
      %3206 = vst.msk [vmem:[%s501 + $0xd0] sm:$0xff] %vm549, %v3174
      %3207 = vst.msk [vmem:[%s501 + $0xd8] sm:$0xff] %vm549, %v3175
      %3208 = vst.msk [vmem:[%s501 + $0xe0] sm:$0xff] %vm549, %v3176
      %3209 = vst.msk [vmem:[%s501 + $0xe8] sm:$0xff] %vm549, %v3177
      %3210 = vst.msk [vmem:[%s501 + $0xf0] sm:$0xff] %vm549, %v3178
      %3211 = vst.msk [vmem:[%s501 + $0xf8] sm:$0xff] %vm549, %v3179
      %v3212 = vld [vmem:[%s6] sm:$0xff]
      %v3213 = vld [vmem:[%s6 + $0x8] sm:$0xff]
      %v3214 = vld [vmem:[%s6 + $0x10] sm:$0xff]
      %v3215 = vld [vmem:[%s6 + $0x18] sm:$0xff]
      %v3216 = vld [vmem:[%s9] sm:$0x1]
      %v3218 = vperm.slane %v3216, 0
      %v3221 = vsel %vm549, %v2099, 0
      %v3224 = vsel %vm549, %v2100, 0
      %v3227 = vsel %vm549, %v2101, 0
      %v3230 = vsel %vm549, %v2102, 0
      %v3233 = vsel %vm549, %v2103, 0
      %v3236 = vsel %vm549, %v2104, 0
      %v3239 = vsel %vm549, %v2105, 0
      %v3242 = vsel %vm549, %v2106, 0
      %v3245 = vsel %vm549, %v2107, 0
      %v3248 = vsel %vm549, %v2108, 0
      %v3251 = vsel %vm549, %v2109, 0
      %v3254 = vsel %vm549, %v2110, 0
      %v3257 = vsel %vm549, %v2111, 0
      %v3260 = vsel %vm549, %v2112, 0
      %v3263 = vsel %vm549, %v2113, 0
      %v3266 = vsel %vm549, %v2114, 0
      %v3269 = vsel %vm549, %v2115, 0
      %v3272 = vsel %vm549, %v2116, 0
      %v3275 = vsel %vm549, %v2117, 0
      %v3278 = vsel %vm549, %v2118, 0
      %v3281 = vsel %vm549, %v2119, 0
      %v3284 = vsel %vm549, %v2120, 0
      %v3287 = vsel %vm549, %v2121, 0
      %v3290 = vsel %vm549, %v2122, 0
      %v3293 = vsel %vm549, %v2123, 0
      %v3296 = vsel %vm549, %v2124, 0
      %v3299 = vsel %vm549, %v2125, 0
      %v3302 = vsel %vm549, %v2126, 0
      %v3305 = vsel %vm549, %v2127, 0
      %v3308 = vsel %vm549, %v2128, 0
      %v3311 = vsel %vm549, %v2129, 0
      %v3314 = vsel %vm549, %v2130, 0
      %3316 = vmatpush.msra.mxu0 0.0
      %3317 = vmatpush.msra.mxu0 0.0
      %3318 = vmatpush.msra.mxu0 0.0
      %3319 = vmatpush.msra.mxu0 0.0
      %3320 = vmatpush.msra.mxu0 0.0
      %3321 = vmatpush.msra.mxu0 0.0
      %3322 = vmatpush.msra.mxu0 0.0
      %3323 = vmatpush.msra.mxu0 0.0
      %3324 = vmatpush.msra.mxu0 0.0
      %3325 = vmatpush.msra.mxu0 0.0
      %3326 = vmatpush.msra.mxu0 0.0
      %3327 = vmatpush.msra.mxu0 0.0
      %3328 = vmatpush.msra.mxu0 %v3215
      %3329 = vmatpush.msra.mxu0 %v3214
      %3330 = vmatpush.msra.mxu0 %v3213
      %3331 = vmatpush.msra.mxu0 %v3212
      %3332 = vmatmul.f32.gmra.mxu0 %v3221
      %v3333 = vpop.f32.mrf.mxu0
      %v3334 = vadd.f32 %v3218, %v3333
      %3335 = vmatmul.f32.gmra.mxu0 %v3224
      %v3336 = vpop.f32.mrf.mxu0
      %v3337 = vadd.f32 %v3218, %v3336
      %3338 = vmatmul.f32.gmra.mxu0 %v3227
      %v3339 = vpop.f32.mrf.mxu0
      %v3340 = vadd.f32 %v3218, %v3339
      %3341 = vmatmul.f32.gmra.mxu0 %v3230
      %v3342 = vpop.f32.mrf.mxu0
      %v3343 = vadd.f32 %v3218, %v3342
      %3344 = vmatmul.f32.gmra.mxu0 %v3233
      %v3345 = vpop.f32.mrf.mxu0
      %v3346 = vadd.f32 %v3218, %v3345
      %3347 = vmatmul.f32.gmra.mxu0 %v3236
      %v3348 = vpop.f32.mrf.mxu0
      %v3349 = vadd.f32 %v3218, %v3348
      %3350 = vmatmul.f32.gmra.mxu0 %v3239
      %v3351 = vpop.f32.mrf.mxu0
      %v3352 = vadd.f32 %v3218, %v3351
      %3353 = vmatmul.f32.gmra.mxu0 %v3242
      %v3354 = vpop.f32.mrf.mxu0
      %v3355 = vadd.f32 %v3218, %v3354
      %3356 = vmatmul.f32.gmra.mxu0 %v3245
      %v3357 = vpop.f32.mrf.mxu0
      %v3358 = vadd.f32 %v3218, %v3357
      %3359 = vmatmul.f32.gmra.mxu0 %v3248
      %v3360 = vpop.f32.mrf.mxu0
      %v3361 = vadd.f32 %v3218, %v3360
      %3362 = vmatmul.f32.gmra.mxu0 %v3251
      %v3363 = vpop.f32.mrf.mxu0
      %v3364 = vadd.f32 %v3218, %v3363
      %3365 = vmatmul.f32.gmra.mxu0 %v3254
      %v3366 = vpop.f32.mrf.mxu0
      %v3367 = vadd.f32 %v3218, %v3366
      %3368 = vmatmul.f32.gmra.mxu0 %v3257
      %v3369 = vpop.f32.mrf.mxu0
      %v3370 = vadd.f32 %v3218, %v3369
      %3371 = vmatmul.f32.gmra.mxu0 %v3260
      %v3372 = vpop.f32.mrf.mxu0
      %v3373 = vadd.f32 %v3218, %v3372
      %3374 = vmatmul.f32.gmra.mxu0 %v3263
      %v3375 = vpop.f32.mrf.mxu0
      %v3376 = vadd.f32 %v3218, %v3375
      %3377 = vmatmul.f32.gmra.mxu0 %v3266
      %v3378 = vpop.f32.mrf.mxu0
      %v3379 = vadd.f32 %v3218, %v3378
      %3380 = vmatmul.f32.gmra.mxu0 %v3269
      %v3381 = vpop.f32.mrf.mxu0
      %v3382 = vadd.f32 %v3218, %v3381
      %3383 = vmatmul.f32.gmra.mxu0 %v3272
      %v3384 = vpop.f32.mrf.mxu0
      %v3385 = vadd.f32 %v3218, %v3384
      %3386 = vmatmul.f32.gmra.mxu0 %v3275
      %v3387 = vpop.f32.mrf.mxu0
      %v3388 = vadd.f32 %v3218, %v3387
      %3389 = vmatmul.f32.gmra.mxu0 %v3278
      %v3390 = vpop.f32.mrf.mxu0
      %v3391 = vadd.f32 %v3218, %v3390
      %3392 = vmatmul.f32.gmra.mxu0 %v3281
      %v3393 = vpop.f32.mrf.mxu0
      %v3394 = vadd.f32 %v3218, %v3393
      %3395 = vmatmul.f32.gmra.mxu0 %v3284
      %v3396 = vpop.f32.mrf.mxu0
      %v3397 = vadd.f32 %v3218, %v3396
      %3398 = vmatmul.f32.gmra.mxu0 %v3287
      %v3399 = vpop.f32.mrf.mxu0
      %v3400 = vadd.f32 %v3218, %v3399
      %3401 = vmatmul.f32.gmra.mxu0 %v3290
      %v3402 = vpop.f32.mrf.mxu0
      %v3403 = vadd.f32 %v3218, %v3402
      %3404 = vmatmul.f32.gmra.mxu0 %v3293
      %v3405 = vpop.f32.mrf.mxu0
      %v3406 = vadd.f32 %v3218, %v3405
      %3407 = vmatmul.f32.gmra.mxu0 %v3296
      %v3408 = vpop.f32.mrf.mxu0
      %v3409 = vadd.f32 %v3218, %v3408
      %3410 = vmatmul.f32.gmra.mxu0 %v3299
      %v3411 = vpop.f32.mrf.mxu0
      %v3412 = vadd.f32 %v3218, %v3411
      %3413 = vmatmul.f32.gmra.mxu0 %v3302
      %v3414 = vpop.f32.mrf.mxu0
      %v3415 = vadd.f32 %v3218, %v3414
      %3416 = vmatmul.f32.gmra.mxu0 %v3305
      %v3417 = vpop.f32.mrf.mxu0
      %v3418 = vadd.f32 %v3218, %v3417
      %3419 = vmatmul.f32.gmra.mxu0 %v3308
      %v3420 = vpop.f32.mrf.mxu0
      %v3421 = vadd.f32 %v3218, %v3420
      %3422 = vmatmul.f32.gmra.mxu0 %v3311
      %v3423 = vpop.f32.mrf.mxu0
      %v3424 = vadd.f32 %v3218, %v3423
      %3425 = vmatmul.f32.gmra.mxu0 %v3314
      %v3426 = vpop.f32.mrf.mxu0
      %v3427 = vadd.f32 %v3218, %v3426
      %3428 = vdwg.mxu0
      %3429 = vst.msk [vmem:[%s507] sm:$0xff] %vm549, %v3334
      %3430 = vst.msk [vmem:[%s507 + $0x8] sm:$0xff] %vm549, %v3337
      %3431 = vst.msk [vmem:[%s507 + $0x10] sm:$0xff] %vm549, %v3340
      %3432 = vst.msk [vmem:[%s507 + $0x18] sm:$0xff] %vm549, %v3343
      %3433 = vst.msk [vmem:[%s507 + $0x20] sm:$0xff] %vm549, %v3346
      %3434 = vst.msk [vmem:[%s507 + $0x28] sm:$0xff] %vm549, %v3349
      %3435 = vst.msk [vmem:[%s507 + $0x30] sm:$0xff] %vm549, %v3352
      %3436 = vst.msk [vmem:[%s507 + $0x38] sm:$0xff] %vm549, %v3355
      %3437 = vst.msk [vmem:[%s507 + $0x40] sm:$0xff] %vm549, %v3358
      %3438 = vst.msk [vmem:[%s507 + $0x48] sm:$0xff] %vm549, %v3361
      %3439 = vst.msk [vmem:[%s507 + $0x50] sm:$0xff] %vm549, %v3364
      %3440 = vst.msk [vmem:[%s507 + $0x58] sm:$0xff] %vm549, %v3367
      %3441 = vst.msk [vmem:[%s507 + $0x60] sm:$0xff] %vm549, %v3370
      %3442 = vst.msk [vmem:[%s507 + $0x68] sm:$0xff] %vm549, %v3373
      %3443 = vst.msk [vmem:[%s507 + $0x70] sm:$0xff] %vm549, %v3376
      %3444 = vst.msk [vmem:[%s507 + $0x78] sm:$0xff] %vm549, %v3379
      %3445 = vst.msk [vmem:[%s507 + $0x80] sm:$0xff] %vm549, %v3382
      %3446 = vst.msk [vmem:[%s507 + $0x88] sm:$0xff] %vm549, %v3385
      %3447 = vst.msk [vmem:[%s507 + $0x90] sm:$0xff] %vm549, %v3388
      %3448 = vst.msk [vmem:[%s507 + $0x98] sm:$0xff] %vm549, %v3391
      %3449 = vst.msk [vmem:[%s507 + $0xa0] sm:$0xff] %vm549, %v3394
      %3450 = vst.msk [vmem:[%s507 + $0xa8] sm:$0xff] %vm549, %v3397
      %3451 = vst.msk [vmem:[%s507 + $0xb0] sm:$0xff] %vm549, %v3400
      %3452 = vst.msk [vmem:[%s507 + $0xb8] sm:$0xff] %vm549, %v3403
      %3453 = vst.msk [vmem:[%s507 + $0xc0] sm:$0xff] %vm549, %v3406
      %3454 = vst.msk [vmem:[%s507 + $0xc8] sm:$0xff] %vm549, %v3409
      %3455 = vst.msk [vmem:[%s507 + $0xd0] sm:$0xff] %vm549, %v3412
      %3456 = vst.msk [vmem:[%s507 + $0xd8] sm:$0xff] %vm549, %v3415
      %3457 = vst.msk [vmem:[%s507 + $0xe0] sm:$0xff] %vm549, %v3418
      %3458 = vst.msk [vmem:[%s507 + $0xe8] sm:$0xff] %vm549, %v3421
      %3459 = vst.msk [vmem:[%s507 + $0xf0] sm:$0xff] %vm549, %v3424
      %3460 = vst.msk [vmem:[%s507 + $0xf8] sm:$0xff] %vm549, %v3427
      %v3461 = vld [vmem:[%s7] sm:$0xff]
      %v3462 = vld [vmem:[%s7 + $0x8] sm:$0xff]
      %v3463 = vld [vmem:[%s7 + $0x10] sm:$0xff]
      %v3464 = vld [vmem:[%s7 + $0x18] sm:$0xff]
      %v3465 = vld [vmem:[%s10] sm:$0x1]
      %v3467 = vperm.slane %v3465, 0
      %v3470 = vsel %vm549, %v2899, 0
      %v3473 = vsel %vm549, %v2900, 0
      %v3476 = vsel %vm549, %v2901, 0
      %v3479 = vsel %vm549, %v2902, 0
      %v3482 = vsel %vm549, %v2903, 0
      %v3485 = vsel %vm549, %v2904, 0
      %v3488 = vsel %vm549, %v2905, 0
      %v3491 = vsel %vm549, %v2906, 0
      %v3494 = vsel %vm549, %v2907, 0
      %v3497 = vsel %vm549, %v2908, 0
      %v3500 = vsel %vm549, %v2909, 0
      %v3503 = vsel %vm549, %v2910, 0
      %v3506 = vsel %vm549, %v2911, 0
      %v3509 = vsel %vm549, %v2912, 0
      %v3512 = vsel %vm549, %v2913, 0
      %v3515 = vsel %vm549, %v2914, 0
      %v3518 = vsel %vm549, %v2915, 0
      %v3521 = vsel %vm549, %v2916, 0
      %v3524 = vsel %vm549, %v2917, 0
      %v3527 = vsel %vm549, %v2918, 0
      %v3530 = vsel %vm549, %v2919, 0
      %v3533 = vsel %vm549, %v2920, 0
      %v3536 = vsel %vm549, %v2921, 0
      %v3539 = vsel %vm549, %v2922, 0
      %v3542 = vsel %vm549, %v2923, 0
      %v3545 = vsel %vm549, %v2924, 0
      %v3548 = vsel %vm549, %v2925, 0
      %v3551 = vsel %vm549, %v2926, 0
      %v3554 = vsel %vm549, %v2927, 0
      %v3557 = vsel %vm549, %v2928, 0
      %v3560 = vsel %vm549, %v2929, 0
      %v3563 = vsel %vm549, %v2930, 0
      %3565 = vmatpush.msra.mxu0 0.0
      %3566 = vmatpush.msra.mxu0 0.0
      %3567 = vmatpush.msra.mxu0 0.0
      %3568 = vmatpush.msra.mxu0 0.0
      %3569 = vmatpush.msra.mxu0 0.0
      %3570 = vmatpush.msra.mxu0 0.0
      %3571 = vmatpush.msra.mxu0 0.0
      %3572 = vmatpush.msra.mxu0 0.0
      %3573 = vmatpush.msra.mxu0 0.0
      %3574 = vmatpush.msra.mxu0 0.0
      %3575 = vmatpush.msra.mxu0 0.0
      %3576 = vmatpush.msra.mxu0 0.0
      %3577 = vmatpush.msra.mxu0 %v3464
      %3578 = vmatpush.msra.mxu0 %v3463
      %3579 = vmatpush.msra.mxu0 %v3462
      %3580 = vmatpush.msra.mxu0 %v3461
      %3581 = vmatmul.f32.gmra.mxu0 %v3470
      %v3582 = vpop.f32.mrf.mxu0
      %v3583 = vadd.f32 %v3467, %v3582
      %3584 = vmatmul.f32.gmra.mxu0 %v3473
      %v3585 = vpop.f32.mrf.mxu0
      %v3586 = vadd.f32 %v3467, %v3585
      %3587 = vmatmul.f32.gmra.mxu0 %v3476
      %v3588 = vpop.f32.mrf.mxu0
      %v3589 = vadd.f32 %v3467, %v3588
      %3590 = vmatmul.f32.gmra.mxu0 %v3479
      %v3591 = vpop.f32.mrf.mxu0
      %v3592 = vadd.f32 %v3467, %v3591
      %3593 = vmatmul.f32.gmra.mxu0 %v3482
      %v3594 = vpop.f32.mrf.mxu0
      %v3595 = vadd.f32 %v3467, %v3594
      %3596 = vmatmul.f32.gmra.mxu0 %v3485
      %v3597 = vpop.f32.mrf.mxu0
      %v3598 = vadd.f32 %v3467, %v3597
      %3599 = vmatmul.f32.gmra.mxu0 %v3488
      %v3600 = vpop.f32.mrf.mxu0
      %v3601 = vadd.f32 %v3467, %v3600
      %3602 = vmatmul.f32.gmra.mxu0 %v3491
      %v3603 = vpop.f32.mrf.mxu0
      %v3604 = vadd.f32 %v3467, %v3603
      %3605 = vmatmul.f32.gmra.mxu0 %v3494
      %v3606 = vpop.f32.mrf.mxu0
      %v3607 = vadd.f32 %v3467, %v3606
      %3608 = vmatmul.f32.gmra.mxu0 %v3497
      %v3609 = vpop.f32.mrf.mxu0
      %v3610 = vadd.f32 %v3467, %v3609
      %3611 = vmatmul.f32.gmra.mxu0 %v3500
      %v3612 = vpop.f32.mrf.mxu0
      %v3613 = vadd.f32 %v3467, %v3612
      %3614 = vmatmul.f32.gmra.mxu0 %v3503
      %v3615 = vpop.f32.mrf.mxu0
      %v3616 = vadd.f32 %v3467, %v3615
      %3617 = vmatmul.f32.gmra.mxu0 %v3506
      %v3618 = vpop.f32.mrf.mxu0
      %v3619 = vadd.f32 %v3467, %v3618
      %3620 = vmatmul.f32.gmra.mxu0 %v3509
      %v3621 = vpop.f32.mrf.mxu0
      %v3622 = vadd.f32 %v3467, %v3621
      %3623 = vmatmul.f32.gmra.mxu0 %v3512
      %v3624 = vpop.f32.mrf.mxu0
      %v3625 = vadd.f32 %v3467, %v3624
      %3626 = vmatmul.f32.gmra.mxu0 %v3515
      %v3627 = vpop.f32.mrf.mxu0
      %v3628 = vadd.f32 %v3467, %v3627
      %3629 = vmatmul.f32.gmra.mxu0 %v3518
      %v3630 = vpop.f32.mrf.mxu0
      %v3631 = vadd.f32 %v3467, %v3630
      %3632 = vmatmul.f32.gmra.mxu0 %v3521
      %v3633 = vpop.f32.mrf.mxu0
      %v3634 = vadd.f32 %v3467, %v3633
      %3635 = vmatmul.f32.gmra.mxu0 %v3524
      %v3636 = vpop.f32.mrf.mxu0
      %v3637 = vadd.f32 %v3467, %v3636
      %3638 = vmatmul.f32.gmra.mxu0 %v3527
      %v3639 = vpop.f32.mrf.mxu0
      %v3640 = vadd.f32 %v3467, %v3639
      %3641 = vmatmul.f32.gmra.mxu0 %v3530
      %v3642 = vpop.f32.mrf.mxu0
      %v3643 = vadd.f32 %v3467, %v3642
      %3644 = vmatmul.f32.gmra.mxu0 %v3533
      %v3645 = vpop.f32.mrf.mxu0
      %v3646 = vadd.f32 %v3467, %v3645
      %3647 = vmatmul.f32.gmra.mxu0 %v3536
      %v3648 = vpop.f32.mrf.mxu0
      %v3649 = vadd.f32 %v3467, %v3648
      %3650 = vmatmul.f32.gmra.mxu0 %v3539
      %v3651 = vpop.f32.mrf.mxu0
      %v3652 = vadd.f32 %v3467, %v3651
      %3653 = vmatmul.f32.gmra.mxu0 %v3542
      %v3654 = vpop.f32.mrf.mxu0
      %v3655 = vadd.f32 %v3467, %v3654
      %3656 = vmatmul.f32.gmra.mxu0 %v3545
      %v3657 = vpop.f32.mrf.mxu0
      %v3658 = vadd.f32 %v3467, %v3657
      %3659 = vmatmul.f32.gmra.mxu0 %v3548
      %v3660 = vpop.f32.mrf.mxu0
      %v3661 = vadd.f32 %v3467, %v3660
      %3662 = vmatmul.f32.gmra.mxu0 %v3551
      %v3663 = vpop.f32.mrf.mxu0
      %v3664 = vadd.f32 %v3467, %v3663
      %3665 = vmatmul.f32.gmra.mxu0 %v3554
      %v3666 = vpop.f32.mrf.mxu0
      %v3667 = vadd.f32 %v3467, %v3666
      %3668 = vmatmul.f32.gmra.mxu0 %v3557
      %v3669 = vpop.f32.mrf.mxu0
      %v3670 = vadd.f32 %v3467, %v3669
      %3671 = vmatmul.f32.gmra.mxu0 %v3560
      %v3672 = vpop.f32.mrf.mxu0
      %v3673 = vadd.f32 %v3467, %v3672
      %3674 = vmatmul.f32.gmra.mxu0 %v3563
      %v3675 = vpop.f32.mrf.mxu0
      %v3676 = vadd.f32 %v3467, %v3675
      %3677 = vdwg.mxu0
      %3678 = vst.msk [vmem:[%s513] sm:$0xff] %vm549, %v3583
      %3679 = vst.msk [vmem:[%s513 + $0x8] sm:$0xff] %vm549, %v3586
      %3680 = vst.msk [vmem:[%s513 + $0x10] sm:$0xff] %vm549, %v3589
      %3681 = vst.msk [vmem:[%s513 + $0x18] sm:$0xff] %vm549, %v3592
      %3682 = vst.msk [vmem:[%s513 + $0x20] sm:$0xff] %vm549, %v3595
      %3683 = vst.msk [vmem:[%s513 + $0x28] sm:$0xff] %vm549, %v3598
      %3684 = vst.msk [vmem:[%s513 + $0x30] sm:$0xff] %vm549, %v3601
      %3685 = vst.msk [vmem:[%s513 + $0x38] sm:$0xff] %vm549, %v3604
      %3686 = vst.msk [vmem:[%s513 + $0x40] sm:$0xff] %vm549, %v3607
      %3687 = vst.msk [vmem:[%s513 + $0x48] sm:$0xff] %vm549, %v3610
      %3688 = vst.msk [vmem:[%s513 + $0x50] sm:$0xff] %vm549, %v3613
      %3689 = vst.msk [vmem:[%s513 + $0x58] sm:$0xff] %vm549, %v3616
      %3690 = vst.msk [vmem:[%s513 + $0x60] sm:$0xff] %vm549, %v3619
      %3691 = vst.msk [vmem:[%s513 + $0x68] sm:$0xff] %vm549, %v3622
      %3692 = vst.msk [vmem:[%s513 + $0x70] sm:$0xff] %vm549, %v3625
      %3693 = vst.msk [vmem:[%s513 + $0x78] sm:$0xff] %vm549, %v3628
      %3694 = vst.msk [vmem:[%s513 + $0x80] sm:$0xff] %vm549, %v3631
      %3695 = vst.msk [vmem:[%s513 + $0x88] sm:$0xff] %vm549, %v3634
      %3696 = vst.msk [vmem:[%s513 + $0x90] sm:$0xff] %vm549, %v3637
      %3697 = vst.msk [vmem:[%s513 + $0x98] sm:$0xff] %vm549, %v3640
      %3698 = vst.msk [vmem:[%s513 + $0xa0] sm:$0xff] %vm549, %v3643
      %3699 = vst.msk [vmem:[%s513 + $0xa8] sm:$0xff] %vm549, %v3646
      %3700 = vst.msk [vmem:[%s513 + $0xb0] sm:$0xff] %vm549, %v3649
      %3701 = vst.msk [vmem:[%s513 + $0xb8] sm:$0xff] %vm549, %v3652
      %3702 = vst.msk [vmem:[%s513 + $0xc0] sm:$0xff] %vm549, %v3655
      %3703 = vst.msk [vmem:[%s513 + $0xc8] sm:$0xff] %vm549, %v3658
      %3704 = vst.msk [vmem:[%s513 + $0xd0] sm:$0xff] %vm549, %v3661
      %3705 = vst.msk [vmem:[%s513 + $0xd8] sm:$0xff] %vm549, %v3664
      %3706 = vst.msk [vmem:[%s513 + $0xe0] sm:$0xff] %vm549, %v3667
      %3707 = vst.msk [vmem:[%s513 + $0xe8] sm:$0xff] %vm549, %v3670
      %3708 = vst.msk [vmem:[%s513 + $0xf0] sm:$0xff] %vm549, %v3673
      %3709 = vst.msk [vmem:[%s513 + $0xf8] sm:$0xff] %vm549, %v3676
      %s3710 = smul.u32 32, %s25
      %p3711 = scmp.lt.s32.totalorder %s3710, 63
      %s3712 = scalar_select %p3711, %s3710, 63
      %s3713 = smul.addr %s3712, 8
      %s3714 = scalar_lea.vmem %s11, %s3713
      %s3715 = smul.u32 32, %s25
      %p3716 = scmp.lt.s32.totalorder %s3715, 63
      %s3717 = scalar_select %p3716, %s3715, 63
      %s3718 = smul.addr %s3717, 8
      %s3719 = scalar_lea.vmem %s12, %s3718
      %s3720 = smul.u32 32, %s25
      %p3721 = scmp.lt.s32.totalorder %s3720, 63
      %s3722 = scalar_select %p3721, %s3720, 63
      %s3723 = smul.addr %s3722, 8
      %s3724 = scalar_lea.vmem %s13, %s3723
      // Predicated region
      $region65: #{tpu_custom_call.1} parent=63 // pred_check
        %p3725 = pneg %p289
      $region66: #{tpu_custom_call.1} parent=63 // pred_check_branch
        %3727 = sbr.rel (%p3725) target = $region68
      $region67: #{tpu_custom_call.1} parent=63 // pred_region
        %s3728 = smul.u32 32, %s25
      $region68: #{tpu_custom_call.1} parent=63 // pred_fallthru
        _
      // Predicated region
      $region69: #{tpu_custom_call.1} parent=63 // pred_check
        %p3729 = pneg %p315
      $region70: #{tpu_custom_call.1} parent=63 // pred_check_branch
        %3731 = sbr.rel (%p3729) target = $region72
      $region71: #{tpu_custom_call.1} parent=63 // pred_region
        %s3732 = smul.u32 32, %s25
      $region72: #{tpu_custom_call.1} parent=63 // pred_fallthru
        _
      // Predicated region
      $region73: #{tpu_custom_call.1} parent=63 // pred_check
        %p3733 = pneg %p341
      $region74: #{tpu_custom_call.1} parent=63 // pred_check_branch
        %3735 = sbr.rel (%p3733) target = $region76
      $region75: #{tpu_custom_call.1} parent=63 // pred_region
        %s3736 = smul.u32 32, %s25
      $region76: #{tpu_custom_call.1} parent=63 // pred_fallthru
        _
    $region64: #{tpu_custom_call.1} parent=5 // pred_fallthru
      _
    %p3737 = scmp.le.s32.totalorder 2, %s20
    // Predicated region
    $region77: #{tpu_custom_call.1} parent=5 // pred_check
      %p3738 = pneg %p3737
    $region78: #{tpu_custom_call.1} parent=5 // pred_check_branch
      %3740 = sbr.rel (%p3738) target = $region80
    $region79: #{tpu_custom_call.1} parent=5 // pred_region
      %s3741 = ssub.s32 %s20, 2
      // Predicated region
      $region81: #{tpu_custom_call.1} parent=79 // pred_check
        %p3742 = pneg %p295
      $region82: #{tpu_custom_call.1} parent=79 // pred_check_branch
        %3744 = sbr.rel (%p3742) target = $region84
      $region83: #{tpu_custom_call.1} parent=79 // pred_region
        %s3745 = smul.u32 32, %s26
        %p3746 = scmp.lt.s32.totalorder %s3745, 63
        %s3747 = scalar_select %p3746, %s3745, 63
        %s3748 = smul.addr %s3747, 8
        %s3749 = scalar_lea.vmem %s11, %s3748
      $region84: #{tpu_custom_call.1} parent=79 // pred_fallthru
        _
      // Predicated region
      $region85: #{tpu_custom_call.1} parent=79 // pred_check
        %p3750 = pneg %p321
      $region86: #{tpu_custom_call.1} parent=79 // pred_check_branch
        %3752 = sbr.rel (%p3750) target = $region88
      $region87: #{tpu_custom_call.1} parent=79 // pred_region
        %s3753 = smul.u32 32, %s26
        %p3754 = scmp.lt.s32.totalorder %s3753, 63
        %s3755 = scalar_select %p3754, %s3753, 63
        %s3756 = smul.addr %s3755, 8
        %s3757 = scalar_lea.vmem %s12, %s3756
      $region88: #{tpu_custom_call.1} parent=79 // pred_fallthru
        _
      // Predicated region
      $region89: #{tpu_custom_call.1} parent=79 // pred_check
        %p3758 = pneg %p347
      $region90: #{tpu_custom_call.1} parent=79 // pred_check_branch
        %3760 = sbr.rel (%p3758) target = $region92
      $region91: #{tpu_custom_call.1} parent=79 // pred_region
        %s3761 = smul.u32 32, %s26
        %p3762 = scmp.lt.s32.totalorder %s3761, 63
        %s3763 = scalar_select %p3762, %s3761, 63
        %s3764 = smul.addr %s3763, 8
        %s3765 = scalar_lea.vmem %s13, %s3764
      $region92: #{tpu_custom_call.1} parent=79 // pred_fallthru
        _
    $region80: #{tpu_custom_call.1} parent=5 // pred_fallthru
      _
  $region6: #{tpu_custom_call.1} parent=0 // loop_footer
    %s24 = sadd.s32 1, %s20
  $region7: #{tpu_custom_call.1} parent=0 // loop_footer_branch
    %19 = sbr.rel target = $region3
  $region8: #{tpu_custom_call.1} parent=0 // loop_exit
    _

</llo_original>
